<compile_context>
chip_gen: v7x
topology: tpu7x:2x2x1
jax: 0.10.0
libtpu: 0.0.40
codegen_flags: <defaults>
</compile_context>

<pallas_src>
import functools

import numpy as np
import jax
import jax.numpy as jnp
from jax.experimental import pallas as pl
from jax.experimental.pallas import tpu as pltpu


def _round_up(x, m):
    return (x + m - 1) // m * m


def _cnniqa_kernel(
    # ---- inputs ----
    x_ref,       # (TB, H*W)      bf16, one sample per row (lane-dense)
    m1_ref,      # (4, H*W, PF)   bf16, conv1 Toeplitz weights, one per 2x2 pool phase
    b1_ref,      # (1, PF)        f32, conv1 bias broadcast over pooled positions
    m2_ref,      # (PF, SP*C2)    bf16, conv2 Toeplitz weights, lanes = (spatial, chan)
    b2_ref,      # (1, SP*C2)     f32
    fc1wa_ref,   # (C2, N1)       f32, fc1 weight, max-feature half
    fc1wb_ref,   # (C2, N1)       f32, fc1 weight, min-feature half
    fc1b_ref,    # (1, N1)
    fc2w_ref,    # (N1, N2)
    fc2b_ref,    # (1, N2)
    hw_ref,      # (N2, NOUT)     fused q/d head weight (zero padded to lane-dense)
    hb_ref,      # (1, NOUT)
    # ---- outputs ----
    out_ref,     # (TB, NOUT)     col 0 = q, cols 1..ND = d, rest zero
    *, dims,
):
    f32 = jnp.float32
    bf16 = jnp.bfloat16
    C2, SP = dims["C2"], dims["SP"]

    x = x_ref[...]                                            # (TB, H*W) bf16

    # -------- conv1 + folded 2x2 max pool: one Toeplitz matmul per pool phase ------
    pool = jnp.dot(x, m1_ref[0], preferred_element_type=f32)
    for g in range(1, 4):
        pool = jnp.maximum(pool,
                           jnp.dot(x, m1_ref[g], preferred_element_type=f32))
    pool = pool + b1_ref[...]                                 # (TB, PF) f32

    # -------- conv2 as one Toeplitz matmul, output lanes = (spatial, channel) ------
    c2 = (jnp.dot(pool.astype(bf16), m2_ref[...], preferred_element_type=f32)
          + b2_ref[...])                                      # (TB, SP*C2) f32

    # -------- global max / min over spatial positions: log-tree lane-group reduce --
    # SP is a power of two; padded spatial groups duplicate position 0, so the
    # reduction result is exact.
    gmax = c2
    gmin = c2
    w = (SP * C2) // 2
    while w >= C2:
        gmax = jnp.maximum(gmax[:, :w], gmax[:, w:])
        gmin = jnp.minimum(gmin[:, :w], gmin[:, w:])
        w //= 2
    # gmax / gmin: (TB, C2)

    # -------- fully-connected head (fc1 split over the [max, min] concat) ----------
    z = (jnp.dot(gmax, fc1wa_ref[...], preferred_element_type=f32)
         + jnp.dot(gmin, fc1wb_ref[...], preferred_element_type=f32)
         + fc1b_ref[...])
    h = jnp.maximum(z, 0.0)
    # TODO(synk): F.dropout defaults to training=True (stochastic, p=0.5); kept as
    # identity (inference semantics) to keep the kernel deterministic.
    z = jnp.dot(h, fc2w_ref[...], preferred_element_type=f32) + fc2b_ref[...]
    h = jnp.maximum(z, 0.0)
    out_ref[...] = jnp.dot(h, hw_ref[...], preferred_element_type=f32) + hb_ref[...]


def cnniqa_forward(x, params, *, tb=512):
    """x: (..., 1, H, W) float32, PyTorch NCHW convention. Returns (q, d)."""
    C, H, W = x.shape[-3], x.shape[-2], x.shape[-1]
    assert C == 1, "conv1 expects a single input channel"
    x4 = x.reshape(-1, C, H, W).astype(jnp.float32)
    B = x4.shape[0]

    w1 = np.asarray(params["conv1_w"], np.float32)   # (C1, 1, K, K)
    b1 = np.asarray(params["conv1_b"], np.float32)
    w2 = np.asarray(params["conv2_w"], np.float32)   # (C2, C1, K, K)
    b2 = np.asarray(params["conv2_b"], np.float32)
    C1, _, K, _ = w1.shape
    C2 = w2.shape[0]
    H1, W1 = H - K + 1, W - K + 1
    assert H1 % 2 == 0 and W1 % 2 == 0, "kernel specialized to even post-conv1 dims"
    Hp, Wp = H1 // 2, W1 // 2
    H2, W2d = Hp - K + 1, Wp - K + 1
    assert H2 > 0 and W2d > 0
    S2 = H2 * W2d                                    # real conv2 spatial positions
    SP = 1 << (S2 - 1).bit_length()                  # padded to a power of two
    PF = _round_up(C1 * Hp * Wp, 128)                # pooled-feature lanes (conv2 K)
    N1 = params["fc1_w"].shape[0]
    N2 = params["fc2_w"].shape[0]
    ND = params["fc3d_w"].shape[0]
    NOUT = 128                                       # lane-dense output block
    assert 1 + ND <= NOUT

    # ---- host-side re-layout of the weights into MXU matmul operands (numpy) ------
    # conv1 + pool fold: m1[g] maps input pixels -> pooled lane (c, p, v) for pool
    # phase g = 2*a + b (conv1 output pixel (2p+a, 2v+b)).
    m1 = np.zeros((4, H * W, PF), np.float32)
    for a in range(2):
        for b in range(2):
            g = 2 * a + b
            for c in range(C1):
                for di in range(K):
                    for dj in range(K):
                        wv = w1[c, 0, di, dj]
                        for p in range(Hp):
                            for v in range(Wp):
                                row = (2 * p + a + di) * W + (2 * v + b + dj)
                                m1[g, row, c * Hp * Wp + p * Wp + v] += wv
    b1row = np.zeros((1, PF), np.float32)
    for c in range(C1):
        b1row[0, c * Hp * Wp:(c + 1) * Hp * Wp] = b1[c]

    # conv2 Toeplitz: rows = pooled lane (ci, p, v); cols = (spatial s, out chan o).
    m2 = np.zeros((PF, SP * C2), np.float32)
    for o in range(C2):
        for ci in range(C1):
            for di in range(K):
                for dj in range(K):
                    wv = w2[o, ci, di, dj]
                    for y2 in range(H2):
                        for x2 in range(W2d):
                            row = ci * Hp * Wp + (y2 + di) * Wp + (x2 + dj)
                            col = (y2 * W2d + x2) * C2 + o
                            m2[row, col] += wv
    # padded spatial groups duplicate position 0 so max/min stay exact
    for s in range(S2, SP):
        m2[:, s * C2:(s + 1) * C2] = m2[:, 0:C2]
    b2row = np.tile(b2, SP)[None, :]                 # (1, SP*C2)

    fc1w = np.asarray(params["fc1_w"], np.float32)   # (N1, 2*C2)
    fc1wa = np.ascontiguousarray(fc1w[:, :C2].T)     # (C2, N1)  max half
    fc1wb = np.ascontiguousarray(fc1w[:, C2:].T)     # (C2, N1)  min half
    fc1b = np.asarray(params["fc1_b"], np.float32)[None, :]
    fc2w = np.ascontiguousarray(np.asarray(params["fc2_w"], np.float32).T)
    fc2b = np.asarray(params["fc2_b"], np.float32)[None, :]
    headw = np.zeros((N2, NOUT), np.float32)
    headw[:, 0:1] = np.asarray(params["fc3q_w"], np.float32).T
    headw[:, 1:1 + ND] = np.asarray(params["fc3d_w"], np.float32).T
    headb = np.zeros((1, NOUT), np.float32)
    headb[0, 0:1] = np.asarray(params["fc3q_b"], np.float32)
    headb[0, 1:1 + ND] = np.asarray(params["fc3d_b"], np.float32)

    # ---- batch tiling: prefer >= 2 grid steps (v7x dual TensorCore) ---------------
    Bmin = _round_up(B, 8)
    if Bmin >= 2 * tb:
        TB = tb
    elif Bmin > 8:
        TB = _round_up((Bmin + 1) // 2, 8)
    else:
        TB = Bmin
    Bp = _round_up(Bmin, TB)

    x2 = x4.reshape(B, H * W)
    if Bp != B:
        x2 = jnp.concatenate([x2, jnp.zeros((Bp - B, H * W), jnp.float32)], axis=0)
    x2 = x2.astype(jnp.bfloat16)                     # halves input DMA / VMEM bytes

    consts = [
        jnp.asarray(m1, jnp.bfloat16), jnp.asarray(b1row),
        jnp.asarray(m2, jnp.bfloat16), jnp.asarray(b2row),
        jnp.asarray(fc1wa), jnp.asarray(fc1wb), jnp.asarray(fc1b),
        jnp.asarray(fc2w), jnp.asarray(fc2b),
        jnp.asarray(headw), jnp.asarray(headb),
    ]

    def _const_spec(a):
        nd = a.ndim
        return pl.BlockSpec(a.shape, lambda i, _n=nd: (0,) * _n)

    dims = dict(TB=TB, C2=C2, SP=SP)
    kernel = functools.partial(_cnniqa_kernel, dims=dims)

    out = pl.pallas_call(
        kernel,
        out_shape=jax.ShapeDtypeStruct((Bp, NOUT), jnp.float32),
        grid_spec=pltpu.PrefetchScalarGridSpec(
            num_scalar_prefetch=0,
            grid=(Bp // TB,),
            in_specs=[pl.BlockSpec((TB, H * W), lambda i: (i, 0))]
                     + [_const_spec(a) for a in consts],
            out_specs=pl.BlockSpec((TB, NOUT), lambda i: (i, 0)),
        ),
        compiler_params=pltpu.CompilerParams(
            dimension_semantics=("parallel",),
            vmem_limit_bytes=32 * 1024 * 1024,
        ),
    )(x2, *consts)

    q = out[:B, 0:1]
    d = out[:B, 1:1 + ND]
    return q, d


def reference_forward(x, params):
    """Pure-JAX reference (eval-mode dropout), mirrors the PyTorch module."""
    C, H, W = x.shape[-3], x.shape[-2], x.shape[-1]
    x4 = x.reshape(-1, C, H, W)
    hi = jax.lax.Precision.HIGHEST
    h = jax.lax.conv_general_dilated(
        x4, params["conv1_w"], (1, 1), "VALID",
        dimension_numbers=("NCHW", "OIHW", "NCHW"), precision=hi)
    h = h + params["conv1_b"][None, :, None, None]
    B, C1, H1, W1 = h.shape
    h = h.reshape(B, C1, H1 // 2, 2, W1 // 2, 2).max(axis=(3, 5))
    h = jax.lax.conv_general_dilated(
        h, params["conv2_w"], (1, 1), "VALID",
        dimension_numbers=("NCHW", "OIHW", "NCHW"), precision=hi)
    h = h + params["conv2_b"][None, :, None, None]
    h1 = h.max(axis=(2, 3))
    h2 = h.min(axis=(2, 3))
    f = jnp.concatenate([h1, h2], axis=1)
    hh = jax.nn.relu(jnp.dot(f, params["fc1_w"].T, precision=hi) + params["fc1_b"])
    hh = jax.nn.relu(jnp.dot(hh, params["fc2_w"].T, precision=hi) + params["fc2_b"])
    q = jnp.dot(hh, params["fc3q_w"].T, precision=hi) + params["fc3q_b"]
    d = jnp.dot(hh, params["fc3d_w"].T, precision=hi) + params["fc3d_b"]
    return q, d


def init_params(key, n_distortions, ker_size=3, n1_kers=8, n2_kers=32,
                n1_nodes=128, n2_nodes=512):
    ks = jax.random.split(key, 12)

    def w(k, shape, scale):
        return scale * jax.random.normal(k, shape, jnp.float32)

    return {
        "conv1_w": w(ks[0], (n1_kers, 1, ker_size, ker_size), 0.3),
        "conv1_b": w(ks[1], (n1_kers,), 0.1),
        "conv2_w": w(ks[2], (n2_kers, n1_kers, ker_size, ker_size), 0.1),
        "conv2_b": w(ks[3], (n2_kers,), 0.1),
        "fc1_w":  w(ks[4], (n1_nodes, 2 * n2_kers), 0.1),
        "fc1_b":  w(ks[5], (n1_nodes,), 0.1),
        "fc2_w":  w(ks[6], (n2_nodes, n1_nodes), 0.05),
        "fc2_b":  w(ks[7], (n2_nodes,), 0.05),
        "fc3q_w": w(ks[8], (1, n2_nodes), 0.05),
        "fc3q_b": w(ks[9], (1,), 0.05),
        "fc3d_w": w(ks[10], (n_distortions, n2_nodes), 0.05),
        "fc3d_b": w(ks[11], (n_distortions,), 0.05),
    }


if __name__ == "__main__":
    key = jax.random.PRNGKey(0)
    kx, kp = jax.random.split(key)
    n_distortions = 5

    x = jax.random.normal(kx, (2, 1, 16, 16), jnp.float32)
    params = init_params(kp, n_distortions)

    q, d = cnniqa_forward(x, params)
    jax.block_until_ready((q, d))

    q_ref, d_ref = reference_forward(x, params)
    assert q.shape == (2, 1) and d.shape == (2, n_distortions)
    # Tolerance covers bf16 MXU operands in the conv stages (f32 accumulation).
    assert jnp.allclose(q, q_ref, atol=5e-2, rtol=5e-2), (q, q_ref)
    assert jnp.allclose(d, d_ref, atol=5e-2, rtol=5e-2), (d, d_ref)
    print("KERNEL_OK")
</pallas_src>

<mosaic_0001>
module attributes {stable_mosaic.version = 11 : i64} {
  func.func @_cnniqa_kernel(%arg0: i32, %arg1: memref<8x256xbf16, #tpu.memory_space<vmem>>, %arg2: memref<4x256x512xbf16, #tpu.memory_space<vmem>>, %arg3: memref<1x512xf32, #tpu.memory_space<vmem>>, %arg4: memref<512x1024xbf16, #tpu.memory_space<vmem>>, %arg5: memref<1x1024xf32, #tpu.memory_space<vmem>>, %arg6: memref<32x128xf32, #tpu.memory_space<vmem>>, %arg7: memref<32x128xf32, #tpu.memory_space<vmem>>, %arg8: memref<1x128xf32, #tpu.memory_space<vmem>>, %arg9: memref<128x512xf32, #tpu.memory_space<vmem>>, %arg10: memref<1x512xf32, #tpu.memory_space<vmem>>, %arg11: memref<512x128xf32, #tpu.memory_space<vmem>>, %arg12: memref<1x128xf32, #tpu.memory_space<vmem>>, %arg13: memref<8x128xf32, #tpu.memory_space<vmem>>) attributes {dimension_semantics = [#tpu.dimension_semantics<parallel>], iteration_bounds = array<i64: 1>, scalar_prefetch = 0 : i64, scratch_operands = 0 : i64, tpu.core_type = #tpu.core_type<tc>, window_params = [{transform_indices = @transform_0, window_bounds = array<i64: 8, 256>}, {pipeline_mode = #tpu.pipeline_mode<synchronous>, transform_indices = @transform_1, window_bounds = array<i64: 4, 256, 512>}, {pipeline_mode = #tpu.pipeline_mode<synchronous>, transform_indices = @transform_2, window_bounds = array<i64: 1, 512>}, {pipeline_mode = #tpu.pipeline_mode<synchronous>, transform_indices = @transform_3, window_bounds = array<i64: 512, 1024>}, {pipeline_mode = #tpu.pipeline_mode<synchronous>, transform_indices = @transform_4, window_bounds = array<i64: 1, 1024>}, {pipeline_mode = #tpu.pipeline_mode<synchronous>, transform_indices = @transform_5, window_bounds = array<i64: 32, 128>}, {pipeline_mode = #tpu.pipeline_mode<synchronous>, transform_indices = @transform_6, window_bounds = array<i64: 32, 128>}, {pipeline_mode = #tpu.pipeline_mode<synchronous>, transform_indices = @transform_7, window_bounds = array<i64: 1, 128>}, {pipeline_mode = #tpu.pipeline_mode<synchronous>, transform_indices = @transform_8, window_bounds = array<i64: 128, 512>}, {pipeline_mode = #tpu.pipeline_mode<synchronous>, transform_indices = @transform_9, window_bounds = array<i64: 1, 512>}, {pipeline_mode = #tpu.pipeline_mode<synchronous>, transform_indices = @transform_10, window_bounds = array<i64: 512, 128>}, {pipeline_mode = #tpu.pipeline_mode<synchronous>, transform_indices = @transform_11, window_bounds = array<i64: 1, 128>}, {transform_indices = @transform_12, window_bounds = array<i64: 8, 128>}]} {
    %c0 = arith.constant 0 : index
    %c0_0 = arith.constant 0 : index
    %0 = vector.load %arg1[%c0, %c0_0] : memref<8x256xbf16, #tpu.memory_space<vmem>>, vector<8x256xbf16>
    %c0_1 = arith.constant 0 : index
    %c0_2 = arith.constant 0 : index
    %c0_3 = arith.constant 0 : index
    %1 = vector.load %arg2[%c0_1, %c0_2, %c0_3] : memref<4x256x512xbf16, #tpu.memory_space<vmem>>, vector<1x256x512xbf16>
    %2 = vector.shape_cast %1 : vector<1x256x512xbf16> to vector<256x512xbf16>
    %cst = arith.constant dense<0.000000e+00> : vector<8x512xf32>
    %3 = tpu.matmul %0, %2, %cst {dimension_numbers = #tpu.dot_dimension_numbers<[1], [0], [0], [1], [0, 0, 1, 1], [], []>} : vector<8x256xbf16>, vector<256x512xbf16>, vector<8x512xf32> -> vector<8x512xf32>
    %c1 = arith.constant 1 : index
    %c0_4 = arith.constant 0 : index
    %c0_5 = arith.constant 0 : index
    %4 = vector.load %arg2[%c1, %c0_4, %c0_5] : memref<4x256x512xbf16, #tpu.memory_space<vmem>>, vector<1x256x512xbf16>
    %5 = vector.shape_cast %4 : vector<1x256x512xbf16> to vector<256x512xbf16>
    %cst_6 = arith.constant dense<0.000000e+00> : vector<8x512xf32>
    %6 = tpu.matmul %0, %5, %cst_6 {dimension_numbers = #tpu.dot_dimension_numbers<[1], [0], [0], [1], [0, 0, 1, 1], [], []>} : vector<8x256xbf16>, vector<256x512xbf16>, vector<8x512xf32> -> vector<8x512xf32>
    %7 = arith.maximumf %3, %6 : vector<8x512xf32>
    %c2 = arith.constant 2 : index
    %c0_7 = arith.constant 0 : index
    %c0_8 = arith.constant 0 : index
    %8 = vector.load %arg2[%c2, %c0_7, %c0_8] : memref<4x256x512xbf16, #tpu.memory_space<vmem>>, vector<1x256x512xbf16>
    %9 = vector.shape_cast %8 : vector<1x256x512xbf16> to vector<256x512xbf16>
    %cst_9 = arith.constant dense<0.000000e+00> : vector<8x512xf32>
    %10 = tpu.matmul %0, %9, %cst_9 {dimension_numbers = #tpu.dot_dimension_numbers<[1], [0], [0], [1], [0, 0, 1, 1], [], []>} : vector<8x256xbf16>, vector<256x512xbf16>, vector<8x512xf32> -> vector<8x512xf32>
    %11 = arith.maximumf %7, %10 : vector<8x512xf32>
    %c3 = arith.constant 3 : index
    %c0_10 = arith.constant 0 : index
    %c0_11 = arith.constant 0 : index
    %12 = vector.load %arg2[%c3, %c0_10, %c0_11] : memref<4x256x512xbf16, #tpu.memory_space<vmem>>, vector<1x256x512xbf16>
    %13 = vector.shape_cast %12 : vector<1x256x512xbf16> to vector<256x512xbf16>
    %cst_12 = arith.constant dense<0.000000e+00> : vector<8x512xf32>
    %14 = tpu.matmul %0, %13, %cst_12 {dimension_numbers = #tpu.dot_dimension_numbers<[1], [0], [0], [1], [0, 0, 1, 1], [], []>} : vector<8x256xbf16>, vector<256x512xbf16>, vector<8x512xf32> -> vector<8x512xf32>
    %15 = arith.maximumf %11, %14 : vector<8x512xf32>
    %c0_13 = arith.constant 0 : index
    %c0_14 = arith.constant 0 : index
    %16 = vector.load %arg3[%c0_13, %c0_14] : memref<1x512xf32, #tpu.memory_space<vmem>>, vector<1x512xf32>
    %17 = vector.broadcast %16 : vector<1x512xf32> to vector<8x512xf32>
    %18 = arith.addf %15, %17 : vector<8x512xf32>
    %19 = arith.truncf %18 : vector<8x512xf32> to vector<8x512xbf16>
    %c0_15 = arith.constant 0 : index
    %c0_16 = arith.constant 0 : index
    %20 = vector.load %arg4[%c0_15, %c0_16] : memref<512x1024xbf16, #tpu.memory_space<vmem>>, vector<512x1024xbf16>
    %cst_17 = arith.constant dense<0.000000e+00> : vector<8x1024xf32>
    %21 = tpu.matmul %19, %20, %cst_17 {dimension_numbers = #tpu.dot_dimension_numbers<[1], [0], [0], [1], [0, 0, 1, 1], [], []>} : vector<8x512xbf16>, vector<512x1024xbf16>, vector<8x1024xf32> -> vector<8x1024xf32>
    %c0_18 = arith.constant 0 : index
    %c0_19 = arith.constant 0 : index
    %22 = vector.load %arg5[%c0_18, %c0_19] : memref<1x1024xf32, #tpu.memory_space<vmem>>, vector<1x1024xf32>
    %23 = vector.broadcast %22 : vector<1x1024xf32> to vector<8x1024xf32>
    %24 = arith.addf %21, %23 : vector<8x1024xf32>
    %25 = vector.extract_strided_slice %24 {offsets = [0, 0], sizes = [8, 512], strides = [1, 1]} : vector<8x1024xf32> to vector<8x512xf32>
    %26 = vector.extract_strided_slice %24 {offsets = [0, 512], sizes = [8, 512], strides = [1, 1]} : vector<8x1024xf32> to vector<8x512xf32>
    %27 = arith.maximumf %25, %26 : vector<8x512xf32>
    %28 = vector.extract_strided_slice %24 {offsets = [0, 0], sizes = [8, 512], strides = [1, 1]} : vector<8x1024xf32> to vector<8x512xf32>
    %29 = vector.extract_strided_slice %24 {offsets = [0, 512], sizes = [8, 512], strides = [1, 1]} : vector<8x1024xf32> to vector<8x512xf32>
    %30 = arith.minimumf %28, %29 : vector<8x512xf32>
    %31 = vector.extract_strided_slice %27 {offsets = [0, 0], sizes = [8, 256], strides = [1, 1]} : vector<8x512xf32> to vector<8x256xf32>
    %32 = vector.extract_strided_slice %27 {offsets = [0, 256], sizes = [8, 256], strides = [1, 1]} : vector<8x512xf32> to vector<8x256xf32>
    %33 = arith.maximumf %31, %32 : vector<8x256xf32>
    %34 = vector.extract_strided_slice %30 {offsets = [0, 0], sizes = [8, 256], strides = [1, 1]} : vector<8x512xf32> to vector<8x256xf32>
    %35 = vector.extract_strided_slice %30 {offsets = [0, 256], sizes = [8, 256], strides = [1, 1]} : vector<8x512xf32> to vector<8x256xf32>
    %36 = arith.minimumf %34, %35 : vector<8x256xf32>
    %37 = vector.extract_strided_slice %33 {offsets = [0, 0], sizes = [8, 128], strides = [1, 1]} : vector<8x256xf32> to vector<8x128xf32>
    %38 = vector.extract_strided_slice %33 {offsets = [0, 128], sizes = [8, 128], strides = [1, 1]} : vector<8x256xf32> to vector<8x128xf32>
    %39 = arith.maximumf %37, %38 : vector<8x128xf32>
    %40 = vector.extract_strided_slice %36 {offsets = [0, 0], sizes = [8, 128], strides = [1, 1]} : vector<8x256xf32> to vector<8x128xf32>
    %41 = vector.extract_strided_slice %36 {offsets = [0, 128], sizes = [8, 128], strides = [1, 1]} : vector<8x256xf32> to vector<8x128xf32>
    %42 = arith.minimumf %40, %41 : vector<8x128xf32>
    %43 = vector.extract_strided_slice %39 {offsets = [0, 0], sizes = [8, 64], strides = [1, 1]} : vector<8x128xf32> to vector<8x64xf32>
    %44 = vector.extract_strided_slice %39 {offsets = [0, 64], sizes = [8, 64], strides = [1, 1]} : vector<8x128xf32> to vector<8x64xf32>
    %45 = arith.maximumf %43, %44 : vector<8x64xf32>
    %46 = vector.extract_strided_slice %42 {offsets = [0, 0], sizes = [8, 64], strides = [1, 1]} : vector<8x128xf32> to vector<8x64xf32>
    %47 = vector.extract_strided_slice %42 {offsets = [0, 64], sizes = [8, 64], strides = [1, 1]} : vector<8x128xf32> to vector<8x64xf32>
    %48 = arith.minimumf %46, %47 : vector<8x64xf32>
    %49 = vector.extract_strided_slice %45 {offsets = [0, 0], sizes = [8, 32], strides = [1, 1]} : vector<8x64xf32> to vector<8x32xf32>
    %50 = vector.extract_strided_slice %45 {offsets = [0, 32], sizes = [8, 32], strides = [1, 1]} : vector<8x64xf32> to vector<8x32xf32>
    %51 = arith.maximumf %49, %50 : vector<8x32xf32>
    %52 = vector.extract_strided_slice %48 {offsets = [0, 0], sizes = [8, 32], strides = [1, 1]} : vector<8x64xf32> to vector<8x32xf32>
    %53 = vector.extract_strided_slice %48 {offsets = [0, 32], sizes = [8, 32], strides = [1, 1]} : vector<8x64xf32> to vector<8x32xf32>
    %54 = arith.minimumf %52, %53 : vector<8x32xf32>
    %c0_20 = arith.constant 0 : index
    %c0_21 = arith.constant 0 : index
    %55 = vector.load %arg6[%c0_20, %c0_21] : memref<32x128xf32, #tpu.memory_space<vmem>>, vector<32x128xf32>
    %cst_22 = arith.constant dense<0.000000e+00> : vector<8x128xf32>
    %56 = tpu.matmul %51, %55, %cst_22 {dimension_numbers = #tpu.dot_dimension_numbers<[1], [0], [0], [1], [0, 0, 1, 1], [], []>} : vector<8x32xf32>, vector<32x128xf32>, vector<8x128xf32> -> vector<8x128xf32>
    %c0_23 = arith.constant 0 : index
    %c0_24 = arith.constant 0 : index
    %57 = vector.load %arg7[%c0_23, %c0_24] : memref<32x128xf32, #tpu.memory_space<vmem>>, vector<32x128xf32>
    %cst_25 = arith.constant dense<0.000000e+00> : vector<8x128xf32>
    %58 = tpu.matmul %54, %57, %cst_25 {dimension_numbers = #tpu.dot_dimension_numbers<[1], [0], [0], [1], [0, 0, 1, 1], [], []>} : vector<8x32xf32>, vector<32x128xf32>, vector<8x128xf32> -> vector<8x128xf32>
    %59 = arith.addf %56, %58 : vector<8x128xf32>
    %c0_26 = arith.constant 0 : index
    %c0_27 = arith.constant 0 : index
    %60 = vector.load %arg8[%c0_26, %c0_27] : memref<1x128xf32, #tpu.memory_space<vmem>>, vector<1x128xf32>
    %61 = vector.broadcast %60 : vector<1x128xf32> to vector<8x128xf32>
    %62 = arith.addf %59, %61 : vector<8x128xf32>
    %cst_28 = arith.constant 0.000000e+00 : f32
    %63 = vector.broadcast %cst_28 : f32 to vector<8x128xf32>
    %64 = arith.maximumf %62, %63 : vector<8x128xf32>
    %c0_29 = arith.constant 0 : index
    %c0_30 = arith.constant 0 : index
    %65 = vector.load %arg9[%c0_29, %c0_30] : memref<128x512xf32, #tpu.memory_space<vmem>>, vector<128x512xf32>
    %cst_31 = arith.constant dense<0.000000e+00> : vector<8x512xf32>
    %66 = tpu.matmul %64, %65, %cst_31 {dimension_numbers = #tpu.dot_dimension_numbers<[1], [0], [0], [1], [0, 0, 1, 1], [], []>} : vector<8x128xf32>, vector<128x512xf32>, vector<8x512xf32> -> vector<8x512xf32>
    %c0_32 = arith.constant 0 : index
    %c0_33 = arith.constant 0 : index
    %67 = vector.load %arg10[%c0_32, %c0_33] : memref<1x512xf32, #tpu.memory_space<vmem>>, vector<1x512xf32>
    %68 = vector.broadcast %67 : vector<1x512xf32> to vector<8x512xf32>
    %69 = arith.addf %66, %68 : vector<8x512xf32>
    %cst_34 = arith.constant 0.000000e+00 : f32
    %70 = vector.broadcast %cst_34 : f32 to vector<8x512xf32>
    %71 = arith.maximumf %69, %70 : vector<8x512xf32>
    %c0_35 = arith.constant 0 : index
    %c0_36 = arith.constant 0 : index
    %72 = vector.load %arg11[%c0_35, %c0_36] : memref<512x128xf32, #tpu.memory_space<vmem>>, vector<512x128xf32>
    %cst_37 = arith.constant dense<0.000000e+00> : vector<8x128xf32>
    %73 = tpu.matmul %71, %72, %cst_37 {dimension_numbers = #tpu.dot_dimension_numbers<[1], [0], [0], [1], [0, 0, 1, 1], [], []>} : vector<8x512xf32>, vector<512x128xf32>, vector<8x128xf32> -> vector<8x128xf32>
    %c0_38 = arith.constant 0 : index
    %c0_39 = arith.constant 0 : index
    %74 = vector.load %arg12[%c0_38, %c0_39] : memref<1x128xf32, #tpu.memory_space<vmem>>, vector<1x128xf32>
    %75 = vector.broadcast %74 : vector<1x128xf32> to vector<8x128xf32>
    %76 = arith.addf %73, %75 : vector<8x128xf32>
    %c0_40 = arith.constant 0 : index
    %c0_41 = arith.constant 0 : index
    %77 = vector.load %arg13[%c0_40, %c0_41] : memref<8x128xf32, #tpu.memory_space<vmem>>, vector<8x128xf32>
    tpu.vector_store %arg13[%c0_40, %c0_41], %76 {strides = array<i32>} : memref<8x128xf32, #tpu.memory_space<vmem>>, vector<8x128xf32>,
    return
  }
  func.func @transform_0(%arg0: i32) -> (i32, i32) {
    %c0_i32 = arith.constant 0 : i32
    %c0_i32_0 = arith.constant 0 : i32
    return %arg0, %c0_i32 : i32, i32
  }
  func.func @transform_1(%arg0: i32) -> (i32, i32, i32) {
    %c0_i32 = arith.constant 0 : i32
    %c0_i32_0 = arith.constant 0 : i32
    %c0_i32_1 = arith.constant 0 : i32
    %c0_i32_2 = arith.constant 0 : i32
    return %c0_i32, %c0_i32_0, %c0_i32_1 : i32, i32, i32
  }
  func.func @transform_2(%arg0: i32) -> (i32, i32) {
    %c0_i32 = arith.constant 0 : i32
    %c0_i32_0 = arith.constant 0 : i32
    %c0_i32_1 = arith.constant 0 : i32
    return %c0_i32, %c0_i32_0 : i32, i32
  }
  func.func @transform_3(%arg0: i32) -> (i32, i32) {
    %c0_i32 = arith.constant 0 : i32
    %c0_i32_0 = arith.constant 0 : i32
    %c0_i32_1 = arith.constant 0 : i32
    return %c0_i32, %c0_i32_0 : i32, i32
  }
  func.func @transform_4(%arg0: i32) -> (i32, i32) {
    %c0_i32 = arith.constant 0 : i32
    %c0_i32_0 = arith.constant 0 : i32
    %c0_i32_1 = arith.constant 0 : i32
    return %c0_i32, %c0_i32_0 : i32, i32
  }
  func.func @transform_5(%arg0: i32) -> (i32, i32) {
    %c0_i32 = arith.constant 0 : i32
    %c0_i32_0 = arith.constant 0 : i32
    %c0_i32_1 = arith.constant 0 : i32
    return %c0_i32, %c0_i32_0 : i32, i32
  }
  func.func @transform_6(%arg0: i32) -> (i32, i32) {
    %c0_i32 = arith.constant 0 : i32
    %c0_i32_0 = arith.constant 0 : i32
    %c0_i32_1 = arith.constant 0 : i32
    return %c0_i32, %c0_i32_0 : i32, i32
  }
  func.func @transform_7(%arg0: i32) -> (i32, i32) {
    %c0_i32 = arith.constant 0 : i32
    %c0_i32_0 = arith.constant 0 : i32
    %c0_i32_1 = arith.constant 0 : i32
    return %c0_i32, %c0_i32_0 : i32, i32
  }
  func.func @transform_8(%arg0: i32) -> (i32, i32) {
    %c0_i32 = arith.constant 0 : i32
    %c0_i32_0 = arith.constant 0 : i32
    %c0_i32_1 = arith.constant 0 : i32
    return %c0_i32, %c0_i32_0 : i32, i32
  }
  func.func @transform_9(%arg0: i32) -> (i32, i32) {
    %c0_i32 = arith.constant 0 : i32
    %c0_i32_0 = arith.constant 0 : i32
    %c0_i32_1 = arith.constant 0 : i32
    return %c0_i32, %c0_i32_0 : i32, i32
  }
  func.func @transform_10(%arg0: i32) -> (i32, i32) {
    %c0_i32 = arith.constant 0 : i32
    %c0_i32_0 = arith.constant 0 : i32
    %c0_i32_1 = arith.constant 0 : i32
    return %c0_i32, %c0_i32_0 : i32, i32
  }
  func.func @transform_11(%arg0: i32) -> (i32, i32) {
    %c0_i32 = arith.constant 0 : i32
    %c0_i32_0 = arith.constant 0 : i32
    %c0_i32_1 = arith.constant 0 : i32
    return %c0_i32, %c0_i32_0 : i32, i32
  }
  func.func @transform_12(%arg0: i32) -> (i32, i32) {
    %c0_i32 = arith.constant 0 : i32
    %c0_i32_0 = arith.constant 0 : i32
    return %arg0, %c0_i32 : i32, i32
  }
}

</mosaic_0001>

<llo_original>
// kernel: tpu_custom_call.1
$region0: #{tpu_custom_call.1}
  #allocation0 [shape = 'u32[]', space=smem, size = 0x4, offset = 0x4, fixed_abs, tag = 'smem constant byte address 0x4 - core index']
  #allocation1 [shape = 'u32[144,128]{1,0:T(1,128)}', space=vmem, size = 0x12000, scoped, tag = 'internal scratch']
  %s0 = inlined_call_operand.hbm [shape: bf16[8,256], index: 0, kind: input, shape index: {}]
  %s1 = inlined_call_operand.hbm [shape: bf16[4,256,512], index: 1, kind: input, shape index: {}]
  %s2 = inlined_call_operand.vmem [shape: f32[1,512], index: 2, kind: input, shape index: {}]
  %s3 = inlined_call_operand.hbm [shape: bf16[512,1024], index: 3, kind: input, shape index: {}]
  %s4 = inlined_call_operand.vmem [shape: f32[1,1024], index: 4, kind: input, shape index: {}]
  %s5 = inlined_call_operand.hbm [shape: f32[32,128], index: 5, kind: input, shape index: {}]
  %s6 = inlined_call_operand.hbm [shape: f32[32,128], index: 6, kind: input, shape index: {}]
  %s7 = inlined_call_operand.vmem [shape: f32[1,128], index: 7, kind: input, shape index: {}]
  %s8 = inlined_call_operand.hbm [shape: f32[128,512], index: 8, kind: input, shape index: {}]
  %s9 = inlined_call_operand.vmem [shape: f32[1,512], index: 9, kind: input, shape index: {}]
  %s10 = inlined_call_operand.hbm [shape: f32[512,128], index: 10, kind: input, shape index: {}]
  %s11 = inlined_call_operand.vmem [shape: f32[1,128], index: 11, kind: input, shape index: {}]
  %s12 = inlined_call_operand.hbm [shape: f32[8,128], index: 12, kind: output, shape index: {}]
  %s13 = sld [smem:[#allocation0]]
  $region86: #{tpu_custom_call.1} parent=0
    _
  %s15 = ssub.s32 1, %s13
  %s16 = scalar_select 0, %s15, %s13
  $region1: #{tpu_custom_call.1} parent=0
    #allocation2 [shape = 'u8[4096]{0}', space=vmem, size = 0x1000, scoped, tag = 'input window, operand 0, single buffered']
    #allocation3 [shape = 's32[1]{0}', space=sflag, size = 0x4, scoped, tag = 'scoped memory for tpu_custom_call.1']
    #allocation4 [shape = 's32[1]{0}', space=sflag, size = 0x4, scoped, tag = 'scoped memory for tpu_custom_call.1']
    #allocation5 [shape = 'u8[1048576]{0}', space=vmem, size = 0x100000, scoped, tag = 'input window, operand 1, single buffered']
    #allocation6 [shape = 's32[1]{0}', space=sflag, size = 0x4, scoped, tag = 'scoped memory for tpu_custom_call.1']
    #allocation7 [shape = 'u8[1048576]{0}', space=vmem, size = 0x100000, scoped, tag = 'input window, operand 3, single buffered']
    #allocation8 [shape = 'u8[16384]{0}', space=vmem, size = 0x4000, scoped, tag = 'input window, operand 5, single buffered']
    #allocation9 [shape = 's32[1]{0}', space=sflag, size = 0x4, scoped, tag = 'scoped memory for tpu_custom_call.1']
    #allocation10 [shape = 'u8[16384]{0}', space=vmem, size = 0x4000, scoped, tag = 'input window, operand 6, single buffered']
    #allocation11 [shape = 'u8[262144]{0}', space=vmem, size = 0x40000, scoped, tag = 'input window, operand 8, single buffered']
    #allocation12 [shape = 's32[1]{0}', space=sflag, size = 0x4, scoped, tag = 'scoped memory for tpu_custom_call.1']
    #allocation13 [shape = 'u8[262144]{0}', space=vmem, size = 0x40000, scoped, tag = 'input window, operand 10, single buffered']
    #allocation14 [shape = 'u8[4096]{0}', space=vmem, size = 0x1000, scoped, tag = 'output window, operand 0, single buffered']
    %17 = vsyncpa [#allocation3], 0
    %18 = vsyncpa [#allocation6], 0
    %19 = vsyncpa [#allocation9], 0
    %20 = vsyncpa [#allocation12], 0
    %21 = vsyncpa [#allocation4], 0
    // Predicated region
    $region2: #{tpu_custom_call.1} parent=1 // pred_check
      _
    $region3: #{tpu_custom_call.1} parent=1 // pred_check_branch
      %23 = sbr.rel (0) target = $region5
    $region4: #{tpu_custom_call.1} parent=1 // pred_region
      %s25 = ssub.s32 128, 128
      %26 = vsyncadd [#allocation3], %s25
      %s28 = sshll.u32 [#allocation2], 4
      %s29 = int_to_ptr.vmem [resolvable:$true] %s28
      %31 = dma.hbm_to_vmem [thread:$0]  %s0, 128, %s29, [#allocation3]
    $region5: #{tpu_custom_call.1} parent=1 // pred_fallthru
      _
    // Predicated region
    $region6: #{tpu_custom_call.1} parent=1 // pred_check
      _
    $region7: #{tpu_custom_call.1} parent=1 // pred_check_branch
      %33 = sbr.rel (0) target = $region9
    $region8: #{tpu_custom_call.1} parent=1 // pred_region
      %s35 = ssub.s32 32768, 32768
      %36 = vsyncadd [#allocation6], %s35
      %s37 = sshll.u32 [#allocation5], 4
      %s38 = int_to_ptr.vmem [resolvable:$true] %s37
      %43 = dma.hbm_to_vmem [thread:$0]  %s1, 32768, %s38, [#allocation6], 256, 256, 16
    $region9: #{tpu_custom_call.1} parent=1 // pred_fallthru
      _
    // Predicated region
    $region10: #{tpu_custom_call.1} parent=1 // pred_check
      _
    $region11: #{tpu_custom_call.1} parent=1 // pred_check_branch
      %45 = sbr.rel (0) target = $region13
    $region12: #{tpu_custom_call.1} parent=1 // pred_region
      _
    $region13: #{tpu_custom_call.1} parent=1 // pred_fallthru
      _
    // Predicated region
    $region14: #{tpu_custom_call.1} parent=1 // pred_check
      _
    $region15: #{tpu_custom_call.1} parent=1 // pred_check_branch
      %47 = sbr.rel (0) target = $region17
    $region16: #{tpu_custom_call.1} parent=1 // pred_region
      %s49 = ssub.s32 32768, 32768
      %50 = vsyncadd [#allocation6], %s49
      %s51 = sshll.u32 [#allocation7], 4
      %s52 = int_to_ptr.vmem [resolvable:$true] %s51
      %57 = dma.hbm_to_vmem [thread:$0]  %s3, 32768, %s52, [#allocation6], 512, 512, 32
    $region17: #{tpu_custom_call.1} parent=1 // pred_fallthru
      _
    // Predicated region
    $region18: #{tpu_custom_call.1} parent=1 // pred_check
      _
    $region19: #{tpu_custom_call.1} parent=1 // pred_check_branch
      %59 = sbr.rel (0) target = $region21
    $region20: #{tpu_custom_call.1} parent=1 // pred_region
      _
    $region21: #{tpu_custom_call.1} parent=1 // pred_fallthru
      _
    // Predicated region
    $region22: #{tpu_custom_call.1} parent=1 // pred_check
      _
    $region23: #{tpu_custom_call.1} parent=1 // pred_check_branch
      %61 = sbr.rel (0) target = $region25
    $region24: #{tpu_custom_call.1} parent=1 // pred_region
      %s63 = ssub.s32 512, 512
      %64 = vsyncadd [#allocation9], %s63
      %s65 = sshll.u32 [#allocation8], 4
      %s66 = int_to_ptr.vmem [resolvable:$true] %s65
      %71 = dma.hbm_to_vmem [thread:$0]  %s5, 512, %s66, [#allocation9], 128, 128, 8
    $region25: #{tpu_custom_call.1} parent=1 // pred_fallthru
      _
    // Predicated region
    $region26: #{tpu_custom_call.1} parent=1 // pred_check
      _
    $region27: #{tpu_custom_call.1} parent=1 // pred_check_branch
      %73 = sbr.rel (0) target = $region29
    $region28: #{tpu_custom_call.1} parent=1 // pred_region
      %s75 = ssub.s32 512, 512
      %76 = vsyncadd [#allocation9], %s75
      %s77 = sshll.u32 [#allocation10], 4
      %s78 = int_to_ptr.vmem [resolvable:$true] %s77
      %83 = dma.hbm_to_vmem [thread:$0]  %s6, 512, %s78, [#allocation9], 128, 128, 8
    $region29: #{tpu_custom_call.1} parent=1 // pred_fallthru
      _
    // Predicated region
    $region30: #{tpu_custom_call.1} parent=1 // pred_check
      _
    $region31: #{tpu_custom_call.1} parent=1 // pred_check_branch
      %85 = sbr.rel (0) target = $region33
    $region32: #{tpu_custom_call.1} parent=1 // pred_region
      _
    $region33: #{tpu_custom_call.1} parent=1 // pred_fallthru
      _
    // Predicated region
    $region34: #{tpu_custom_call.1} parent=1 // pred_check
      _
    $region35: #{tpu_custom_call.1} parent=1 // pred_check_branch
      %87 = sbr.rel (0) target = $region37
    $region36: #{tpu_custom_call.1} parent=1 // pred_region
      %s89 = ssub.s32 8192, 8192
      %90 = vsyncadd [#allocation12], %s89
      %s91 = sshll.u32 [#allocation11], 4
      %s92 = int_to_ptr.vmem [resolvable:$true] %s91
      %97 = dma.hbm_to_vmem [thread:$0]  %s8, 8192, %s92, [#allocation12], 512, 512, 32
    $region37: #{tpu_custom_call.1} parent=1 // pred_fallthru
      _
    // Predicated region
    $region38: #{tpu_custom_call.1} parent=1 // pred_check
      _
    $region39: #{tpu_custom_call.1} parent=1 // pred_check_branch
      %99 = sbr.rel (0) target = $region41
    $region40: #{tpu_custom_call.1} parent=1 // pred_region
      _
    $region41: #{tpu_custom_call.1} parent=1 // pred_fallthru
      _
    // Predicated region
    $region42: #{tpu_custom_call.1} parent=1 // pred_check
      _
    $region43: #{tpu_custom_call.1} parent=1 // pred_check_branch
      %101 = sbr.rel (0) target = $region45
    $region44: #{tpu_custom_call.1} parent=1 // pred_region
      %s103 = ssub.s32 8192, 8192
      %104 = vsyncadd [#allocation12], %s103
      %s105 = sshll.u32 [#allocation13], 4
      %s106 = int_to_ptr.vmem [resolvable:$true] %s105
      %111 = dma.hbm_to_vmem [thread:$0]  %s10, 8192, %s106, [#allocation12], 128, 128, 8
    $region45: #{tpu_custom_call.1} parent=1 // pred_fallthru
      _
    // Predicated region
    $region46: #{tpu_custom_call.1} parent=1 // pred_check
      _
    $region47: #{tpu_custom_call.1} parent=1 // pred_check_branch
      %113 = sbr.rel (0) target = $region49
    $region48: #{tpu_custom_call.1} parent=1 // pred_region
      _
    $region49: #{tpu_custom_call.1} parent=1 // pred_fallthru
      _
    // Predicated region
    $region50: #{tpu_custom_call.1} parent=1 // pred_check
      _
    $region51: #{tpu_custom_call.1} parent=1 // pred_check_branch
      %115 = sbr.rel (0) target = $region53
    $region52: #{tpu_custom_call.1} parent=1 // pred_region
      %116 = dma.done [#allocation3], 128
    $region53: #{tpu_custom_call.1} parent=1 // pred_fallthru
      _
    // Predicated region
    $region54: #{tpu_custom_call.1} parent=1 // pred_check
      _
    $region55: #{tpu_custom_call.1} parent=1 // pred_check_branch
      %118 = sbr.rel (0) target = $region57
    $region56: #{tpu_custom_call.1} parent=1 // pred_region
      %119 = dma.done [#allocation6], 32768
    $region57: #{tpu_custom_call.1} parent=1 // pred_fallthru
      _
    // Predicated region
    $region58: #{tpu_custom_call.1} parent=1 // pred_check
      _
    $region59: #{tpu_custom_call.1} parent=1 // pred_check_branch
      %121 = sbr.rel (0) target = $region61
    $region60: #{tpu_custom_call.1} parent=1 // pred_region
      %122 = dma.done [#allocation6], 32768
    $region61: #{tpu_custom_call.1} parent=1 // pred_fallthru
      _
    // Predicated region
    $region62: #{tpu_custom_call.1} parent=1 // pred_check
      _
    $region63: #{tpu_custom_call.1} parent=1 // pred_check_branch
      %124 = sbr.rel (0) target = $region65
    $region64: #{tpu_custom_call.1} parent=1 // pred_region
      %125 = dma.done [#allocation9], 512
    $region65: #{tpu_custom_call.1} parent=1 // pred_fallthru
      _
    // Predicated region
    $region66: #{tpu_custom_call.1} parent=1 // pred_check
      _
    $region67: #{tpu_custom_call.1} parent=1 // pred_check_branch
      %127 = sbr.rel (0) target = $region69
    $region68: #{tpu_custom_call.1} parent=1 // pred_region
      %128 = dma.done [#allocation9], 512
    $region69: #{tpu_custom_call.1} parent=1 // pred_fallthru
      _
    // Predicated region
    $region70: #{tpu_custom_call.1} parent=1 // pred_check
      _
    $region71: #{tpu_custom_call.1} parent=1 // pred_check_branch
      %130 = sbr.rel (0) target = $region73
    $region72: #{tpu_custom_call.1} parent=1 // pred_region
      %131 = dma.done [#allocation12], 8192
    $region73: #{tpu_custom_call.1} parent=1 // pred_fallthru
      _
    // Predicated region
    $region74: #{tpu_custom_call.1} parent=1 // pred_check
      _
    $region75: #{tpu_custom_call.1} parent=1 // pred_check_branch
      %133 = sbr.rel (0) target = $region77
    $region76: #{tpu_custom_call.1} parent=1 // pred_region
      %134 = dma.done [#allocation12], 8192
    $region77: #{tpu_custom_call.1} parent=1 // pred_fallthru
      _
    %v135 = vld [vmem:[#allocation2] sm:$0xff]
    %v136 = vld [vmem:[#allocation5] sm:$0xff]
    %v137 = vld [vmem:[#allocation5 + $0x8] sm:$0xff]
    %v138 = vld [vmem:[#allocation5 + $0x10] sm:$0xff]
    %v139 = vld [vmem:[#allocation5 + $0x18] sm:$0xff]
    %v140 = vld [vmem:[#allocation5 + $0x20] sm:$0xff]
    %v141 = vld [vmem:[#allocation5 + $0x28] sm:$0xff]
    %v142 = vld [vmem:[#allocation5 + $0x30] sm:$0xff]
    %v143 = vld [vmem:[#allocation5 + $0x38] sm:$0xff]
    %v144 = vld [vmem:[#allocation5 + $0x40] sm:$0xff]
    %v145 = vld [vmem:[#allocation5 + $0x48] sm:$0xff]
    %v146 = vld [vmem:[#allocation5 + $0x50] sm:$0xff]
    %v147 = vld [vmem:[#allocation5 + $0x58] sm:$0xff]
    %v148 = vld [vmem:[#allocation5 + $0x60] sm:$0xff]
    %v149 = vld [vmem:[#allocation5 + $0x68] sm:$0xff]
    %v150 = vld [vmem:[#allocation5 + $0x70] sm:$0xff]
    %v151 = vld [vmem:[#allocation5 + $0x78] sm:$0xff]
    %v152 = vld [vmem:[#allocation5 + $0x80] sm:$0xff]
    %v153 = vld [vmem:[#allocation5 + $0x88] sm:$0xff]
    %v154 = vld [vmem:[#allocation5 + $0x90] sm:$0xff]
    %v155 = vld [vmem:[#allocation5 + $0x98] sm:$0xff]
    %v156 = vld [vmem:[#allocation5 + $0xa0] sm:$0xff]
    %v157 = vld [vmem:[#allocation5 + $0xa8] sm:$0xff]
    %v158 = vld [vmem:[#allocation5 + $0xb0] sm:$0xff]
    %v159 = vld [vmem:[#allocation5 + $0xb8] sm:$0xff]
    %v160 = vld [vmem:[#allocation5 + $0xc0] sm:$0xff]
    %v161 = vld [vmem:[#allocation5 + $0xc8] sm:$0xff]
    %v162 = vld [vmem:[#allocation5 + $0xd0] sm:$0xff]
    %v163 = vld [vmem:[#allocation5 + $0xd8] sm:$0xff]
    %v164 = vld [vmem:[#allocation5 + $0xe0] sm:$0xff]
    %v165 = vld [vmem:[#allocation5 + $0xe8] sm:$0xff]
    %v166 = vld [vmem:[#allocation5 + $0xf0] sm:$0xff]
    %v167 = vld [vmem:[#allocation5 + $0xf8] sm:$0xff]
    %v168 = vld [vmem:[#allocation5 + $0x100] sm:$0xff]
    %v169 = vld [vmem:[#allocation5 + $0x108] sm:$0xff]
    %v170 = vld [vmem:[#allocation5 + $0x110] sm:$0xff]
    %v171 = vld [vmem:[#allocation5 + $0x118] sm:$0xff]
    %v172 = vld [vmem:[#allocation5 + $0x120] sm:$0xff]
    %v173 = vld [vmem:[#allocation5 + $0x128] sm:$0xff]
    %v174 = vld [vmem:[#allocation5 + $0x130] sm:$0xff]
    %v175 = vld [vmem:[#allocation5 + $0x138] sm:$0xff]
    %v176 = vld [vmem:[#allocation5 + $0x140] sm:$0xff]
    %v177 = vld [vmem:[#allocation5 + $0x148] sm:$0xff]
    %v178 = vld [vmem:[#allocation5 + $0x150] sm:$0xff]
    %v179 = vld [vmem:[#allocation5 + $0x158] sm:$0xff]
    %v180 = vld [vmem:[#allocation5 + $0x160] sm:$0xff]
    %v181 = vld [vmem:[#allocation5 + $0x168] sm:$0xff]
    %v182 = vld [vmem:[#allocation5 + $0x170] sm:$0xff]
    %v183 = vld [vmem:[#allocation5 + $0x178] sm:$0xff]
    %v184 = vld [vmem:[#allocation5 + $0x180] sm:$0xff]
    %v185 = vld [vmem:[#allocation5 + $0x188] sm:$0xff]
    %v186 = vld [vmem:[#allocation5 + $0x190] sm:$0xff]
    %v187 = vld [vmem:[#allocation5 + $0x198] sm:$0xff]
    %v188 = vld [vmem:[#allocation5 + $0x1a0] sm:$0xff]
    %v189 = vld [vmem:[#allocation5 + $0x1a8] sm:$0xff]
    %v190 = vld [vmem:[#allocation5 + $0x1b0] sm:$0xff]
    %v191 = vld [vmem:[#allocation5 + $0x1b8] sm:$0xff]
    %v192 = vld [vmem:[#allocation5 + $0x1c0] sm:$0xff]
    %v193 = vld [vmem:[#allocation5 + $0x1c8] sm:$0xff]
    %v194 = vld [vmem:[#allocation5 + $0x1d0] sm:$0xff]
    %v195 = vld [vmem:[#allocation5 + $0x1d8] sm:$0xff]
    %v196 = vld [vmem:[#allocation5 + $0x1e0] sm:$0xff]
    %v197 = vld [vmem:[#allocation5 + $0x1e8] sm:$0xff]
    %v198 = vld [vmem:[#allocation5 + $0x1f0] sm:$0xff]
    %v199 = vld [vmem:[#allocation5 + $0x1f8] sm:$0xff]
    %v201 = vunpack.c.l.b16 %v135
    %v202 = vunpack.c.h.b16 %v135
    %v203 = vpack.c.b16 %v201, %v201
    %v204 = vpack.c.b16 %v202, %v202
    %v271 = vunpack.c.l.b16 %v136
    %v272 = vunpack.c.h.b16 %v136
    %v273 = vunpack.c.l.b16 %v137
    %v274 = vunpack.c.h.b16 %v137
    %v275 = vunpack.c.l.b16 %v138
    %v276 = vunpack.c.h.b16 %v138
    %v277 = vunpack.c.l.b16 %v139
    %v278 = vunpack.c.h.b16 %v139
    %v279 = vunpack.c.l.b16 %v140
    %v280 = vunpack.c.h.b16 %v140
    %v281 = vunpack.c.l.b16 %v141
    %v282 = vunpack.c.h.b16 %v141
    %v283 = vunpack.c.l.b16 %v142
    %v284 = vunpack.c.h.b16 %v142
    %v285 = vunpack.c.l.b16 %v143
    %v286 = vunpack.c.h.b16 %v143
    %v287 = vunpack.c.l.b16 %v144
    %v288 = vunpack.c.h.b16 %v144
    %v289 = vunpack.c.l.b16 %v145
    %v290 = vunpack.c.h.b16 %v145
    %v291 = vunpack.c.l.b16 %v146
    %v292 = vunpack.c.h.b16 %v146
    %v293 = vunpack.c.l.b16 %v147
    %v294 = vunpack.c.h.b16 %v147
    %v295 = vunpack.c.l.b16 %v148
    %v296 = vunpack.c.h.b16 %v148
    %v297 = vunpack.c.l.b16 %v149
    %v298 = vunpack.c.h.b16 %v149
    %v299 = vunpack.c.l.b16 %v150
    %v300 = vunpack.c.h.b16 %v150
    %v301 = vunpack.c.l.b16 %v151
    %v302 = vunpack.c.h.b16 %v151
    %v303 = vunpack.c.l.b16 %v152
    %v304 = vunpack.c.h.b16 %v152
    %v305 = vunpack.c.l.b16 %v153
    %v306 = vunpack.c.h.b16 %v153
    %v307 = vunpack.c.l.b16 %v154
    %v308 = vunpack.c.h.b16 %v154
    %v309 = vunpack.c.l.b16 %v155
    %v310 = vunpack.c.h.b16 %v155
    %v311 = vunpack.c.l.b16 %v156
    %v312 = vunpack.c.h.b16 %v156
    %v313 = vunpack.c.l.b16 %v157
    %v314 = vunpack.c.h.b16 %v157
    %v315 = vunpack.c.l.b16 %v158
    %v316 = vunpack.c.h.b16 %v158
    %v317 = vunpack.c.l.b16 %v159
    %v318 = vunpack.c.h.b16 %v159
    %v319 = vunpack.c.l.b16 %v160
    %v320 = vunpack.c.h.b16 %v160
    %v321 = vunpack.c.l.b16 %v161
    %v322 = vunpack.c.h.b16 %v161
    %v323 = vunpack.c.l.b16 %v162
    %v324 = vunpack.c.h.b16 %v162
    %v325 = vunpack.c.l.b16 %v163
    %v326 = vunpack.c.h.b16 %v163
    %v327 = vunpack.c.l.b16 %v164
    %v328 = vunpack.c.h.b16 %v164
    %v329 = vunpack.c.l.b16 %v165
    %v330 = vunpack.c.h.b16 %v165
    %v331 = vunpack.c.l.b16 %v166
    %v332 = vunpack.c.h.b16 %v166
    %v333 = vunpack.c.l.b16 %v167
    %v334 = vunpack.c.h.b16 %v167
    %v335 = vunpack.c.l.b16 %v168
    %v336 = vunpack.c.h.b16 %v168
    %v337 = vunpack.c.l.b16 %v169
    %v338 = vunpack.c.h.b16 %v169
    %v339 = vunpack.c.l.b16 %v170
    %v340 = vunpack.c.h.b16 %v170
    %v341 = vunpack.c.l.b16 %v171
    %v342 = vunpack.c.h.b16 %v171
    %v343 = vunpack.c.l.b16 %v172
    %v344 = vunpack.c.h.b16 %v172
    %v345 = vunpack.c.l.b16 %v173
    %v346 = vunpack.c.h.b16 %v173
    %v347 = vunpack.c.l.b16 %v174
    %v348 = vunpack.c.h.b16 %v174
    %v349 = vunpack.c.l.b16 %v175
    %v350 = vunpack.c.h.b16 %v175
    %v351 = vunpack.c.l.b16 %v176
    %v352 = vunpack.c.h.b16 %v176
    %v353 = vunpack.c.l.b16 %v177
    %v354 = vunpack.c.h.b16 %v177
    %v355 = vunpack.c.l.b16 %v178
    %v356 = vunpack.c.h.b16 %v178
    %v357 = vunpack.c.l.b16 %v179
    %v358 = vunpack.c.h.b16 %v179
    %v359 = vunpack.c.l.b16 %v180
    %v360 = vunpack.c.h.b16 %v180
    %v361 = vunpack.c.l.b16 %v181
    %v362 = vunpack.c.h.b16 %v181
    %v363 = vunpack.c.l.b16 %v182
    %v364 = vunpack.c.h.b16 %v182
    %v365 = vunpack.c.l.b16 %v183
    %v366 = vunpack.c.h.b16 %v183
    %v367 = vunpack.c.l.b16 %v184
    %v368 = vunpack.c.h.b16 %v184
    %v369 = vunpack.c.l.b16 %v185
    %v370 = vunpack.c.h.b16 %v185
    %v371 = vunpack.c.l.b16 %v186
    %v372 = vunpack.c.h.b16 %v186
    %v373 = vunpack.c.l.b16 %v187
    %v374 = vunpack.c.h.b16 %v187
    %v375 = vunpack.c.l.b16 %v188
    %v376 = vunpack.c.h.b16 %v188
    %v377 = vunpack.c.l.b16 %v189
    %v378 = vunpack.c.h.b16 %v189
    %v379 = vunpack.c.l.b16 %v190
    %v380 = vunpack.c.h.b16 %v190
    %v381 = vunpack.c.l.b16 %v191
    %v382 = vunpack.c.h.b16 %v191
    %v383 = vunpack.c.l.b16 %v192
    %v384 = vunpack.c.h.b16 %v192
    %v385 = vunpack.c.l.b16 %v193
    %v386 = vunpack.c.h.b16 %v193
    %v387 = vunpack.c.l.b16 %v194
    %v388 = vunpack.c.h.b16 %v194
    %v389 = vunpack.c.l.b16 %v195
    %v390 = vunpack.c.h.b16 %v195
    %v391 = vunpack.c.l.b16 %v196
    %v392 = vunpack.c.h.b16 %v196
    %v393 = vunpack.c.l.b16 %v197
    %v394 = vunpack.c.h.b16 %v197
    %v395 = vunpack.c.l.b16 %v198
    %v396 = vunpack.c.h.b16 %v198
    %v397 = vunpack.c.l.b16 %v199
    %v398 = vunpack.c.h.b16 %v199
    %v399 = vpack.c.b16 %v275, %v271
    %v400 = vpack.c.b16 %v276, %v272
    %v401 = vpack.c.b16 %v277, %v273
    %v402 = vpack.c.b16 %v278, %v274
    %v403 = vpack.c.b16 %v283, %v279
    %v404 = vpack.c.b16 %v284, %v280
    %v405 = vpack.c.b16 %v285, %v281
    %v406 = vpack.c.b16 %v286, %v282
    %v407 = vpack.c.b16 %v291, %v287
    %v408 = vpack.c.b16 %v292, %v288
    %v409 = vpack.c.b16 %v293, %v289
    %v410 = vpack.c.b16 %v294, %v290
    %v411 = vpack.c.b16 %v299, %v295
    %v412 = vpack.c.b16 %v300, %v296
    %v413 = vpack.c.b16 %v301, %v297
    %v414 = vpack.c.b16 %v302, %v298
    %v415 = vpack.c.b16 %v307, %v303
    %v416 = vpack.c.b16 %v308, %v304
    %v417 = vpack.c.b16 %v309, %v305
    %v418 = vpack.c.b16 %v310, %v306
    %v419 = vpack.c.b16 %v315, %v311
    %v420 = vpack.c.b16 %v316, %v312
    %v421 = vpack.c.b16 %v317, %v313
    %v422 = vpack.c.b16 %v318, %v314
    %v423 = vpack.c.b16 %v323, %v319
    %v424 = vpack.c.b16 %v324, %v320
    %v425 = vpack.c.b16 %v325, %v321
    %v426 = vpack.c.b16 %v326, %v322
    %v427 = vpack.c.b16 %v331, %v327
    %v428 = vpack.c.b16 %v332, %v328
    %v429 = vpack.c.b16 %v333, %v329
    %v430 = vpack.c.b16 %v334, %v330
    %v431 = vpack.c.b16 %v339, %v335
    %v432 = vpack.c.b16 %v340, %v336
    %v433 = vpack.c.b16 %v341, %v337
    %v434 = vpack.c.b16 %v342, %v338
    %v435 = vpack.c.b16 %v347, %v343
    %v436 = vpack.c.b16 %v348, %v344
    %v437 = vpack.c.b16 %v349, %v345
    %v438 = vpack.c.b16 %v350, %v346
    %v439 = vpack.c.b16 %v355, %v351
    %v440 = vpack.c.b16 %v356, %v352
    %v441 = vpack.c.b16 %v357, %v353
    %v442 = vpack.c.b16 %v358, %v354
    %v443 = vpack.c.b16 %v363, %v359
    %v444 = vpack.c.b16 %v364, %v360
    %v445 = vpack.c.b16 %v365, %v361
    %v446 = vpack.c.b16 %v366, %v362
    %v447 = vpack.c.b16 %v371, %v367
    %v448 = vpack.c.b16 %v372, %v368
    %v449 = vpack.c.b16 %v373, %v369
    %v450 = vpack.c.b16 %v374, %v370
    %v451 = vpack.c.b16 %v379, %v375
    %v452 = vpack.c.b16 %v380, %v376
    %v453 = vpack.c.b16 %v381, %v377
    %v454 = vpack.c.b16 %v382, %v378
    %v455 = vpack.c.b16 %v387, %v383
    %v456 = vpack.c.b16 %v388, %v384
    %v457 = vpack.c.b16 %v389, %v385
    %v458 = vpack.c.b16 %v390, %v386
    %v459 = vpack.c.b16 %v395, %v391
    %v460 = vpack.c.b16 %v396, %v392
    %v461 = vpack.c.b16 %v397, %v393
    %v462 = vpack.c.b16 %v398, %v394
    %527 = vmatprep.subr.bf16.mxu0 %v400
    %528 = vmatpush1.bf16.msra.mxu0 %v399
    %529 = vmatprep.subr.bf16.mxu0 %v404
    %530 = vmatpush1.bf16.msra.mxu0 %v403
    %531 = vmatprep.subr.bf16.mxu0 %v408
    %532 = vmatpush1.bf16.msra.mxu0 %v407
    %533 = vmatprep.subr.bf16.mxu0 %v412
    %534 = vmatpush1.bf16.msra.mxu0 %v411
    %535 = vmatprep.subr.bf16.mxu0 %v416
    %536 = vmatpush1.bf16.msra.mxu0 %v415
    %537 = vmatprep.subr.bf16.mxu0 %v420
    %538 = vmatpush1.bf16.msra.mxu0 %v419
    %539 = vmatprep.subr.bf16.mxu0 %v424
    %540 = vmatpush1.bf16.msra.mxu0 %v423
    %541 = vmatprep.subr.bf16.mxu0 %v428
    %542 = vmatpush1.bf16.msra.mxu0 %v427
    %543 = vmatprep.subr.bf16.mxu0 %v432
    %544 = vmatpush1.bf16.msra.mxu0 %v431
    %545 = vmatprep.subr.bf16.mxu0 %v436
    %546 = vmatpush1.bf16.msra.mxu0 %v435
    %547 = vmatprep.subr.bf16.mxu0 %v440
    %548 = vmatpush1.bf16.msra.mxu0 %v439
    %549 = vmatprep.subr.bf16.mxu0 %v444
    %550 = vmatpush1.bf16.msra.mxu0 %v443
    %551 = vmatprep.subr.bf16.mxu0 %v448
    %552 = vmatpush1.bf16.msra.mxu0 %v447
    %553 = vmatprep.subr.bf16.mxu0 %v452
    %554 = vmatpush1.bf16.msra.mxu0 %v451
    %555 = vmatprep.subr.bf16.mxu0 %v456
    %556 = vmatpush1.bf16.msra.mxu0 %v455
    %557 = vmatprep.subr.bf16.mxu0 %v460
    %558 = vmatpush1.bf16.msra.mxu0 %v459
    %559 = vmatprep.mubr.bf16.mxu0 %v204
    %560 = vmatmul.mubr.bf16.gmra.mrb[0].mxu0 %v203
    %v561 = vpop.f32.mrb[0].mxu0
    %v562 = vadd.f32 0.0, %v561
    %v563 = vpop.f32.mrb[0].mxu0
    %v564 = vadd.f32 0.0, %v563
    %v565 = vpop.f32.mrb[0].mxu0
    %v566 = vpop.f32.mrb[0].mxu0
    %567 = vdwg.mxu0
    %568 = vmatprep.subr.bf16.mxu0 %v402
    %569 = vmatpush1.bf16.msra.mxu0 %v401
    %570 = vmatprep.subr.bf16.mxu0 %v406
    %571 = vmatpush1.bf16.msra.mxu0 %v405
    %572 = vmatprep.subr.bf16.mxu0 %v410
    %573 = vmatpush1.bf16.msra.mxu0 %v409
    %574 = vmatprep.subr.bf16.mxu0 %v414
    %575 = vmatpush1.bf16.msra.mxu0 %v413
    %576 = vmatprep.subr.bf16.mxu0 %v418
    %577 = vmatpush1.bf16.msra.mxu0 %v417
    %578 = vmatprep.subr.bf16.mxu0 %v422
    %579 = vmatpush1.bf16.msra.mxu0 %v421
    %580 = vmatprep.subr.bf16.mxu0 %v426
    %581 = vmatpush1.bf16.msra.mxu0 %v425
    %582 = vmatprep.subr.bf16.mxu0 %v430
    %583 = vmatpush1.bf16.msra.mxu0 %v429
    %584 = vmatprep.subr.bf16.mxu0 %v434
    %585 = vmatpush1.bf16.msra.mxu0 %v433
    %586 = vmatprep.subr.bf16.mxu0 %v438
    %587 = vmatpush1.bf16.msra.mxu0 %v437
    %588 = vmatprep.subr.bf16.mxu0 %v442
    %589 = vmatpush1.bf16.msra.mxu0 %v441
    %590 = vmatprep.subr.bf16.mxu0 %v446
    %591 = vmatpush1.bf16.msra.mxu0 %v445
    %592 = vmatprep.subr.bf16.mxu0 %v450
    %593 = vmatpush1.bf16.msra.mxu0 %v449
    %594 = vmatprep.subr.bf16.mxu0 %v454
    %595 = vmatpush1.bf16.msra.mxu0 %v453
    %596 = vmatprep.subr.bf16.mxu0 %v458
    %597 = vmatpush1.bf16.msra.mxu0 %v457
    %598 = vmatprep.subr.bf16.mxu0 %v462
    %599 = vmatpush1.bf16.msra.mxu0 %v461
    %600 = vmatprep.mubr.bf16.mxu0 %v204
    %601 = vmatmul.mubr.bf16.gmra.mrb[0].mxu0 %v203
    %v602 = vpop.f32.mrb[0].mxu0
    %v603 = vadd.f32 0.0, %v602
    %v604 = vpop.f32.mrb[0].mxu0
    %v605 = vadd.f32 0.0, %v604
    %v606 = vpop.f32.mrb[0].mxu0
    %v607 = vpop.f32.mrb[0].mxu0
    %608 = vdwg.mxu0
    %s609 = scalar_lea.vmem [#allocation5], 512
    %v610 = vld [vmem:[%s609] sm:$0xff]
    %v611 = vld [vmem:[%s609 + $0x8] sm:$0xff]
    %v612 = vld [vmem:[%s609 + $0x10] sm:$0xff]
    %v613 = vld [vmem:[%s609 + $0x18] sm:$0xff]
    %v614 = vld [vmem:[%s609 + $0x20] sm:$0xff]
    %v615 = vld [vmem:[%s609 + $0x28] sm:$0xff]
    %v616 = vld [vmem:[%s609 + $0x30] sm:$0xff]
    %v617 = vld [vmem:[%s609 + $0x38] sm:$0xff]
    %v618 = vld [vmem:[%s609 + $0x40] sm:$0xff]
    %v619 = vld [vmem:[%s609 + $0x48] sm:$0xff]
    %v620 = vld [vmem:[%s609 + $0x50] sm:$0xff]
    %v621 = vld [vmem:[%s609 + $0x58] sm:$0xff]
    %v622 = vld [vmem:[%s609 + $0x60] sm:$0xff]
    %v623 = vld [vmem:[%s609 + $0x68] sm:$0xff]
    %v624 = vld [vmem:[%s609 + $0x70] sm:$0xff]
    %v625 = vld [vmem:[%s609 + $0x78] sm:$0xff]
    %v626 = vld [vmem:[%s609 + $0x80] sm:$0xff]
    %v627 = vld [vmem:[%s609 + $0x88] sm:$0xff]
    %v628 = vld [vmem:[%s609 + $0x90] sm:$0xff]
    %v629 = vld [vmem:[%s609 + $0x98] sm:$0xff]
    %v630 = vld [vmem:[%s609 + $0xa0] sm:$0xff]
    %v631 = vld [vmem:[%s609 + $0xa8] sm:$0xff]
    %v632 = vld [vmem:[%s609 + $0xb0] sm:$0xff]
    %v633 = vld [vmem:[%s609 + $0xb8] sm:$0xff]
    %v634 = vld [vmem:[%s609 + $0xc0] sm:$0xff]
    %v635 = vld [vmem:[%s609 + $0xc8] sm:$0xff]
    %v636 = vld [vmem:[%s609 + $0xd0] sm:$0xff]
    %v637 = vld [vmem:[%s609 + $0xd8] sm:$0xff]
    %v638 = vld [vmem:[%s609 + $0xe0] sm:$0xff]
    %v639 = vld [vmem:[%s609 + $0xe8] sm:$0xff]
    %v640 = vld [vmem:[%s609 + $0xf0] sm:$0xff]
    %v641 = vld [vmem:[%s609 + $0xf8] sm:$0xff]
    %v642 = vld [vmem:[%s609 + $0x100] sm:$0xff]
    %v643 = vld [vmem:[%s609 + $0x108] sm:$0xff]
    %v644 = vld [vmem:[%s609 + $0x110] sm:$0xff]
    %v645 = vld [vmem:[%s609 + $0x118] sm:$0xff]
    %v646 = vld [vmem:[%s609 + $0x120] sm:$0xff]
    %v647 = vld [vmem:[%s609 + $0x128] sm:$0xff]
    %v648 = vld [vmem:[%s609 + $0x130] sm:$0xff]
    %v649 = vld [vmem:[%s609 + $0x138] sm:$0xff]
    %v650 = vld [vmem:[%s609 + $0x140] sm:$0xff]
    %v651 = vld [vmem:[%s609 + $0x148] sm:$0xff]
    %v652 = vld [vmem:[%s609 + $0x150] sm:$0xff]
    %v653 = vld [vmem:[%s609 + $0x158] sm:$0xff]
    %v654 = vld [vmem:[%s609 + $0x160] sm:$0xff]
    %v655 = vld [vmem:[%s609 + $0x168] sm:$0xff]
    %v656 = vld [vmem:[%s609 + $0x170] sm:$0xff]
    %v657 = vld [vmem:[%s609 + $0x178] sm:$0xff]
    %v658 = vld [vmem:[%s609 + $0x180] sm:$0xff]
    %v659 = vld [vmem:[%s609 + $0x188] sm:$0xff]
    %v660 = vld [vmem:[%s609 + $0x190] sm:$0xff]
    %v661 = vld [vmem:[%s609 + $0x198] sm:$0xff]
    %v662 = vld [vmem:[%s609 + $0x1a0] sm:$0xff]
    %v663 = vld [vmem:[%s609 + $0x1a8] sm:$0xff]
    %v664 = vld [vmem:[%s609 + $0x1b0] sm:$0xff]
    %v665 = vld [vmem:[%s609 + $0x1b8] sm:$0xff]
    %v666 = vld [vmem:[%s609 + $0x1c0] sm:$0xff]
    %v667 = vld [vmem:[%s609 + $0x1c8] sm:$0xff]
    %v668 = vld [vmem:[%s609 + $0x1d0] sm:$0xff]
    %v669 = vld [vmem:[%s609 + $0x1d8] sm:$0xff]
    %v670 = vld [vmem:[%s609 + $0x1e0] sm:$0xff]
    %v671 = vld [vmem:[%s609 + $0x1e8] sm:$0xff]
    %v672 = vld [vmem:[%s609 + $0x1f0] sm:$0xff]
    %v673 = vld [vmem:[%s609 + $0x1f8] sm:$0xff]
    %v738 = vunpack.c.l.b16 %v610
    %v739 = vunpack.c.h.b16 %v610
    %v740 = vunpack.c.l.b16 %v611
    %v741 = vunpack.c.h.b16 %v611
    %v742 = vunpack.c.l.b16 %v612
    %v743 = vunpack.c.h.b16 %v612
    %v744 = vunpack.c.l.b16 %v613
    %v745 = vunpack.c.h.b16 %v613
    %v746 = vunpack.c.l.b16 %v614
    %v747 = vunpack.c.h.b16 %v614
    %v748 = vunpack.c.l.b16 %v615
    %v749 = vunpack.c.h.b16 %v615
    %v750 = vunpack.c.l.b16 %v616
    %v751 = vunpack.c.h.b16 %v616
    %v752 = vunpack.c.l.b16 %v617
    %v753 = vunpack.c.h.b16 %v617
    %v754 = vunpack.c.l.b16 %v618
    %v755 = vunpack.c.h.b16 %v618
    %v756 = vunpack.c.l.b16 %v619
    %v757 = vunpack.c.h.b16 %v619
    %v758 = vunpack.c.l.b16 %v620
    %v759 = vunpack.c.h.b16 %v620
    %v760 = vunpack.c.l.b16 %v621
    %v761 = vunpack.c.h.b16 %v621
    %v762 = vunpack.c.l.b16 %v622
    %v763 = vunpack.c.h.b16 %v622
    %v764 = vunpack.c.l.b16 %v623
    %v765 = vunpack.c.h.b16 %v623
    %v766 = vunpack.c.l.b16 %v624
    %v767 = vunpack.c.h.b16 %v624
    %v768 = vunpack.c.l.b16 %v625
    %v769 = vunpack.c.h.b16 %v625
    %v770 = vunpack.c.l.b16 %v626
    %v771 = vunpack.c.h.b16 %v626
    %v772 = vunpack.c.l.b16 %v627
    %v773 = vunpack.c.h.b16 %v627
    %v774 = vunpack.c.l.b16 %v628
    %v775 = vunpack.c.h.b16 %v628
    %v776 = vunpack.c.l.b16 %v629
    %v777 = vunpack.c.h.b16 %v629
    %v778 = vunpack.c.l.b16 %v630
    %v779 = vunpack.c.h.b16 %v630
    %v780 = vunpack.c.l.b16 %v631
    %v781 = vunpack.c.h.b16 %v631
    %v782 = vunpack.c.l.b16 %v632
    %v783 = vunpack.c.h.b16 %v632
    %v784 = vunpack.c.l.b16 %v633
    %v785 = vunpack.c.h.b16 %v633
    %v786 = vunpack.c.l.b16 %v634
    %v787 = vunpack.c.h.b16 %v634
    %v788 = vunpack.c.l.b16 %v635
    %v789 = vunpack.c.h.b16 %v635
    %v790 = vunpack.c.l.b16 %v636
    %v791 = vunpack.c.h.b16 %v636
    %v792 = vunpack.c.l.b16 %v637
    %v793 = vunpack.c.h.b16 %v637
    %v794 = vunpack.c.l.b16 %v638
    %v795 = vunpack.c.h.b16 %v638
    %v796 = vunpack.c.l.b16 %v639
    %v797 = vunpack.c.h.b16 %v639
    %v798 = vunpack.c.l.b16 %v640
    %v799 = vunpack.c.h.b16 %v640
    %v800 = vunpack.c.l.b16 %v641
    %v801 = vunpack.c.h.b16 %v641
    %v802 = vunpack.c.l.b16 %v642
    %v803 = vunpack.c.h.b16 %v642
    %v804 = vunpack.c.l.b16 %v643
    %v805 = vunpack.c.h.b16 %v643
    %v806 = vunpack.c.l.b16 %v644
    %v807 = vunpack.c.h.b16 %v644
    %v808 = vunpack.c.l.b16 %v645
    %v809 = vunpack.c.h.b16 %v645
    %v810 = vunpack.c.l.b16 %v646
    %v811 = vunpack.c.h.b16 %v646
    %v812 = vunpack.c.l.b16 %v647
    %v813 = vunpack.c.h.b16 %v647
    %v814 = vunpack.c.l.b16 %v648
    %v815 = vunpack.c.h.b16 %v648
    %v816 = vunpack.c.l.b16 %v649
    %v817 = vunpack.c.h.b16 %v649
    %v818 = vunpack.c.l.b16 %v650
    %v819 = vunpack.c.h.b16 %v650
    %v820 = vunpack.c.l.b16 %v651
    %v821 = vunpack.c.h.b16 %v651
    %v822 = vunpack.c.l.b16 %v652
    %v823 = vunpack.c.h.b16 %v652
    %v824 = vunpack.c.l.b16 %v653
    %v825 = vunpack.c.h.b16 %v653
    %v826 = vunpack.c.l.b16 %v654
    %v827 = vunpack.c.h.b16 %v654
    %v828 = vunpack.c.l.b16 %v655
    %v829 = vunpack.c.h.b16 %v655
    %v830 = vunpack.c.l.b16 %v656
    %v831 = vunpack.c.h.b16 %v656
    %v832 = vunpack.c.l.b16 %v657
    %v833 = vunpack.c.h.b16 %v657
    %v834 = vunpack.c.l.b16 %v658
    %v835 = vunpack.c.h.b16 %v658
    %v836 = vunpack.c.l.b16 %v659
    %v837 = vunpack.c.h.b16 %v659
    %v838 = vunpack.c.l.b16 %v660
    %v839 = vunpack.c.h.b16 %v660
    %v840 = vunpack.c.l.b16 %v661
    %v841 = vunpack.c.h.b16 %v661
    %v842 = vunpack.c.l.b16 %v662
    %v843 = vunpack.c.h.b16 %v662
    %v844 = vunpack.c.l.b16 %v663
    %v845 = vunpack.c.h.b16 %v663
    %v846 = vunpack.c.l.b16 %v664
    %v847 = vunpack.c.h.b16 %v664
    %v848 = vunpack.c.l.b16 %v665
    %v849 = vunpack.c.h.b16 %v665
    %v850 = vunpack.c.l.b16 %v666
    %v851 = vunpack.c.h.b16 %v666
    %v852 = vunpack.c.l.b16 %v667
    %v853 = vunpack.c.h.b16 %v667
    %v854 = vunpack.c.l.b16 %v668
    %v855 = vunpack.c.h.b16 %v668
    %v856 = vunpack.c.l.b16 %v669
    %v857 = vunpack.c.h.b16 %v669
    %v858 = vunpack.c.l.b16 %v670
    %v859 = vunpack.c.h.b16 %v670
    %v860 = vunpack.c.l.b16 %v671
    %v861 = vunpack.c.h.b16 %v671
    %v862 = vunpack.c.l.b16 %v672
    %v863 = vunpack.c.h.b16 %v672
    %v864 = vunpack.c.l.b16 %v673
    %v865 = vunpack.c.h.b16 %v673
    %v866 = vpack.c.b16 %v742, %v738
    %v867 = vpack.c.b16 %v743, %v739
    %v868 = vpack.c.b16 %v744, %v740
    %v869 = vpack.c.b16 %v745, %v741
    %v870 = vpack.c.b16 %v750, %v746
    %v871 = vpack.c.b16 %v751, %v747
    %v872 = vpack.c.b16 %v752, %v748
    %v873 = vpack.c.b16 %v753, %v749
    %v874 = vpack.c.b16 %v758, %v754
    %v875 = vpack.c.b16 %v759, %v755
    %v876 = vpack.c.b16 %v760, %v756
    %v877 = vpack.c.b16 %v761, %v757
    %v878 = vpack.c.b16 %v766, %v762
    %v879 = vpack.c.b16 %v767, %v763
    %v880 = vpack.c.b16 %v768, %v764
    %v881 = vpack.c.b16 %v769, %v765
    %v882 = vpack.c.b16 %v774, %v770
    %v883 = vpack.c.b16 %v775, %v771
    %v884 = vpack.c.b16 %v776, %v772
    %v885 = vpack.c.b16 %v777, %v773
    %v886 = vpack.c.b16 %v782, %v778
    %v887 = vpack.c.b16 %v783, %v779
    %v888 = vpack.c.b16 %v784, %v780
    %v889 = vpack.c.b16 %v785, %v781
    %v890 = vpack.c.b16 %v790, %v786
    %v891 = vpack.c.b16 %v791, %v787
    %v892 = vpack.c.b16 %v792, %v788
    %v893 = vpack.c.b16 %v793, %v789
    %v894 = vpack.c.b16 %v798, %v794
    %v895 = vpack.c.b16 %v799, %v795
    %v896 = vpack.c.b16 %v800, %v796
    %v897 = vpack.c.b16 %v801, %v797
    %v898 = vpack.c.b16 %v806, %v802
    %v899 = vpack.c.b16 %v807, %v803
    %v900 = vpack.c.b16 %v808, %v804
    %v901 = vpack.c.b16 %v809, %v805
    %v902 = vpack.c.b16 %v814, %v810
    %v903 = vpack.c.b16 %v815, %v811
    %v904 = vpack.c.b16 %v816, %v812
    %v905 = vpack.c.b16 %v817, %v813
    %v906 = vpack.c.b16 %v822, %v818
    %v907 = vpack.c.b16 %v823, %v819
    %v908 = vpack.c.b16 %v824, %v820
    %v909 = vpack.c.b16 %v825, %v821
    %v910 = vpack.c.b16 %v830, %v826
    %v911 = vpack.c.b16 %v831, %v827
    %v912 = vpack.c.b16 %v832, %v828
    %v913 = vpack.c.b16 %v833, %v829
    %v914 = vpack.c.b16 %v838, %v834
    %v915 = vpack.c.b16 %v839, %v835
    %v916 = vpack.c.b16 %v840, %v836
    %v917 = vpack.c.b16 %v841, %v837
    %v918 = vpack.c.b16 %v846, %v842
    %v919 = vpack.c.b16 %v847, %v843
    %v920 = vpack.c.b16 %v848, %v844
    %v921 = vpack.c.b16 %v849, %v845
    %v922 = vpack.c.b16 %v854, %v850
    %v923 = vpack.c.b16 %v855, %v851
    %v924 = vpack.c.b16 %v856, %v852
    %v925 = vpack.c.b16 %v857, %v853
    %v926 = vpack.c.b16 %v862, %v858
    %v927 = vpack.c.b16 %v863, %v859
    %v928 = vpack.c.b16 %v864, %v860
    %v929 = vpack.c.b16 %v865, %v861
    %994 = vmatprep.subr.bf16.mxu0 %v867
    %995 = vmatpush1.bf16.msra.mxu0 %v866
    %996 = vmatprep.subr.bf16.mxu0 %v871
    %997 = vmatpush1.bf16.msra.mxu0 %v870
    %998 = vmatprep.subr.bf16.mxu0 %v875
    %999 = vmatpush1.bf16.msra.mxu0 %v874
    %1000 = vmatprep.subr.bf16.mxu0 %v879
    %1001 = vmatpush1.bf16.msra.mxu0 %v878
    %1002 = vmatprep.subr.bf16.mxu0 %v883
    %1003 = vmatpush1.bf16.msra.mxu0 %v882
    %1004 = vmatprep.subr.bf16.mxu0 %v887
    %1005 = vmatpush1.bf16.msra.mxu0 %v886
    %1006 = vmatprep.subr.bf16.mxu0 %v891
    %1007 = vmatpush1.bf16.msra.mxu0 %v890
    %1008 = vmatprep.subr.bf16.mxu0 %v895
    %1009 = vmatpush1.bf16.msra.mxu0 %v894
    %1010 = vmatprep.subr.bf16.mxu0 %v899
    %1011 = vmatpush1.bf16.msra.mxu0 %v898
    %1012 = vmatprep.subr.bf16.mxu0 %v903
    %1013 = vmatpush1.bf16.msra.mxu0 %v902
    %1014 = vmatprep.subr.bf16.mxu0 %v907
    %1015 = vmatpush1.bf16.msra.mxu0 %v906
    %1016 = vmatprep.subr.bf16.mxu0 %v911
    %1017 = vmatpush1.bf16.msra.mxu0 %v910
    %1018 = vmatprep.subr.bf16.mxu0 %v915
    %1019 = vmatpush1.bf16.msra.mxu0 %v914
    %1020 = vmatprep.subr.bf16.mxu0 %v919
    %1021 = vmatpush1.bf16.msra.mxu0 %v918
    %1022 = vmatprep.subr.bf16.mxu0 %v923
    %1023 = vmatpush1.bf16.msra.mxu0 %v922
    %1024 = vmatprep.subr.bf16.mxu0 %v927
    %1025 = vmatpush1.bf16.msra.mxu0 %v926
    %1026 = vmatprep.mubr.bf16.mxu0 %v204
    %1027 = vmatmul.mubr.bf16.gmra.mrb[0].mxu0 %v203
    %v1028 = vpop.f32.mrb[0].mxu0
    %v1029 = vadd.f32 0.0, %v1028
    %v1030 = vpop.f32.mrb[0].mxu0
    %v1031 = vadd.f32 0.0, %v1030
    %v1032 = vpop.f32.mrb[0].mxu0
    %v1033 = vpop.f32.mrb[0].mxu0
    %1034 = vdwg.mxu0
    %1035 = vmatprep.subr.bf16.mxu0 %v869
    %1036 = vmatpush1.bf16.msra.mxu0 %v868
    %1037 = vmatprep.subr.bf16.mxu0 %v873
    %1038 = vmatpush1.bf16.msra.mxu0 %v872
    %1039 = vmatprep.subr.bf16.mxu0 %v877
    %1040 = vmatpush1.bf16.msra.mxu0 %v876
    %1041 = vmatprep.subr.bf16.mxu0 %v881
    %1042 = vmatpush1.bf16.msra.mxu0 %v880
    %1043 = vmatprep.subr.bf16.mxu0 %v885
    %1044 = vmatpush1.bf16.msra.mxu0 %v884
    %1045 = vmatprep.subr.bf16.mxu0 %v889
    %1046 = vmatpush1.bf16.msra.mxu0 %v888
    %1047 = vmatprep.subr.bf16.mxu0 %v893
    %1048 = vmatpush1.bf16.msra.mxu0 %v892
    %1049 = vmatprep.subr.bf16.mxu0 %v897
    %1050 = vmatpush1.bf16.msra.mxu0 %v896
    %1051 = vmatprep.subr.bf16.mxu0 %v901
    %1052 = vmatpush1.bf16.msra.mxu0 %v900
    %1053 = vmatprep.subr.bf16.mxu0 %v905
    %1054 = vmatpush1.bf16.msra.mxu0 %v904
    %1055 = vmatprep.subr.bf16.mxu0 %v909
    %1056 = vmatpush1.bf16.msra.mxu0 %v908
    %1057 = vmatprep.subr.bf16.mxu0 %v913
    %1058 = vmatpush1.bf16.msra.mxu0 %v912
    %1059 = vmatprep.subr.bf16.mxu0 %v917
    %1060 = vmatpush1.bf16.msra.mxu0 %v916
    %1061 = vmatprep.subr.bf16.mxu0 %v921
    %1062 = vmatpush1.bf16.msra.mxu0 %v920
    %1063 = vmatprep.subr.bf16.mxu0 %v925
    %1064 = vmatpush1.bf16.msra.mxu0 %v924
    %1065 = vmatprep.subr.bf16.mxu0 %v929
    %1066 = vmatpush1.bf16.msra.mxu0 %v928
    %1067 = vmatprep.mubr.bf16.mxu0 %v204
    %1068 = vmatmul.mubr.bf16.gmra.mrb[0].mxu0 %v203
    %v1069 = vpop.f32.mrb[0].mxu0
    %v1070 = vadd.f32 0.0, %v1069
    %v1071 = vpop.f32.mrb[0].mxu0
    %v1072 = vadd.f32 0.0, %v1071
    %v1073 = vpop.f32.mrb[0].mxu0
    %v1074 = vpop.f32.mrb[0].mxu0
    %1075 = vdwg.mxu0
    %v1076 = vmax.f32 %v562, %v1029
    %v1077 = vmax.f32 %v564, %v1031
    %v1078 = vmax.f32 %v603, %v1070
    %v1079 = vmax.f32 %v605, %v1072
    %s1080 = scalar_lea.vmem [#allocation5], 1024
    %v1081 = vld [vmem:[%s1080] sm:$0xff]
    %v1082 = vld [vmem:[%s1080 + $0x8] sm:$0xff]
    %v1083 = vld [vmem:[%s1080 + $0x10] sm:$0xff]
    %v1084 = vld [vmem:[%s1080 + $0x18] sm:$0xff]
    %v1085 = vld [vmem:[%s1080 + $0x20] sm:$0xff]
    %v1086 = vld [vmem:[%s1080 + $0x28] sm:$0xff]
    %v1087 = vld [vmem:[%s1080 + $0x30] sm:$0xff]
    %v1088 = vld [vmem:[%s1080 + $0x38] sm:$0xff]
    %v1089 = vld [vmem:[%s1080 + $0x40] sm:$0xff]
    %v1090 = vld [vmem:[%s1080 + $0x48] sm:$0xff]
    %v1091 = vld [vmem:[%s1080 + $0x50] sm:$0xff]
    %v1092 = vld [vmem:[%s1080 + $0x58] sm:$0xff]
    %v1093 = vld [vmem:[%s1080 + $0x60] sm:$0xff]
    %v1094 = vld [vmem:[%s1080 + $0x68] sm:$0xff]
    %v1095 = vld [vmem:[%s1080 + $0x70] sm:$0xff]
    %v1096 = vld [vmem:[%s1080 + $0x78] sm:$0xff]
    %v1097 = vld [vmem:[%s1080 + $0x80] sm:$0xff]
    %v1098 = vld [vmem:[%s1080 + $0x88] sm:$0xff]
    %v1099 = vld [vmem:[%s1080 + $0x90] sm:$0xff]
    %v1100 = vld [vmem:[%s1080 + $0x98] sm:$0xff]
    %v1101 = vld [vmem:[%s1080 + $0xa0] sm:$0xff]
    %v1102 = vld [vmem:[%s1080 + $0xa8] sm:$0xff]
    %v1103 = vld [vmem:[%s1080 + $0xb0] sm:$0xff]
    %v1104 = vld [vmem:[%s1080 + $0xb8] sm:$0xff]
    %v1105 = vld [vmem:[%s1080 + $0xc0] sm:$0xff]
    %v1106 = vld [vmem:[%s1080 + $0xc8] sm:$0xff]
    %v1107 = vld [vmem:[%s1080 + $0xd0] sm:$0xff]
    %v1108 = vld [vmem:[%s1080 + $0xd8] sm:$0xff]
    %v1109 = vld [vmem:[%s1080 + $0xe0] sm:$0xff]
    %v1110 = vld [vmem:[%s1080 + $0xe8] sm:$0xff]
    %v1111 = vld [vmem:[%s1080 + $0xf0] sm:$0xff]
    %v1112 = vld [vmem:[%s1080 + $0xf8] sm:$0xff]
    %v1113 = vld [vmem:[%s1080 + $0x100] sm:$0xff]
    %v1114 = vld [vmem:[%s1080 + $0x108] sm:$0xff]
    %v1115 = vld [vmem:[%s1080 + $0x110] sm:$0xff]
    %v1116 = vld [vmem:[%s1080 + $0x118] sm:$0xff]
    %v1117 = vld [vmem:[%s1080 + $0x120] sm:$0xff]
    %v1118 = vld [vmem:[%s1080 + $0x128] sm:$0xff]
    %v1119 = vld [vmem:[%s1080 + $0x130] sm:$0xff]
    %v1120 = vld [vmem:[%s1080 + $0x138] sm:$0xff]
    %v1121 = vld [vmem:[%s1080 + $0x140] sm:$0xff]
    %v1122 = vld [vmem:[%s1080 + $0x148] sm:$0xff]
    %v1123 = vld [vmem:[%s1080 + $0x150] sm:$0xff]
    %v1124 = vld [vmem:[%s1080 + $0x158] sm:$0xff]
    %v1125 = vld [vmem:[%s1080 + $0x160] sm:$0xff]
    %v1126 = vld [vmem:[%s1080 + $0x168] sm:$0xff]
    %v1127 = vld [vmem:[%s1080 + $0x170] sm:$0xff]
    %v1128 = vld [vmem:[%s1080 + $0x178] sm:$0xff]
    %v1129 = vld [vmem:[%s1080 + $0x180] sm:$0xff]
    %v1130 = vld [vmem:[%s1080 + $0x188] sm:$0xff]
    %v1131 = vld [vmem:[%s1080 + $0x190] sm:$0xff]
    %v1132 = vld [vmem:[%s1080 + $0x198] sm:$0xff]
    %v1133 = vld [vmem:[%s1080 + $0x1a0] sm:$0xff]
    %v1134 = vld [vmem:[%s1080 + $0x1a8] sm:$0xff]
    %v1135 = vld [vmem:[%s1080 + $0x1b0] sm:$0xff]
    %v1136 = vld [vmem:[%s1080 + $0x1b8] sm:$0xff]
    %v1137 = vld [vmem:[%s1080 + $0x1c0] sm:$0xff]
    %v1138 = vld [vmem:[%s1080 + $0x1c8] sm:$0xff]
    %v1139 = vld [vmem:[%s1080 + $0x1d0] sm:$0xff]
    %v1140 = vld [vmem:[%s1080 + $0x1d8] sm:$0xff]
    %v1141 = vld [vmem:[%s1080 + $0x1e0] sm:$0xff]
    %v1142 = vld [vmem:[%s1080 + $0x1e8] sm:$0xff]
    %v1143 = vld [vmem:[%s1080 + $0x1f0] sm:$0xff]
    %v1144 = vld [vmem:[%s1080 + $0x1f8] sm:$0xff]
    %v1209 = vunpack.c.l.b16 %v1081
    %v1210 = vunpack.c.h.b16 %v1081
    %v1211 = vunpack.c.l.b16 %v1082
    %v1212 = vunpack.c.h.b16 %v1082
    %v1213 = vunpack.c.l.b16 %v1083
    %v1214 = vunpack.c.h.b16 %v1083
    %v1215 = vunpack.c.l.b16 %v1084
    %v1216 = vunpack.c.h.b16 %v1084
    %v1217 = vunpack.c.l.b16 %v1085
    %v1218 = vunpack.c.h.b16 %v1085
    %v1219 = vunpack.c.l.b16 %v1086
    %v1220 = vunpack.c.h.b16 %v1086
    %v1221 = vunpack.c.l.b16 %v1087
    %v1222 = vunpack.c.h.b16 %v1087
    %v1223 = vunpack.c.l.b16 %v1088
    %v1224 = vunpack.c.h.b16 %v1088
    %v1225 = vunpack.c.l.b16 %v1089
    %v1226 = vunpack.c.h.b16 %v1089
    %v1227 = vunpack.c.l.b16 %v1090
    %v1228 = vunpack.c.h.b16 %v1090
    %v1229 = vunpack.c.l.b16 %v1091
    %v1230 = vunpack.c.h.b16 %v1091
    %v1231 = vunpack.c.l.b16 %v1092
    %v1232 = vunpack.c.h.b16 %v1092
    %v1233 = vunpack.c.l.b16 %v1093
    %v1234 = vunpack.c.h.b16 %v1093
    %v1235 = vunpack.c.l.b16 %v1094
    %v1236 = vunpack.c.h.b16 %v1094
    %v1237 = vunpack.c.l.b16 %v1095
    %v1238 = vunpack.c.h.b16 %v1095
    %v1239 = vunpack.c.l.b16 %v1096
    %v1240 = vunpack.c.h.b16 %v1096
    %v1241 = vunpack.c.l.b16 %v1097
    %v1242 = vunpack.c.h.b16 %v1097
    %v1243 = vunpack.c.l.b16 %v1098
    %v1244 = vunpack.c.h.b16 %v1098
    %v1245 = vunpack.c.l.b16 %v1099
    %v1246 = vunpack.c.h.b16 %v1099
    %v1247 = vunpack.c.l.b16 %v1100
    %v1248 = vunpack.c.h.b16 %v1100
    %v1249 = vunpack.c.l.b16 %v1101
    %v1250 = vunpack.c.h.b16 %v1101
    %v1251 = vunpack.c.l.b16 %v1102
    %v1252 = vunpack.c.h.b16 %v1102
    %v1253 = vunpack.c.l.b16 %v1103
    %v1254 = vunpack.c.h.b16 %v1103
    %v1255 = vunpack.c.l.b16 %v1104
    %v1256 = vunpack.c.h.b16 %v1104
    %v1257 = vunpack.c.l.b16 %v1105
    %v1258 = vunpack.c.h.b16 %v1105
    %v1259 = vunpack.c.l.b16 %v1106
    %v1260 = vunpack.c.h.b16 %v1106
    %v1261 = vunpack.c.l.b16 %v1107
    %v1262 = vunpack.c.h.b16 %v1107
    %v1263 = vunpack.c.l.b16 %v1108
    %v1264 = vunpack.c.h.b16 %v1108
    %v1265 = vunpack.c.l.b16 %v1109
    %v1266 = vunpack.c.h.b16 %v1109
    %v1267 = vunpack.c.l.b16 %v1110
    %v1268 = vunpack.c.h.b16 %v1110
    %v1269 = vunpack.c.l.b16 %v1111
    %v1270 = vunpack.c.h.b16 %v1111
    %v1271 = vunpack.c.l.b16 %v1112
    %v1272 = vunpack.c.h.b16 %v1112
    %v1273 = vunpack.c.l.b16 %v1113
    %v1274 = vunpack.c.h.b16 %v1113
    %v1275 = vunpack.c.l.b16 %v1114
    %v1276 = vunpack.c.h.b16 %v1114
    %v1277 = vunpack.c.l.b16 %v1115
    %v1278 = vunpack.c.h.b16 %v1115
    %v1279 = vunpack.c.l.b16 %v1116
    %v1280 = vunpack.c.h.b16 %v1116
    %v1281 = vunpack.c.l.b16 %v1117
    %v1282 = vunpack.c.h.b16 %v1117
    %v1283 = vunpack.c.l.b16 %v1118
    %v1284 = vunpack.c.h.b16 %v1118
    %v1285 = vunpack.c.l.b16 %v1119
    %v1286 = vunpack.c.h.b16 %v1119
    %v1287 = vunpack.c.l.b16 %v1120
    %v1288 = vunpack.c.h.b16 %v1120
    %v1289 = vunpack.c.l.b16 %v1121
    %v1290 = vunpack.c.h.b16 %v1121
    %v1291 = vunpack.c.l.b16 %v1122
    %v1292 = vunpack.c.h.b16 %v1122
    %v1293 = vunpack.c.l.b16 %v1123
    %v1294 = vunpack.c.h.b16 %v1123
    %v1295 = vunpack.c.l.b16 %v1124
    %v1296 = vunpack.c.h.b16 %v1124
    %v1297 = vunpack.c.l.b16 %v1125
    %v1298 = vunpack.c.h.b16 %v1125
    %v1299 = vunpack.c.l.b16 %v1126
    %v1300 = vunpack.c.h.b16 %v1126
    %v1301 = vunpack.c.l.b16 %v1127
    %v1302 = vunpack.c.h.b16 %v1127
    %v1303 = vunpack.c.l.b16 %v1128
    %v1304 = vunpack.c.h.b16 %v1128
    %v1305 = vunpack.c.l.b16 %v1129
    %v1306 = vunpack.c.h.b16 %v1129
    %v1307 = vunpack.c.l.b16 %v1130
    %v1308 = vunpack.c.h.b16 %v1130
    %v1309 = vunpack.c.l.b16 %v1131
    %v1310 = vunpack.c.h.b16 %v1131
    %v1311 = vunpack.c.l.b16 %v1132
    %v1312 = vunpack.c.h.b16 %v1132
    %v1313 = vunpack.c.l.b16 %v1133
    %v1314 = vunpack.c.h.b16 %v1133
    %v1315 = vunpack.c.l.b16 %v1134
    %v1316 = vunpack.c.h.b16 %v1134
    %v1317 = vunpack.c.l.b16 %v1135
    %v1318 = vunpack.c.h.b16 %v1135
    %v1319 = vunpack.c.l.b16 %v1136
    %v1320 = vunpack.c.h.b16 %v1136
    %v1321 = vunpack.c.l.b16 %v1137
    %v1322 = vunpack.c.h.b16 %v1137
    %v1323 = vunpack.c.l.b16 %v1138
    %v1324 = vunpack.c.h.b16 %v1138
    %v1325 = vunpack.c.l.b16 %v1139
    %v1326 = vunpack.c.h.b16 %v1139
    %v1327 = vunpack.c.l.b16 %v1140
    %v1328 = vunpack.c.h.b16 %v1140
    %v1329 = vunpack.c.l.b16 %v1141
    %v1330 = vunpack.c.h.b16 %v1141
    %v1331 = vunpack.c.l.b16 %v1142
    %v1332 = vunpack.c.h.b16 %v1142
    %v1333 = vunpack.c.l.b16 %v1143
    %v1334 = vunpack.c.h.b16 %v1143
    %v1335 = vunpack.c.l.b16 %v1144
    %v1336 = vunpack.c.h.b16 %v1144
    %v1337 = vpack.c.b16 %v1213, %v1209
    %v1338 = vpack.c.b16 %v1214, %v1210
    %v1339 = vpack.c.b16 %v1215, %v1211
    %v1340 = vpack.c.b16 %v1216, %v1212
    %v1341 = vpack.c.b16 %v1221, %v1217
    %v1342 = vpack.c.b16 %v1222, %v1218
    %v1343 = vpack.c.b16 %v1223, %v1219
    %v1344 = vpack.c.b16 %v1224, %v1220
    %v1345 = vpack.c.b16 %v1229, %v1225
    %v1346 = vpack.c.b16 %v1230, %v1226
    %v1347 = vpack.c.b16 %v1231, %v1227
    %v1348 = vpack.c.b16 %v1232, %v1228
    %v1349 = vpack.c.b16 %v1237, %v1233
    %v1350 = vpack.c.b16 %v1238, %v1234
    %v1351 = vpack.c.b16 %v1239, %v1235
    %v1352 = vpack.c.b16 %v1240, %v1236
    %v1353 = vpack.c.b16 %v1245, %v1241
    %v1354 = vpack.c.b16 %v1246, %v1242
    %v1355 = vpack.c.b16 %v1247, %v1243
    %v1356 = vpack.c.b16 %v1248, %v1244
    %v1357 = vpack.c.b16 %v1253, %v1249
    %v1358 = vpack.c.b16 %v1254, %v1250
    %v1359 = vpack.c.b16 %v1255, %v1251
    %v1360 = vpack.c.b16 %v1256, %v1252
    %v1361 = vpack.c.b16 %v1261, %v1257
    %v1362 = vpack.c.b16 %v1262, %v1258
    %v1363 = vpack.c.b16 %v1263, %v1259
    %v1364 = vpack.c.b16 %v1264, %v1260
    %v1365 = vpack.c.b16 %v1269, %v1265
    %v1366 = vpack.c.b16 %v1270, %v1266
    %v1367 = vpack.c.b16 %v1271, %v1267
    %v1368 = vpack.c.b16 %v1272, %v1268
    %v1369 = vpack.c.b16 %v1277, %v1273
    %v1370 = vpack.c.b16 %v1278, %v1274
    %v1371 = vpack.c.b16 %v1279, %v1275
    %v1372 = vpack.c.b16 %v1280, %v1276
    %v1373 = vpack.c.b16 %v1285, %v1281
    %v1374 = vpack.c.b16 %v1286, %v1282
    %v1375 = vpack.c.b16 %v1287, %v1283
    %v1376 = vpack.c.b16 %v1288, %v1284
    %v1377 = vpack.c.b16 %v1293, %v1289
    %v1378 = vpack.c.b16 %v1294, %v1290
    %v1379 = vpack.c.b16 %v1295, %v1291
    %v1380 = vpack.c.b16 %v1296, %v1292
    %v1381 = vpack.c.b16 %v1301, %v1297
    %v1382 = vpack.c.b16 %v1302, %v1298
    %v1383 = vpack.c.b16 %v1303, %v1299
    %v1384 = vpack.c.b16 %v1304, %v1300
    %v1385 = vpack.c.b16 %v1309, %v1305
    %v1386 = vpack.c.b16 %v1310, %v1306
    %v1387 = vpack.c.b16 %v1311, %v1307
    %v1388 = vpack.c.b16 %v1312, %v1308
    %v1389 = vpack.c.b16 %v1317, %v1313
    %v1390 = vpack.c.b16 %v1318, %v1314
    %v1391 = vpack.c.b16 %v1319, %v1315
    %v1392 = vpack.c.b16 %v1320, %v1316
    %v1393 = vpack.c.b16 %v1325, %v1321
    %v1394 = vpack.c.b16 %v1326, %v1322
    %v1395 = vpack.c.b16 %v1327, %v1323
    %v1396 = vpack.c.b16 %v1328, %v1324
    %v1397 = vpack.c.b16 %v1333, %v1329
    %v1398 = vpack.c.b16 %v1334, %v1330
    %v1399 = vpack.c.b16 %v1335, %v1331
    %v1400 = vpack.c.b16 %v1336, %v1332
    %1465 = vmatprep.subr.bf16.mxu0 %v1338
    %1466 = vmatpush1.bf16.msra.mxu0 %v1337
    %1467 = vmatprep.subr.bf16.mxu0 %v1342
    %1468 = vmatpush1.bf16.msra.mxu0 %v1341
    %1469 = vmatprep.subr.bf16.mxu0 %v1346
    %1470 = vmatpush1.bf16.msra.mxu0 %v1345
    %1471 = vmatprep.subr.bf16.mxu0 %v1350
    %1472 = vmatpush1.bf16.msra.mxu0 %v1349
    %1473 = vmatprep.subr.bf16.mxu0 %v1354
    %1474 = vmatpush1.bf16.msra.mxu0 %v1353
    %1475 = vmatprep.subr.bf16.mxu0 %v1358
    %1476 = vmatpush1.bf16.msra.mxu0 %v1357
    %1477 = vmatprep.subr.bf16.mxu0 %v1362
    %1478 = vmatpush1.bf16.msra.mxu0 %v1361
    %1479 = vmatprep.subr.bf16.mxu0 %v1366
    %1480 = vmatpush1.bf16.msra.mxu0 %v1365
    %1481 = vmatprep.subr.bf16.mxu0 %v1370
    %1482 = vmatpush1.bf16.msra.mxu0 %v1369
    %1483 = vmatprep.subr.bf16.mxu0 %v1374
    %1484 = vmatpush1.bf16.msra.mxu0 %v1373
    %1485 = vmatprep.subr.bf16.mxu0 %v1378
    %1486 = vmatpush1.bf16.msra.mxu0 %v1377
    %1487 = vmatprep.subr.bf16.mxu0 %v1382
    %1488 = vmatpush1.bf16.msra.mxu0 %v1381
    %1489 = vmatprep.subr.bf16.mxu0 %v1386
    %1490 = vmatpush1.bf16.msra.mxu0 %v1385
    %1491 = vmatprep.subr.bf16.mxu0 %v1390
    %1492 = vmatpush1.bf16.msra.mxu0 %v1389
    %1493 = vmatprep.subr.bf16.mxu0 %v1394
    %1494 = vmatpush1.bf16.msra.mxu0 %v1393
    %1495 = vmatprep.subr.bf16.mxu0 %v1398
    %1496 = vmatpush1.bf16.msra.mxu0 %v1397
    %1497 = vmatprep.mubr.bf16.mxu0 %v204
    %1498 = vmatmul.mubr.bf16.gmra.mrb[0].mxu0 %v203
    %v1499 = vpop.f32.mrb[0].mxu0
    %v1500 = vadd.f32 0.0, %v1499
    %v1501 = vpop.f32.mrb[0].mxu0
    %v1502 = vadd.f32 0.0, %v1501
    %v1503 = vpop.f32.mrb[0].mxu0
    %v1504 = vpop.f32.mrb[0].mxu0
    %1505 = vdwg.mxu0
    %1506 = vmatprep.subr.bf16.mxu0 %v1340
    %1507 = vmatpush1.bf16.msra.mxu0 %v1339
    %1508 = vmatprep.subr.bf16.mxu0 %v1344
    %1509 = vmatpush1.bf16.msra.mxu0 %v1343
    %1510 = vmatprep.subr.bf16.mxu0 %v1348
    %1511 = vmatpush1.bf16.msra.mxu0 %v1347
    %1512 = vmatprep.subr.bf16.mxu0 %v1352
    %1513 = vmatpush1.bf16.msra.mxu0 %v1351
    %1514 = vmatprep.subr.bf16.mxu0 %v1356
    %1515 = vmatpush1.bf16.msra.mxu0 %v1355
    %1516 = vmatprep.subr.bf16.mxu0 %v1360
    %1517 = vmatpush1.bf16.msra.mxu0 %v1359
    %1518 = vmatprep.subr.bf16.mxu0 %v1364
    %1519 = vmatpush1.bf16.msra.mxu0 %v1363
    %1520 = vmatprep.subr.bf16.mxu0 %v1368
    %1521 = vmatpush1.bf16.msra.mxu0 %v1367
    %1522 = vmatprep.subr.bf16.mxu0 %v1372
    %1523 = vmatpush1.bf16.msra.mxu0 %v1371
    %1524 = vmatprep.subr.bf16.mxu0 %v1376
    %1525 = vmatpush1.bf16.msra.mxu0 %v1375
    %1526 = vmatprep.subr.bf16.mxu0 %v1380
    %1527 = vmatpush1.bf16.msra.mxu0 %v1379
    %1528 = vmatprep.subr.bf16.mxu0 %v1384
    %1529 = vmatpush1.bf16.msra.mxu0 %v1383
    %1530 = vmatprep.subr.bf16.mxu0 %v1388
    %1531 = vmatpush1.bf16.msra.mxu0 %v1387
    %1532 = vmatprep.subr.bf16.mxu0 %v1392
    %1533 = vmatpush1.bf16.msra.mxu0 %v1391
    %1534 = vmatprep.subr.bf16.mxu0 %v1396
    %1535 = vmatpush1.bf16.msra.mxu0 %v1395
    %1536 = vmatprep.subr.bf16.mxu0 %v1400
    %1537 = vmatpush1.bf16.msra.mxu0 %v1399
    %1538 = vmatprep.mubr.bf16.mxu0 %v204
    %1539 = vmatmul.mubr.bf16.gmra.mrb[0].mxu0 %v203
    %v1540 = vpop.f32.mrb[0].mxu0
    %v1541 = vadd.f32 0.0, %v1540
    %v1542 = vpop.f32.mrb[0].mxu0
    %v1543 = vadd.f32 0.0, %v1542
    %v1544 = vpop.f32.mrb[0].mxu0
    %v1545 = vpop.f32.mrb[0].mxu0
    %1546 = vdwg.mxu0
    %v1547 = vmax.f32 %v1076, %v1500
    %v1548 = vmax.f32 %v1077, %v1502
    %v1549 = vmax.f32 %v1078, %v1541
    %v1550 = vmax.f32 %v1079, %v1543
    %s1551 = scalar_lea.vmem [#allocation5], 1536
    %v1552 = vld [vmem:[%s1551] sm:$0xff]
    %v1553 = vld [vmem:[%s1551 + $0x8] sm:$0xff]
    %v1554 = vld [vmem:[%s1551 + $0x10] sm:$0xff]
    %v1555 = vld [vmem:[%s1551 + $0x18] sm:$0xff]
    %v1556 = vld [vmem:[%s1551 + $0x20] sm:$0xff]
    %v1557 = vld [vmem:[%s1551 + $0x28] sm:$0xff]
    %v1558 = vld [vmem:[%s1551 + $0x30] sm:$0xff]
    %v1559 = vld [vmem:[%s1551 + $0x38] sm:$0xff]
    %v1560 = vld [vmem:[%s1551 + $0x40] sm:$0xff]
    %v1561 = vld [vmem:[%s1551 + $0x48] sm:$0xff]
    %v1562 = vld [vmem:[%s1551 + $0x50] sm:$0xff]
    %v1563 = vld [vmem:[%s1551 + $0x58] sm:$0xff]
    %v1564 = vld [vmem:[%s1551 + $0x60] sm:$0xff]
    %v1565 = vld [vmem:[%s1551 + $0x68] sm:$0xff]
    %v1566 = vld [vmem:[%s1551 + $0x70] sm:$0xff]
    %v1567 = vld [vmem:[%s1551 + $0x78] sm:$0xff]
    %v1568 = vld [vmem:[%s1551 + $0x80] sm:$0xff]
    %v1569 = vld [vmem:[%s1551 + $0x88] sm:$0xff]
    %v1570 = vld [vmem:[%s1551 + $0x90] sm:$0xff]
    %v1571 = vld [vmem:[%s1551 + $0x98] sm:$0xff]
    %v1572 = vld [vmem:[%s1551 + $0xa0] sm:$0xff]
    %v1573 = vld [vmem:[%s1551 + $0xa8] sm:$0xff]
    %v1574 = vld [vmem:[%s1551 + $0xb0] sm:$0xff]
    %v1575 = vld [vmem:[%s1551 + $0xb8] sm:$0xff]
    %v1576 = vld [vmem:[%s1551 + $0xc0] sm:$0xff]
    %v1577 = vld [vmem:[%s1551 + $0xc8] sm:$0xff]
    %v1578 = vld [vmem:[%s1551 + $0xd0] sm:$0xff]
    %v1579 = vld [vmem:[%s1551 + $0xd8] sm:$0xff]
    %v1580 = vld [vmem:[%s1551 + $0xe0] sm:$0xff]
    %v1581 = vld [vmem:[%s1551 + $0xe8] sm:$0xff]
    %v1582 = vld [vmem:[%s1551 + $0xf0] sm:$0xff]
    %v1583 = vld [vmem:[%s1551 + $0xf8] sm:$0xff]
    %v1584 = vld [vmem:[%s1551 + $0x100] sm:$0xff]
    %v1585 = vld [vmem:[%s1551 + $0x108] sm:$0xff]
    %v1586 = vld [vmem:[%s1551 + $0x110] sm:$0xff]
    %v1587 = vld [vmem:[%s1551 + $0x118] sm:$0xff]
    %v1588 = vld [vmem:[%s1551 + $0x120] sm:$0xff]
    %v1589 = vld [vmem:[%s1551 + $0x128] sm:$0xff]
    %v1590 = vld [vmem:[%s1551 + $0x130] sm:$0xff]
    %v1591 = vld [vmem:[%s1551 + $0x138] sm:$0xff]
    %v1592 = vld [vmem:[%s1551 + $0x140] sm:$0xff]
    %v1593 = vld [vmem:[%s1551 + $0x148] sm:$0xff]
    %v1594 = vld [vmem:[%s1551 + $0x150] sm:$0xff]
    %v1595 = vld [vmem:[%s1551 + $0x158] sm:$0xff]
    %v1596 = vld [vmem:[%s1551 + $0x160] sm:$0xff]
    %v1597 = vld [vmem:[%s1551 + $0x168] sm:$0xff]
    %v1598 = vld [vmem:[%s1551 + $0x170] sm:$0xff]
    %v1599 = vld [vmem:[%s1551 + $0x178] sm:$0xff]
    %v1600 = vld [vmem:[%s1551 + $0x180] sm:$0xff]
    %v1601 = vld [vmem:[%s1551 + $0x188] sm:$0xff]
    %v1602 = vld [vmem:[%s1551 + $0x190] sm:$0xff]
    %v1603 = vld [vmem:[%s1551 + $0x198] sm:$0xff]
    %v1604 = vld [vmem:[%s1551 + $0x1a0] sm:$0xff]
    %v1605 = vld [vmem:[%s1551 + $0x1a8] sm:$0xff]
    %v1606 = vld [vmem:[%s1551 + $0x1b0] sm:$0xff]
    %v1607 = vld [vmem:[%s1551 + $0x1b8] sm:$0xff]
    %v1608 = vld [vmem:[%s1551 + $0x1c0] sm:$0xff]
    %v1609 = vld [vmem:[%s1551 + $0x1c8] sm:$0xff]
    %v1610 = vld [vmem:[%s1551 + $0x1d0] sm:$0xff]
    %v1611 = vld [vmem:[%s1551 + $0x1d8] sm:$0xff]
    %v1612 = vld [vmem:[%s1551 + $0x1e0] sm:$0xff]
    %v1613 = vld [vmem:[%s1551 + $0x1e8] sm:$0xff]
    %v1614 = vld [vmem:[%s1551 + $0x1f0] sm:$0xff]
    %v1615 = vld [vmem:[%s1551 + $0x1f8] sm:$0xff]
    %v1680 = vunpack.c.l.b16 %v1552
    %v1681 = vunpack.c.h.b16 %v1552
    %v1682 = vunpack.c.l.b16 %v1553
    %v1683 = vunpack.c.h.b16 %v1553
    %v1684 = vunpack.c.l.b16 %v1554
    %v1685 = vunpack.c.h.b16 %v1554
    %v1686 = vunpack.c.l.b16 %v1555
    %v1687 = vunpack.c.h.b16 %v1555
    %v1688 = vunpack.c.l.b16 %v1556
    %v1689 = vunpack.c.h.b16 %v1556
    %v1690 = vunpack.c.l.b16 %v1557
    %v1691 = vunpack.c.h.b16 %v1557
    %v1692 = vunpack.c.l.b16 %v1558
    %v1693 = vunpack.c.h.b16 %v1558
    %v1694 = vunpack.c.l.b16 %v1559
    %v1695 = vunpack.c.h.b16 %v1559
    %v1696 = vunpack.c.l.b16 %v1560
    %v1697 = vunpack.c.h.b16 %v1560
    %v1698 = vunpack.c.l.b16 %v1561
    %v1699 = vunpack.c.h.b16 %v1561
    %v1700 = vunpack.c.l.b16 %v1562
    %v1701 = vunpack.c.h.b16 %v1562
    %v1702 = vunpack.c.l.b16 %v1563
    %v1703 = vunpack.c.h.b16 %v1563
    %v1704 = vunpack.c.l.b16 %v1564
    %v1705 = vunpack.c.h.b16 %v1564
    %v1706 = vunpack.c.l.b16 %v1565
    %v1707 = vunpack.c.h.b16 %v1565
    %v1708 = vunpack.c.l.b16 %v1566
    %v1709 = vunpack.c.h.b16 %v1566
    %v1710 = vunpack.c.l.b16 %v1567
    %v1711 = vunpack.c.h.b16 %v1567
    %v1712 = vunpack.c.l.b16 %v1568
    %v1713 = vunpack.c.h.b16 %v1568
    %v1714 = vunpack.c.l.b16 %v1569
    %v1715 = vunpack.c.h.b16 %v1569
    %v1716 = vunpack.c.l.b16 %v1570
    %v1717 = vunpack.c.h.b16 %v1570
    %v1718 = vunpack.c.l.b16 %v1571
    %v1719 = vunpack.c.h.b16 %v1571
    %v1720 = vunpack.c.l.b16 %v1572
    %v1721 = vunpack.c.h.b16 %v1572
    %v1722 = vunpack.c.l.b16 %v1573
    %v1723 = vunpack.c.h.b16 %v1573
    %v1724 = vunpack.c.l.b16 %v1574
    %v1725 = vunpack.c.h.b16 %v1574
    %v1726 = vunpack.c.l.b16 %v1575
    %v1727 = vunpack.c.h.b16 %v1575
    %v1728 = vunpack.c.l.b16 %v1576
    %v1729 = vunpack.c.h.b16 %v1576
    %v1730 = vunpack.c.l.b16 %v1577
    %v1731 = vunpack.c.h.b16 %v1577
    %v1732 = vunpack.c.l.b16 %v1578
    %v1733 = vunpack.c.h.b16 %v1578
    %v1734 = vunpack.c.l.b16 %v1579
    %v1735 = vunpack.c.h.b16 %v1579
    %v1736 = vunpack.c.l.b16 %v1580
    %v1737 = vunpack.c.h.b16 %v1580
    %v1738 = vunpack.c.l.b16 %v1581
    %v1739 = vunpack.c.h.b16 %v1581
    %v1740 = vunpack.c.l.b16 %v1582
    %v1741 = vunpack.c.h.b16 %v1582
    %v1742 = vunpack.c.l.b16 %v1583
    %v1743 = vunpack.c.h.b16 %v1583
    %v1744 = vunpack.c.l.b16 %v1584
    %v1745 = vunpack.c.h.b16 %v1584
    %v1746 = vunpack.c.l.b16 %v1585
    %v1747 = vunpack.c.h.b16 %v1585
    %v1748 = vunpack.c.l.b16 %v1586
    %v1749 = vunpack.c.h.b16 %v1586
    %v1750 = vunpack.c.l.b16 %v1587
    %v1751 = vunpack.c.h.b16 %v1587
    %v1752 = vunpack.c.l.b16 %v1588
    %v1753 = vunpack.c.h.b16 %v1588
    %v1754 = vunpack.c.l.b16 %v1589
    %v1755 = vunpack.c.h.b16 %v1589
    %v1756 = vunpack.c.l.b16 %v1590
    %v1757 = vunpack.c.h.b16 %v1590
    %v1758 = vunpack.c.l.b16 %v1591
    %v1759 = vunpack.c.h.b16 %v1591
    %v1760 = vunpack.c.l.b16 %v1592
    %v1761 = vunpack.c.h.b16 %v1592
    %v1762 = vunpack.c.l.b16 %v1593
    %v1763 = vunpack.c.h.b16 %v1593
    %v1764 = vunpack.c.l.b16 %v1594
    %v1765 = vunpack.c.h.b16 %v1594
    %v1766 = vunpack.c.l.b16 %v1595
    %v1767 = vunpack.c.h.b16 %v1595
    %v1768 = vunpack.c.l.b16 %v1596
    %v1769 = vunpack.c.h.b16 %v1596
    %v1770 = vunpack.c.l.b16 %v1597
    %v1771 = vunpack.c.h.b16 %v1597
    %v1772 = vunpack.c.l.b16 %v1598
    %v1773 = vunpack.c.h.b16 %v1598
    %v1774 = vunpack.c.l.b16 %v1599
    %v1775 = vunpack.c.h.b16 %v1599
    %v1776 = vunpack.c.l.b16 %v1600
    %v1777 = vunpack.c.h.b16 %v1600
    %v1778 = vunpack.c.l.b16 %v1601
    %v1779 = vunpack.c.h.b16 %v1601
    %v1780 = vunpack.c.l.b16 %v1602
    %v1781 = vunpack.c.h.b16 %v1602
    %v1782 = vunpack.c.l.b16 %v1603
    %v1783 = vunpack.c.h.b16 %v1603
    %v1784 = vunpack.c.l.b16 %v1604
    %v1785 = vunpack.c.h.b16 %v1604
    %v1786 = vunpack.c.l.b16 %v1605
    %v1787 = vunpack.c.h.b16 %v1605
    %v1788 = vunpack.c.l.b16 %v1606
    %v1789 = vunpack.c.h.b16 %v1606
    %v1790 = vunpack.c.l.b16 %v1607
    %v1791 = vunpack.c.h.b16 %v1607
    %v1792 = vunpack.c.l.b16 %v1608
    %v1793 = vunpack.c.h.b16 %v1608
    %v1794 = vunpack.c.l.b16 %v1609
    %v1795 = vunpack.c.h.b16 %v1609
    %v1796 = vunpack.c.l.b16 %v1610
    %v1797 = vunpack.c.h.b16 %v1610
    %v1798 = vunpack.c.l.b16 %v1611
    %v1799 = vunpack.c.h.b16 %v1611
    %v1800 = vunpack.c.l.b16 %v1612
    %v1801 = vunpack.c.h.b16 %v1612
    %v1802 = vunpack.c.l.b16 %v1613
    %v1803 = vunpack.c.h.b16 %v1613
    %v1804 = vunpack.c.l.b16 %v1614
    %v1805 = vunpack.c.h.b16 %v1614
    %v1806 = vunpack.c.l.b16 %v1615
    %v1807 = vunpack.c.h.b16 %v1615
    %v1808 = vpack.c.b16 %v1684, %v1680
    %v1809 = vpack.c.b16 %v1685, %v1681
    %v1810 = vpack.c.b16 %v1686, %v1682
    %v1811 = vpack.c.b16 %v1687, %v1683
    %v1812 = vpack.c.b16 %v1692, %v1688
    %v1813 = vpack.c.b16 %v1693, %v1689
    %v1814 = vpack.c.b16 %v1694, %v1690
    %v1815 = vpack.c.b16 %v1695, %v1691
    %v1816 = vpack.c.b16 %v1700, %v1696
    %v1817 = vpack.c.b16 %v1701, %v1697
    %v1818 = vpack.c.b16 %v1702, %v1698
    %v1819 = vpack.c.b16 %v1703, %v1699
    %v1820 = vpack.c.b16 %v1708, %v1704
    %v1821 = vpack.c.b16 %v1709, %v1705
    %v1822 = vpack.c.b16 %v1710, %v1706
    %v1823 = vpack.c.b16 %v1711, %v1707
    %v1824 = vpack.c.b16 %v1716, %v1712
    %v1825 = vpack.c.b16 %v1717, %v1713
    %v1826 = vpack.c.b16 %v1718, %v1714
    %v1827 = vpack.c.b16 %v1719, %v1715
    %v1828 = vpack.c.b16 %v1724, %v1720
    %v1829 = vpack.c.b16 %v1725, %v1721
    %v1830 = vpack.c.b16 %v1726, %v1722
    %v1831 = vpack.c.b16 %v1727, %v1723
    %v1832 = vpack.c.b16 %v1732, %v1728
    %v1833 = vpack.c.b16 %v1733, %v1729
    %v1834 = vpack.c.b16 %v1734, %v1730
    %v1835 = vpack.c.b16 %v1735, %v1731
    %v1836 = vpack.c.b16 %v1740, %v1736
    %v1837 = vpack.c.b16 %v1741, %v1737
    %v1838 = vpack.c.b16 %v1742, %v1738
    %v1839 = vpack.c.b16 %v1743, %v1739
    %v1840 = vpack.c.b16 %v1748, %v1744
    %v1841 = vpack.c.b16 %v1749, %v1745
    %v1842 = vpack.c.b16 %v1750, %v1746
    %v1843 = vpack.c.b16 %v1751, %v1747
    %v1844 = vpack.c.b16 %v1756, %v1752
    %v1845 = vpack.c.b16 %v1757, %v1753
    %v1846 = vpack.c.b16 %v1758, %v1754
    %v1847 = vpack.c.b16 %v1759, %v1755
    %v1848 = vpack.c.b16 %v1764, %v1760
    %v1849 = vpack.c.b16 %v1765, %v1761
    %v1850 = vpack.c.b16 %v1766, %v1762
    %v1851 = vpack.c.b16 %v1767, %v1763
    %v1852 = vpack.c.b16 %v1772, %v1768
    %v1853 = vpack.c.b16 %v1773, %v1769
    %v1854 = vpack.c.b16 %v1774, %v1770
    %v1855 = vpack.c.b16 %v1775, %v1771
    %v1856 = vpack.c.b16 %v1780, %v1776
    %v1857 = vpack.c.b16 %v1781, %v1777
    %v1858 = vpack.c.b16 %v1782, %v1778
    %v1859 = vpack.c.b16 %v1783, %v1779
    %v1860 = vpack.c.b16 %v1788, %v1784
    %v1861 = vpack.c.b16 %v1789, %v1785
    %v1862 = vpack.c.b16 %v1790, %v1786
    %v1863 = vpack.c.b16 %v1791, %v1787
    %v1864 = vpack.c.b16 %v1796, %v1792
    %v1865 = vpack.c.b16 %v1797, %v1793
    %v1866 = vpack.c.b16 %v1798, %v1794
    %v1867 = vpack.c.b16 %v1799, %v1795
    %v1868 = vpack.c.b16 %v1804, %v1800
    %v1869 = vpack.c.b16 %v1805, %v1801
    %v1870 = vpack.c.b16 %v1806, %v1802
    %v1871 = vpack.c.b16 %v1807, %v1803
    %1936 = vmatprep.subr.bf16.mxu0 %v1809
    %1937 = vmatpush1.bf16.msra.mxu0 %v1808
    %1938 = vmatprep.subr.bf16.mxu0 %v1813
    %1939 = vmatpush1.bf16.msra.mxu0 %v1812
    %1940 = vmatprep.subr.bf16.mxu0 %v1817
    %1941 = vmatpush1.bf16.msra.mxu0 %v1816
    %1942 = vmatprep.subr.bf16.mxu0 %v1821
    %1943 = vmatpush1.bf16.msra.mxu0 %v1820
    %1944 = vmatprep.subr.bf16.mxu0 %v1825
    %1945 = vmatpush1.bf16.msra.mxu0 %v1824
    %1946 = vmatprep.subr.bf16.mxu0 %v1829
    %1947 = vmatpush1.bf16.msra.mxu0 %v1828
    %1948 = vmatprep.subr.bf16.mxu0 %v1833
    %1949 = vmatpush1.bf16.msra.mxu0 %v1832
    %1950 = vmatprep.subr.bf16.mxu0 %v1837
    %1951 = vmatpush1.bf16.msra.mxu0 %v1836
    %1952 = vmatprep.subr.bf16.mxu0 %v1841
    %1953 = vmatpush1.bf16.msra.mxu0 %v1840
    %1954 = vmatprep.subr.bf16.mxu0 %v1845
    %1955 = vmatpush1.bf16.msra.mxu0 %v1844
    %1956 = vmatprep.subr.bf16.mxu0 %v1849
    %1957 = vmatpush1.bf16.msra.mxu0 %v1848
    %1958 = vmatprep.subr.bf16.mxu0 %v1853
    %1959 = vmatpush1.bf16.msra.mxu0 %v1852
    %1960 = vmatprep.subr.bf16.mxu0 %v1857
    %1961 = vmatpush1.bf16.msra.mxu0 %v1856
    %1962 = vmatprep.subr.bf16.mxu0 %v1861
    %1963 = vmatpush1.bf16.msra.mxu0 %v1860
    %1964 = vmatprep.subr.bf16.mxu0 %v1865
    %1965 = vmatpush1.bf16.msra.mxu0 %v1864
    %1966 = vmatprep.subr.bf16.mxu0 %v1869
    %1967 = vmatpush1.bf16.msra.mxu0 %v1868
    %1968 = vmatprep.mubr.bf16.mxu0 %v204
    %1969 = vmatmul.mubr.bf16.gmra.mrb[0].mxu0 %v203
    %v1970 = vpop.f32.mrb[0].mxu0
    %v1971 = vadd.f32 0.0, %v1970
    %v1972 = vpop.f32.mrb[0].mxu0
    %v1973 = vadd.f32 0.0, %v1972
    %v1974 = vpop.f32.mrb[0].mxu0
    %v1975 = vpop.f32.mrb[0].mxu0
    %1976 = vdwg.mxu0
    %1977 = vmatprep.subr.bf16.mxu0 %v1811
    %1978 = vmatpush1.bf16.msra.mxu0 %v1810
    %1979 = vmatprep.subr.bf16.mxu0 %v1815
    %1980 = vmatpush1.bf16.msra.mxu0 %v1814
    %1981 = vmatprep.subr.bf16.mxu0 %v1819
    %1982 = vmatpush1.bf16.msra.mxu0 %v1818
    %1983 = vmatprep.subr.bf16.mxu0 %v1823
    %1984 = vmatpush1.bf16.msra.mxu0 %v1822
    %1985 = vmatprep.subr.bf16.mxu0 %v1827
    %1986 = vmatpush1.bf16.msra.mxu0 %v1826
    %1987 = vmatprep.subr.bf16.mxu0 %v1831
    %1988 = vmatpush1.bf16.msra.mxu0 %v1830
    %1989 = vmatprep.subr.bf16.mxu0 %v1835
    %1990 = vmatpush1.bf16.msra.mxu0 %v1834
    %1991 = vmatprep.subr.bf16.mxu0 %v1839
    %1992 = vmatpush1.bf16.msra.mxu0 %v1838
    %1993 = vmatprep.subr.bf16.mxu0 %v1843
    %1994 = vmatpush1.bf16.msra.mxu0 %v1842
    %1995 = vmatprep.subr.bf16.mxu0 %v1847
    %1996 = vmatpush1.bf16.msra.mxu0 %v1846
    %1997 = vmatprep.subr.bf16.mxu0 %v1851
    %1998 = vmatpush1.bf16.msra.mxu0 %v1850
    %1999 = vmatprep.subr.bf16.mxu0 %v1855
    %2000 = vmatpush1.bf16.msra.mxu0 %v1854
    %2001 = vmatprep.subr.bf16.mxu0 %v1859
    %2002 = vmatpush1.bf16.msra.mxu0 %v1858
    %2003 = vmatprep.subr.bf16.mxu0 %v1863
    %2004 = vmatpush1.bf16.msra.mxu0 %v1862
    %2005 = vmatprep.subr.bf16.mxu0 %v1867
    %2006 = vmatpush1.bf16.msra.mxu0 %v1866
    %2007 = vmatprep.subr.bf16.mxu0 %v1871
    %2008 = vmatpush1.bf16.msra.mxu0 %v1870
    %2009 = vmatprep.mubr.bf16.mxu0 %v204
    %2010 = vmatmul.mubr.bf16.gmra.mrb[0].mxu0 %v203
    %v2011 = vpop.f32.mrb[0].mxu0
    %v2012 = vadd.f32 0.0, %v2011
    %v2013 = vpop.f32.mrb[0].mxu0
    %v2014 = vadd.f32 0.0, %v2013
    %v2015 = vpop.f32.mrb[0].mxu0
    %v2016 = vpop.f32.mrb[0].mxu0
    %2017 = vdwg.mxu0
    %v2018 = vmax.f32 %v1547, %v1971
    %v2019 = vmax.f32 %v1548, %v1973
    %v2020 = vmax.f32 %v1549, %v2012
    %v2021 = vmax.f32 %v1550, %v2014
    %v2022 = vld [vmem:[%s2] sm:$0xf]
    %v2024 = vlaneseq
    %v2025 = vshrl.u32 %v2024, 7
    %v2026 = vsub.s32 0, %v2025
    %v2027 = vrot.slane %v2022, %v2026
    %v2028 = vlaneseq
    %v2029 = vshrl.u32 %v2028, 7
    %v2030 = vsub.s32 1, %v2029
    %v2031 = vrot.slane %v2022, %v2030
    %v2032 = vlaneseq
    %v2033 = vshrl.u32 %v2032, 7
    %v2034 = vsub.s32 2, %v2033
    %v2035 = vrot.slane %v2022, %v2034
    %v2036 = vlaneseq
    %v2037 = vshrl.u32 %v2036, 7
    %v2038 = vsub.s32 3, %v2037
    %v2039 = vrot.slane %v2022, %v2038
    %v2044 = vadd.f32 %v2018, %v2027
    %v2045 = vadd.f32 %v2019, %v2031
    %v2046 = vadd.f32 %v2020, %v2035
    %v2047 = vadd.f32 %v2021, %v2039
    %v2048 = vpack.c.bf16 %v2044, %v2044
    %v2049 = vpack.c.bf16 %v2045, %v2045
    %v2050 = vpack.c.bf16 %v2046, %v2046
    %v2051 = vpack.c.bf16 %v2047, %v2047
    %v2052 = vld [vmem:[#allocation7] sm:$0xff]
    %v2053 = vld [vmem:[#allocation7 + $0x8] sm:$0xff]
    %v2054 = vld [vmem:[#allocation7 + $0x10] sm:$0xff]
    %v2055 = vld [vmem:[#allocation7 + $0x18] sm:$0xff]
    %v2056 = vld [vmem:[#allocation7 + $0x20] sm:$0xff]
    %v2057 = vld [vmem:[#allocation7 + $0x28] sm:$0xff]
    %v2058 = vld [vmem:[#allocation7 + $0x30] sm:$0xff]
    %v2059 = vld [vmem:[#allocation7 + $0x38] sm:$0xff]
    %v2060 = vld [vmem:[#allocation7 + $0x40] sm:$0xff]
    %v2061 = vld [vmem:[#allocation7 + $0x48] sm:$0xff]
    %v2062 = vld [vmem:[#allocation7 + $0x50] sm:$0xff]
    %v2063 = vld [vmem:[#allocation7 + $0x58] sm:$0xff]
    %v2064 = vld [vmem:[#allocation7 + $0x60] sm:$0xff]
    %v2065 = vld [vmem:[#allocation7 + $0x68] sm:$0xff]
    %v2066 = vld [vmem:[#allocation7 + $0x70] sm:$0xff]
    %v2067 = vld [vmem:[#allocation7 + $0x78] sm:$0xff]
    %v2068 = vld [vmem:[#allocation7 + $0x80] sm:$0xff]
    %v2069 = vld [vmem:[#allocation7 + $0x88] sm:$0xff]
    %v2070 = vld [vmem:[#allocation7 + $0x90] sm:$0xff]
    %v2071 = vld [vmem:[#allocation7 + $0x98] sm:$0xff]
    %v2072 = vld [vmem:[#allocation7 + $0xa0] sm:$0xff]
    %v2073 = vld [vmem:[#allocation7 + $0xa8] sm:$0xff]
    %v2074 = vld [vmem:[#allocation7 + $0xb0] sm:$0xff]
    %v2075 = vld [vmem:[#allocation7 + $0xb8] sm:$0xff]
    %v2076 = vld [vmem:[#allocation7 + $0xc0] sm:$0xff]
    %v2077 = vld [vmem:[#allocation7 + $0xc8] sm:$0xff]
    %v2078 = vld [vmem:[#allocation7 + $0xd0] sm:$0xff]
    %v2079 = vld [vmem:[#allocation7 + $0xd8] sm:$0xff]
    %v2080 = vld [vmem:[#allocation7 + $0xe0] sm:$0xff]
    %v2081 = vld [vmem:[#allocation7 + $0xe8] sm:$0xff]
    %v2082 = vld [vmem:[#allocation7 + $0xf0] sm:$0xff]
    %v2083 = vld [vmem:[#allocation7 + $0xf8] sm:$0xff]
    %v2084 = vld [vmem:[#allocation7 + $0x100] sm:$0xff]
    %v2085 = vld [vmem:[#allocation7 + $0x108] sm:$0xff]
    %v2086 = vld [vmem:[#allocation7 + $0x110] sm:$0xff]
    %v2087 = vld [vmem:[#allocation7 + $0x118] sm:$0xff]
    %v2088 = vld [vmem:[#allocation7 + $0x120] sm:$0xff]
    %v2089 = vld [vmem:[#allocation7 + $0x128] sm:$0xff]
    %v2090 = vld [vmem:[#allocation7 + $0x130] sm:$0xff]
    %v2091 = vld [vmem:[#allocation7 + $0x138] sm:$0xff]
    %v2092 = vld [vmem:[#allocation7 + $0x140] sm:$0xff]
    %v2093 = vld [vmem:[#allocation7 + $0x148] sm:$0xff]
    %v2094 = vld [vmem:[#allocation7 + $0x150] sm:$0xff]
    %v2095 = vld [vmem:[#allocation7 + $0x158] sm:$0xff]
    %v2096 = vld [vmem:[#allocation7 + $0x160] sm:$0xff]
    %v2097 = vld [vmem:[#allocation7 + $0x168] sm:$0xff]
    %v2098 = vld [vmem:[#allocation7 + $0x170] sm:$0xff]
    %v2099 = vld [vmem:[#allocation7 + $0x178] sm:$0xff]
    %v2100 = vld [vmem:[#allocation7 + $0x180] sm:$0xff]
    %v2101 = vld [vmem:[#allocation7 + $0x188] sm:$0xff]
    %v2102 = vld [vmem:[#allocation7 + $0x190] sm:$0xff]
    %v2103 = vld [vmem:[#allocation7 + $0x198] sm:$0xff]
    %v2104 = vld [vmem:[#allocation7 + $0x1a0] sm:$0xff]
    %v2105 = vld [vmem:[#allocation7 + $0x1a8] sm:$0xff]
    %v2106 = vld [vmem:[#allocation7 + $0x1b0] sm:$0xff]
    %v2107 = vld [vmem:[#allocation7 + $0x1b8] sm:$0xff]
    %v2108 = vld [vmem:[#allocation7 + $0x1c0] sm:$0xff]
    %v2109 = vld [vmem:[#allocation7 + $0x1c8] sm:$0xff]
    %v2110 = vld [vmem:[#allocation7 + $0x1d0] sm:$0xff]
    %v2111 = vld [vmem:[#allocation7 + $0x1d8] sm:$0xff]
    %v2112 = vld [vmem:[#allocation7 + $0x1e0] sm:$0xff]
    %v2113 = vld [vmem:[#allocation7 + $0x1e8] sm:$0xff]
    %v2114 = vld [vmem:[#allocation7 + $0x1f0] sm:$0xff]
    %v2115 = vld [vmem:[#allocation7 + $0x1f8] sm:$0xff]
    %v2116 = vld [vmem:[#allocation7 + $0x200] sm:$0xff]
    %v2117 = vld [vmem:[#allocation7 + $0x208] sm:$0xff]
    %v2118 = vld [vmem:[#allocation7 + $0x210] sm:$0xff]
    %v2119 = vld [vmem:[#allocation7 + $0x218] sm:$0xff]
    %v2120 = vld [vmem:[#allocation7 + $0x220] sm:$0xff]
    %v2121 = vld [vmem:[#allocation7 + $0x228] sm:$0xff]
    %v2122 = vld [vmem:[#allocation7 + $0x230] sm:$0xff]
    %v2123 = vld [vmem:[#allocation7 + $0x238] sm:$0xff]
    %v2124 = vld [vmem:[#allocation7 + $0x240] sm:$0xff]
    %v2125 = vld [vmem:[#allocation7 + $0x248] sm:$0xff]
    %v2126 = vld [vmem:[#allocation7 + $0x250] sm:$0xff]
    %v2127 = vld [vmem:[#allocation7 + $0x258] sm:$0xff]
    %v2128 = vld [vmem:[#allocation7 + $0x260] sm:$0xff]
    %v2129 = vld [vmem:[#allocation7 + $0x268] sm:$0xff]
    %v2130 = vld [vmem:[#allocation7 + $0x270] sm:$0xff]
    %v2131 = vld [vmem:[#allocation7 + $0x278] sm:$0xff]
    %v2132 = vld [vmem:[#allocation7 + $0x280] sm:$0xff]
    %v2133 = vld [vmem:[#allocation7 + $0x288] sm:$0xff]
    %v2134 = vld [vmem:[#allocation7 + $0x290] sm:$0xff]
    %v2135 = vld [vmem:[#allocation7 + $0x298] sm:$0xff]
    %v2136 = vld [vmem:[#allocation7 + $0x2a0] sm:$0xff]
    %v2137 = vld [vmem:[#allocation7 + $0x2a8] sm:$0xff]
    %v2138 = vld [vmem:[#allocation7 + $0x2b0] sm:$0xff]
    %v2139 = vld [vmem:[#allocation7 + $0x2b8] sm:$0xff]
    %v2140 = vld [vmem:[#allocation7 + $0x2c0] sm:$0xff]
    %v2141 = vld [vmem:[#allocation7 + $0x2c8] sm:$0xff]
    %v2142 = vld [vmem:[#allocation7 + $0x2d0] sm:$0xff]
    %v2143 = vld [vmem:[#allocation7 + $0x2d8] sm:$0xff]
    %v2144 = vld [vmem:[#allocation7 + $0x2e0] sm:$0xff]
    %v2145 = vld [vmem:[#allocation7 + $0x2e8] sm:$0xff]
    %v2146 = vld [vmem:[#allocation7 + $0x2f0] sm:$0xff]
    %v2147 = vld [vmem:[#allocation7 + $0x2f8] sm:$0xff]
    %v2148 = vld [vmem:[#allocation7 + $0x300] sm:$0xff]
    %v2149 = vld [vmem:[#allocation7 + $0x308] sm:$0xff]
    %v2150 = vld [vmem:[#allocation7 + $0x310] sm:$0xff]
    %v2151 = vld [vmem:[#allocation7 + $0x318] sm:$0xff]
    %v2152 = vld [vmem:[#allocation7 + $0x320] sm:$0xff]
    %v2153 = vld [vmem:[#allocation7 + $0x328] sm:$0xff]
    %v2154 = vld [vmem:[#allocation7 + $0x330] sm:$0xff]
    %v2155 = vld [vmem:[#allocation7 + $0x338] sm:$0xff]
    %v2156 = vld [vmem:[#allocation7 + $0x340] sm:$0xff]
    %v2157 = vld [vmem:[#allocation7 + $0x348] sm:$0xff]
    %v2158 = vld [vmem:[#allocation7 + $0x350] sm:$0xff]
    %v2159 = vld [vmem:[#allocation7 + $0x358] sm:$0xff]
    %v2160 = vld [vmem:[#allocation7 + $0x360] sm:$0xff]
    %v2161 = vld [vmem:[#allocation7 + $0x368] sm:$0xff]
    %v2162 = vld [vmem:[#allocation7 + $0x370] sm:$0xff]
    %v2163 = vld [vmem:[#allocation7 + $0x378] sm:$0xff]
    %v2164 = vld [vmem:[#allocation7 + $0x380] sm:$0xff]
    %v2165 = vld [vmem:[#allocation7 + $0x388] sm:$0xff]
    %v2166 = vld [vmem:[#allocation7 + $0x390] sm:$0xff]
    %v2167 = vld [vmem:[#allocation7 + $0x398] sm:$0xff]
    %v2168 = vld [vmem:[#allocation7 + $0x3a0] sm:$0xff]
    %v2169 = vld [vmem:[#allocation7 + $0x3a8] sm:$0xff]
    %v2170 = vld [vmem:[#allocation7 + $0x3b0] sm:$0xff]
    %v2171 = vld [vmem:[#allocation7 + $0x3b8] sm:$0xff]
    %v2172 = vld [vmem:[#allocation7 + $0x3c0] sm:$0xff]
    %v2173 = vld [vmem:[#allocation7 + $0x3c8] sm:$0xff]
    %v2174 = vld [vmem:[#allocation7 + $0x3d0] sm:$0xff]
    %v2175 = vld [vmem:[#allocation7 + $0x3d8] sm:$0xff]
    %v2176 = vld [vmem:[#allocation7 + $0x3e0] sm:$0xff]
    %v2177 = vld [vmem:[#allocation7 + $0x3e8] sm:$0xff]
    %v2178 = vld [vmem:[#allocation7 + $0x3f0] sm:$0xff]
    %v2179 = vld [vmem:[#allocation7 + $0x3f8] sm:$0xff]
    %v2180 = vld [vmem:[#allocation7 + $0x400] sm:$0xff]
    %v2181 = vld [vmem:[#allocation7 + $0x408] sm:$0xff]
    %v2182 = vld [vmem:[#allocation7 + $0x410] sm:$0xff]
    %v2183 = vld [vmem:[#allocation7 + $0x418] sm:$0xff]
    %v2184 = vld [vmem:[#allocation7 + $0x420] sm:$0xff]
    %v2185 = vld [vmem:[#allocation7 + $0x428] sm:$0xff]
    %v2186 = vld [vmem:[#allocation7 + $0x430] sm:$0xff]
    %v2187 = vld [vmem:[#allocation7 + $0x438] sm:$0xff]
    %v2188 = vld [vmem:[#allocation7 + $0x440] sm:$0xff]
    %v2189 = vld [vmem:[#allocation7 + $0x448] sm:$0xff]
    %v2190 = vld [vmem:[#allocation7 + $0x450] sm:$0xff]
    %v2191 = vld [vmem:[#allocation7 + $0x458] sm:$0xff]
    %v2192 = vld [vmem:[#allocation7 + $0x460] sm:$0xff]
    %v2193 = vld [vmem:[#allocation7 + $0x468] sm:$0xff]
    %v2194 = vld [vmem:[#allocation7 + $0x470] sm:$0xff]
    %v2195 = vld [vmem:[#allocation7 + $0x478] sm:$0xff]
    %v2196 = vld [vmem:[#allocation7 + $0x480] sm:$0xff]
    %v2197 = vld [vmem:[#allocation7 + $0x488] sm:$0xff]
    %v2198 = vld [vmem:[#allocation7 + $0x490] sm:$0xff]
    %v2199 = vld [vmem:[#allocation7 + $0x498] sm:$0xff]
    %v2200 = vld [vmem:[#allocation7 + $0x4a0] sm:$0xff]
    %v2201 = vld [vmem:[#allocation7 + $0x4a8] sm:$0xff]
    %v2202 = vld [vmem:[#allocation7 + $0x4b0] sm:$0xff]
    %v2203 = vld [vmem:[#allocation7 + $0x4b8] sm:$0xff]
    %v2204 = vld [vmem:[#allocation7 + $0x4c0] sm:$0xff]
    %v2205 = vld [vmem:[#allocation7 + $0x4c8] sm:$0xff]
    %v2206 = vld [vmem:[#allocation7 + $0x4d0] sm:$0xff]
    %v2207 = vld [vmem:[#allocation7 + $0x4d8] sm:$0xff]
    %v2208 = vld [vmem:[#allocation7 + $0x4e0] sm:$0xff]
    %v2209 = vld [vmem:[#allocation7 + $0x4e8] sm:$0xff]
    %v2210 = vld [vmem:[#allocation7 + $0x4f0] sm:$0xff]
    %v2211 = vld [vmem:[#allocation7 + $0x4f8] sm:$0xff]
    %v2212 = vld [vmem:[#allocation7 + $0x500] sm:$0xff]
    %v2213 = vld [vmem:[#allocation7 + $0x508] sm:$0xff]
    %v2214 = vld [vmem:[#allocation7 + $0x510] sm:$0xff]
    %v2215 = vld [vmem:[#allocation7 + $0x518] sm:$0xff]
    %v2216 = vld [vmem:[#allocation7 + $0x520] sm:$0xff]
    %v2217 = vld [vmem:[#allocation7 + $0x528] sm:$0xff]
    %v2218 = vld [vmem:[#allocation7 + $0x530] sm:$0xff]
    %v2219 = vld [vmem:[#allocation7 + $0x538] sm:$0xff]
    %v2220 = vld [vmem:[#allocation7 + $0x540] sm:$0xff]
    %v2221 = vld [vmem:[#allocation7 + $0x548] sm:$0xff]
    %v2222 = vld [vmem:[#allocation7 + $0x550] sm:$0xff]
    %v2223 = vld [vmem:[#allocation7 + $0x558] sm:$0xff]
    %v2224 = vld [vmem:[#allocation7 + $0x560] sm:$0xff]
    %v2225 = vld [vmem:[#allocation7 + $0x568] sm:$0xff]
    %v2226 = vld [vmem:[#allocation7 + $0x570] sm:$0xff]
    %v2227 = vld [vmem:[#allocation7 + $0x578] sm:$0xff]
    %v2228 = vld [vmem:[#allocation7 + $0x580] sm:$0xff]
    %v2229 = vld [vmem:[#allocation7 + $0x588] sm:$0xff]
    %v2230 = vld [vmem:[#allocation7 + $0x590] sm:$0xff]
    %v2231 = vld [vmem:[#allocation7 + $0x598] sm:$0xff]
    %v2232 = vld [vmem:[#allocation7 + $0x5a0] sm:$0xff]
    %v2233 = vld [vmem:[#allocation7 + $0x5a8] sm:$0xff]
    %v2234 = vld [vmem:[#allocation7 + $0x5b0] sm:$0xff]
    %v2235 = vld [vmem:[#allocation7 + $0x5b8] sm:$0xff]
    %v2236 = vld [vmem:[#allocation7 + $0x5c0] sm:$0xff]
    %v2237 = vld [vmem:[#allocation7 + $0x5c8] sm:$0xff]
    %v2238 = vld [vmem:[#allocation7 + $0x5d0] sm:$0xff]
    %v2239 = vld [vmem:[#allocation7 + $0x5d8] sm:$0xff]
    %v2240 = vld [vmem:[#allocation7 + $0x5e0] sm:$0xff]
    %v2241 = vld [vmem:[#allocation7 + $0x5e8] sm:$0xff]
    %v2242 = vld [vmem:[#allocation7 + $0x5f0] sm:$0xff]
    %v2243 = vld [vmem:[#allocation7 + $0x5f8] sm:$0xff]
    %v2244 = vld [vmem:[#allocation7 + $0x600] sm:$0xff]
    %v2245 = vld [vmem:[#allocation7 + $0x608] sm:$0xff]
    %v2246 = vld [vmem:[#allocation7 + $0x610] sm:$0xff]
    %v2247 = vld [vmem:[#allocation7 + $0x618] sm:$0xff]
    %v2248 = vld [vmem:[#allocation7 + $0x620] sm:$0xff]
    %v2249 = vld [vmem:[#allocation7 + $0x628] sm:$0xff]
    %v2250 = vld [vmem:[#allocation7 + $0x630] sm:$0xff]
    %v2251 = vld [vmem:[#allocation7 + $0x638] sm:$0xff]
    %v2252 = vld [vmem:[#allocation7 + $0x640] sm:$0xff]
    %v2253 = vld [vmem:[#allocation7 + $0x648] sm:$0xff]
    %v2254 = vld [vmem:[#allocation7 + $0x650] sm:$0xff]
    %v2255 = vld [vmem:[#allocation7 + $0x658] sm:$0xff]
    %v2256 = vld [vmem:[#allocation7 + $0x660] sm:$0xff]
    %v2257 = vld [vmem:[#allocation7 + $0x668] sm:$0xff]
    %v2258 = vld [vmem:[#allocation7 + $0x670] sm:$0xff]
    %v2259 = vld [vmem:[#allocation7 + $0x678] sm:$0xff]
    %v2260 = vld [vmem:[#allocation7 + $0x680] sm:$0xff]
    %v2261 = vld [vmem:[#allocation7 + $0x688] sm:$0xff]
    %v2262 = vld [vmem:[#allocation7 + $0x690] sm:$0xff]
    %v2263 = vld [vmem:[#allocation7 + $0x698] sm:$0xff]
    %v2264 = vld [vmem:[#allocation7 + $0x6a0] sm:$0xff]
    %v2265 = vld [vmem:[#allocation7 + $0x6a8] sm:$0xff]
    %v2266 = vld [vmem:[#allocation7 + $0x6b0] sm:$0xff]
    %v2267 = vld [vmem:[#allocation7 + $0x6b8] sm:$0xff]
    %v2268 = vld [vmem:[#allocation7 + $0x6c0] sm:$0xff]
    %v2269 = vld [vmem:[#allocation7 + $0x6c8] sm:$0xff]
    %v2270 = vld [vmem:[#allocation7 + $0x6d0] sm:$0xff]
    %v2271 = vld [vmem:[#allocation7 + $0x6d8] sm:$0xff]
    %v2272 = vld [vmem:[#allocation7 + $0x6e0] sm:$0xff]
    %v2273 = vld [vmem:[#allocation7 + $0x6e8] sm:$0xff]
    %v2274 = vld [vmem:[#allocation7 + $0x6f0] sm:$0xff]
    %v2275 = vld [vmem:[#allocation7 + $0x6f8] sm:$0xff]
    %v2276 = vld [vmem:[#allocation7 + $0x700] sm:$0xff]
    %v2277 = vld [vmem:[#allocation7 + $0x708] sm:$0xff]
    %v2278 = vld [vmem:[#allocation7 + $0x710] sm:$0xff]
    %v2279 = vld [vmem:[#allocation7 + $0x718] sm:$0xff]
    %v2280 = vld [vmem:[#allocation7 + $0x720] sm:$0xff]
    %v2281 = vld [vmem:[#allocation7 + $0x728] sm:$0xff]
    %v2282 = vld [vmem:[#allocation7 + $0x730] sm:$0xff]
    %v2283 = vld [vmem:[#allocation7 + $0x738] sm:$0xff]
    %v2284 = vld [vmem:[#allocation7 + $0x740] sm:$0xff]
    %v2285 = vld [vmem:[#allocation7 + $0x748] sm:$0xff]
    %v2286 = vld [vmem:[#allocation7 + $0x750] sm:$0xff]
    %v2287 = vld [vmem:[#allocation7 + $0x758] sm:$0xff]
    %v2288 = vld [vmem:[#allocation7 + $0x760] sm:$0xff]
    %v2289 = vld [vmem:[#allocation7 + $0x768] sm:$0xff]
    %v2290 = vld [vmem:[#allocation7 + $0x770] sm:$0xff]
    %v2291 = vld [vmem:[#allocation7 + $0x778] sm:$0xff]
    %v2292 = vld [vmem:[#allocation7 + $0x780] sm:$0xff]
    %v2293 = vld [vmem:[#allocation7 + $0x788] sm:$0xff]
    %v2294 = vld [vmem:[#allocation7 + $0x790] sm:$0xff]
    %v2295 = vld [vmem:[#allocation7 + $0x798] sm:$0xff]
    %v2296 = vld [vmem:[#allocation7 + $0x7a0] sm:$0xff]
    %v2297 = vld [vmem:[#allocation7 + $0x7a8] sm:$0xff]
    %v2298 = vld [vmem:[#allocation7 + $0x7b0] sm:$0xff]
    %v2299 = vld [vmem:[#allocation7 + $0x7b8] sm:$0xff]
    %v2300 = vld [vmem:[#allocation7 + $0x7c0] sm:$0xff]
    %v2301 = vld [vmem:[#allocation7 + $0x7c8] sm:$0xff]
    %v2302 = vld [vmem:[#allocation7 + $0x7d0] sm:$0xff]
    %v2303 = vld [vmem:[#allocation7 + $0x7d8] sm:$0xff]
    %v2304 = vld [vmem:[#allocation7 + $0x7e0] sm:$0xff]
    %v2305 = vld [vmem:[#allocation7 + $0x7e8] sm:$0xff]
    %v2306 = vld [vmem:[#allocation7 + $0x7f0] sm:$0xff]
    %v2307 = vld [vmem:[#allocation7 + $0x7f8] sm:$0xff]
    %v2308 = vld [vmem:[%s4] sm:$0xff]
    %v2310 = vlaneseq
    %v2311 = vshrl.u32 %v2310, 7
    %v2312 = vsub.s32 0, %v2311
    %v2313 = vrot.slane %v2308, %v2312
    %v2314 = vlaneseq
    %v2315 = vshrl.u32 %v2314, 7
    %v2316 = vsub.s32 1, %v2315
    %v2317 = vrot.slane %v2308, %v2316
    %v2318 = vlaneseq
    %v2319 = vshrl.u32 %v2318, 7
    %v2320 = vsub.s32 2, %v2319
    %v2321 = vrot.slane %v2308, %v2320
    %v2322 = vlaneseq
    %v2323 = vshrl.u32 %v2322, 7
    %v2324 = vsub.s32 3, %v2323
    %v2325 = vrot.slane %v2308, %v2324
    %v2326 = vlaneseq
    %v2327 = vshrl.u32 %v2326, 7
    %v2328 = vsub.s32 4, %v2327
    %v2329 = vrot.slane %v2308, %v2328
    %v2330 = vlaneseq
    %v2331 = vshrl.u32 %v2330, 7
    %v2332 = vsub.s32 5, %v2331
    %v2333 = vrot.slane %v2308, %v2332
    %v2334 = vlaneseq
    %v2335 = vshrl.u32 %v2334, 7
    %v2336 = vsub.s32 6, %v2335
    %v2337 = vrot.slane %v2308, %v2336
    %v2338 = vlaneseq
    %v2339 = vshrl.u32 %v2338, 7
    %v2340 = vsub.s32 7, %v2339
    %v2341 = vrot.slane %v2308, %v2340
    %v2606 = vunpack.c.l.b16 %v2052
    %v2607 = vunpack.c.h.b16 %v2052
    %v2608 = vunpack.c.l.b16 %v2053
    %v2609 = vunpack.c.h.b16 %v2053
    %v2610 = vunpack.c.l.b16 %v2054
    %v2611 = vunpack.c.h.b16 %v2054
    %v2612 = vunpack.c.l.b16 %v2055
    %v2613 = vunpack.c.h.b16 %v2055
    %v2614 = vunpack.c.l.b16 %v2056
    %v2615 = vunpack.c.h.b16 %v2056
    %v2616 = vunpack.c.l.b16 %v2057
    %v2617 = vunpack.c.h.b16 %v2057
    %v2618 = vunpack.c.l.b16 %v2058
    %v2619 = vunpack.c.h.b16 %v2058
    %v2620 = vunpack.c.l.b16 %v2059
    %v2621 = vunpack.c.h.b16 %v2059
    %v2622 = vunpack.c.l.b16 %v2060
    %v2623 = vunpack.c.h.b16 %v2060
    %v2624 = vunpack.c.l.b16 %v2061
    %v2625 = vunpack.c.h.b16 %v2061
    %v2626 = vunpack.c.l.b16 %v2062
    %v2627 = vunpack.c.h.b16 %v2062
    %v2628 = vunpack.c.l.b16 %v2063
    %v2629 = vunpack.c.h.b16 %v2063
    %v2630 = vunpack.c.l.b16 %v2064
    %v2631 = vunpack.c.h.b16 %v2064
    %v2632 = vunpack.c.l.b16 %v2065
    %v2633 = vunpack.c.h.b16 %v2065
    %v2634 = vunpack.c.l.b16 %v2066
    %v2635 = vunpack.c.h.b16 %v2066
    %v2636 = vunpack.c.l.b16 %v2067
    %v2637 = vunpack.c.h.b16 %v2067
    %v2638 = vunpack.c.l.b16 %v2068
    %v2639 = vunpack.c.h.b16 %v2068
    %v2640 = vunpack.c.l.b16 %v2069
    %v2641 = vunpack.c.h.b16 %v2069
    %v2642 = vunpack.c.l.b16 %v2070
    %v2643 = vunpack.c.h.b16 %v2070
    %v2644 = vunpack.c.l.b16 %v2071
    %v2645 = vunpack.c.h.b16 %v2071
    %v2646 = vunpack.c.l.b16 %v2072
    %v2647 = vunpack.c.h.b16 %v2072
    %v2648 = vunpack.c.l.b16 %v2073
    %v2649 = vunpack.c.h.b16 %v2073
    %v2650 = vunpack.c.l.b16 %v2074
    %v2651 = vunpack.c.h.b16 %v2074
    %v2652 = vunpack.c.l.b16 %v2075
    %v2653 = vunpack.c.h.b16 %v2075
    %v2654 = vunpack.c.l.b16 %v2076
    %v2655 = vunpack.c.h.b16 %v2076
    %v2656 = vunpack.c.l.b16 %v2077
    %v2657 = vunpack.c.h.b16 %v2077
    %v2658 = vunpack.c.l.b16 %v2078
    %v2659 = vunpack.c.h.b16 %v2078
    %v2660 = vunpack.c.l.b16 %v2079
    %v2661 = vunpack.c.h.b16 %v2079
    %v2662 = vunpack.c.l.b16 %v2080
    %v2663 = vunpack.c.h.b16 %v2080
    %v2664 = vunpack.c.l.b16 %v2081
    %v2665 = vunpack.c.h.b16 %v2081
    %v2666 = vunpack.c.l.b16 %v2082
    %v2667 = vunpack.c.h.b16 %v2082
    %v2668 = vunpack.c.l.b16 %v2083
    %v2669 = vunpack.c.h.b16 %v2083
    %v2670 = vunpack.c.l.b16 %v2084
    %v2671 = vunpack.c.h.b16 %v2084
    %v2672 = vunpack.c.l.b16 %v2085
    %v2673 = vunpack.c.h.b16 %v2085
    %v2674 = vunpack.c.l.b16 %v2086
    %v2675 = vunpack.c.h.b16 %v2086
    %v2676 = vunpack.c.l.b16 %v2087
    %v2677 = vunpack.c.h.b16 %v2087
    %v2678 = vunpack.c.l.b16 %v2088
    %v2679 = vunpack.c.h.b16 %v2088
    %v2680 = vunpack.c.l.b16 %v2089
    %v2681 = vunpack.c.h.b16 %v2089
    %v2682 = vunpack.c.l.b16 %v2090
    %v2683 = vunpack.c.h.b16 %v2090
    %v2684 = vunpack.c.l.b16 %v2091
    %v2685 = vunpack.c.h.b16 %v2091
    %v2686 = vunpack.c.l.b16 %v2092
    %v2687 = vunpack.c.h.b16 %v2092
    %v2688 = vunpack.c.l.b16 %v2093
    %v2689 = vunpack.c.h.b16 %v2093
    %v2690 = vunpack.c.l.b16 %v2094
    %v2691 = vunpack.c.h.b16 %v2094
    %v2692 = vunpack.c.l.b16 %v2095
    %v2693 = vunpack.c.h.b16 %v2095
    %v2694 = vunpack.c.l.b16 %v2096
    %v2695 = vunpack.c.h.b16 %v2096
    %v2696 = vunpack.c.l.b16 %v2097
    %v2697 = vunpack.c.h.b16 %v2097
    %v2698 = vunpack.c.l.b16 %v2098
    %v2699 = vunpack.c.h.b16 %v2098
    %v2700 = vunpack.c.l.b16 %v2099
    %v2701 = vunpack.c.h.b16 %v2099
    %v2702 = vunpack.c.l.b16 %v2100
    %v2703 = vunpack.c.h.b16 %v2100
    %v2704 = vunpack.c.l.b16 %v2101
    %v2705 = vunpack.c.h.b16 %v2101
    %v2706 = vunpack.c.l.b16 %v2102
    %v2707 = vunpack.c.h.b16 %v2102
    %v2708 = vunpack.c.l.b16 %v2103
    %v2709 = vunpack.c.h.b16 %v2103
    %v2710 = vunpack.c.l.b16 %v2104
    %v2711 = vunpack.c.h.b16 %v2104
    %v2712 = vunpack.c.l.b16 %v2105
    %v2713 = vunpack.c.h.b16 %v2105
    %v2714 = vunpack.c.l.b16 %v2106
    %v2715 = vunpack.c.h.b16 %v2106
    %v2716 = vunpack.c.l.b16 %v2107
    %v2717 = vunpack.c.h.b16 %v2107
    %v2718 = vunpack.c.l.b16 %v2108
    %v2719 = vunpack.c.h.b16 %v2108
    %v2720 = vunpack.c.l.b16 %v2109
    %v2721 = vunpack.c.h.b16 %v2109
    %v2722 = vunpack.c.l.b16 %v2110
    %v2723 = vunpack.c.h.b16 %v2110
    %v2724 = vunpack.c.l.b16 %v2111
    %v2725 = vunpack.c.h.b16 %v2111
    %v2726 = vunpack.c.l.b16 %v2112
    %v2727 = vunpack.c.h.b16 %v2112
    %v2728 = vunpack.c.l.b16 %v2113
    %v2729 = vunpack.c.h.b16 %v2113
    %v2730 = vunpack.c.l.b16 %v2114
    %v2731 = vunpack.c.h.b16 %v2114
    %v2732 = vunpack.c.l.b16 %v2115
    %v2733 = vunpack.c.h.b16 %v2115
    %v2734 = vunpack.c.l.b16 %v2116
    %v2735 = vunpack.c.h.b16 %v2116
    %v2736 = vunpack.c.l.b16 %v2117
    %v2737 = vunpack.c.h.b16 %v2117
    %v2738 = vunpack.c.l.b16 %v2118
    %v2739 = vunpack.c.h.b16 %v2118
    %v2740 = vunpack.c.l.b16 %v2119
    %v2741 = vunpack.c.h.b16 %v2119
    %v2742 = vunpack.c.l.b16 %v2120
    %v2743 = vunpack.c.h.b16 %v2120
    %v2744 = vunpack.c.l.b16 %v2121
    %v2745 = vunpack.c.h.b16 %v2121
    %v2746 = vunpack.c.l.b16 %v2122
    %v2747 = vunpack.c.h.b16 %v2122
    %v2748 = vunpack.c.l.b16 %v2123
    %v2749 = vunpack.c.h.b16 %v2123
    %v2750 = vunpack.c.l.b16 %v2124
    %v2751 = vunpack.c.h.b16 %v2124
    %v2752 = vunpack.c.l.b16 %v2125
    %v2753 = vunpack.c.h.b16 %v2125
    %v2754 = vunpack.c.l.b16 %v2126
    %v2755 = vunpack.c.h.b16 %v2126
    %v2756 = vunpack.c.l.b16 %v2127
    %v2757 = vunpack.c.h.b16 %v2127
    %v2758 = vunpack.c.l.b16 %v2128
    %v2759 = vunpack.c.h.b16 %v2128
    %v2760 = vunpack.c.l.b16 %v2129
    %v2761 = vunpack.c.h.b16 %v2129
    %v2762 = vunpack.c.l.b16 %v2130
    %v2763 = vunpack.c.h.b16 %v2130
    %v2764 = vunpack.c.l.b16 %v2131
    %v2765 = vunpack.c.h.b16 %v2131
    %v2766 = vunpack.c.l.b16 %v2132
    %v2767 = vunpack.c.h.b16 %v2132
    %v2768 = vunpack.c.l.b16 %v2133
    %v2769 = vunpack.c.h.b16 %v2133
    %v2770 = vunpack.c.l.b16 %v2134
    %v2771 = vunpack.c.h.b16 %v2134
    %v2772 = vunpack.c.l.b16 %v2135
    %v2773 = vunpack.c.h.b16 %v2135
    %v2774 = vunpack.c.l.b16 %v2136
    %v2775 = vunpack.c.h.b16 %v2136
    %v2776 = vunpack.c.l.b16 %v2137
    %v2777 = vunpack.c.h.b16 %v2137
    %v2778 = vunpack.c.l.b16 %v2138
    %v2779 = vunpack.c.h.b16 %v2138
    %v2780 = vunpack.c.l.b16 %v2139
    %v2781 = vunpack.c.h.b16 %v2139
    %v2782 = vunpack.c.l.b16 %v2140
    %v2783 = vunpack.c.h.b16 %v2140
    %v2784 = vunpack.c.l.b16 %v2141
    %v2785 = vunpack.c.h.b16 %v2141
    %v2786 = vunpack.c.l.b16 %v2142
    %v2787 = vunpack.c.h.b16 %v2142
    %v2788 = vunpack.c.l.b16 %v2143
    %v2789 = vunpack.c.h.b16 %v2143
    %v2790 = vunpack.c.l.b16 %v2144
    %v2791 = vunpack.c.h.b16 %v2144
    %v2792 = vunpack.c.l.b16 %v2145
    %v2793 = vunpack.c.h.b16 %v2145
    %v2794 = vunpack.c.l.b16 %v2146
    %v2795 = vunpack.c.h.b16 %v2146
    %v2796 = vunpack.c.l.b16 %v2147
    %v2797 = vunpack.c.h.b16 %v2147
    %v2798 = vunpack.c.l.b16 %v2148
    %v2799 = vunpack.c.h.b16 %v2148
    %v2800 = vunpack.c.l.b16 %v2149
    %v2801 = vunpack.c.h.b16 %v2149
    %v2802 = vunpack.c.l.b16 %v2150
    %v2803 = vunpack.c.h.b16 %v2150
    %v2804 = vunpack.c.l.b16 %v2151
    %v2805 = vunpack.c.h.b16 %v2151
    %v2806 = vunpack.c.l.b16 %v2152
    %v2807 = vunpack.c.h.b16 %v2152
    %v2808 = vunpack.c.l.b16 %v2153
    %v2809 = vunpack.c.h.b16 %v2153
    %v2810 = vunpack.c.l.b16 %v2154
    %v2811 = vunpack.c.h.b16 %v2154
    %v2812 = vunpack.c.l.b16 %v2155
    %v2813 = vunpack.c.h.b16 %v2155
    %v2814 = vunpack.c.l.b16 %v2156
    %v2815 = vunpack.c.h.b16 %v2156
    %v2816 = vunpack.c.l.b16 %v2157
    %v2817 = vunpack.c.h.b16 %v2157
    %v2818 = vunpack.c.l.b16 %v2158
    %v2819 = vunpack.c.h.b16 %v2158
    %v2820 = vunpack.c.l.b16 %v2159
    %v2821 = vunpack.c.h.b16 %v2159
    %v2822 = vunpack.c.l.b16 %v2160
    %v2823 = vunpack.c.h.b16 %v2160
    %v2824 = vunpack.c.l.b16 %v2161
    %v2825 = vunpack.c.h.b16 %v2161
    %v2826 = vunpack.c.l.b16 %v2162
    %v2827 = vunpack.c.h.b16 %v2162
    %v2828 = vunpack.c.l.b16 %v2163
    %v2829 = vunpack.c.h.b16 %v2163
    %v2830 = vunpack.c.l.b16 %v2164
    %v2831 = vunpack.c.h.b16 %v2164
    %v2832 = vunpack.c.l.b16 %v2165
    %v2833 = vunpack.c.h.b16 %v2165
    %v2834 = vunpack.c.l.b16 %v2166
    %v2835 = vunpack.c.h.b16 %v2166
    %v2836 = vunpack.c.l.b16 %v2167
    %v2837 = vunpack.c.h.b16 %v2167
    %v2838 = vunpack.c.l.b16 %v2168
    %v2839 = vunpack.c.h.b16 %v2168
    %v2840 = vunpack.c.l.b16 %v2169
    %v2841 = vunpack.c.h.b16 %v2169
    %v2842 = vunpack.c.l.b16 %v2170
    %v2843 = vunpack.c.h.b16 %v2170
    %v2844 = vunpack.c.l.b16 %v2171
    %v2845 = vunpack.c.h.b16 %v2171
    %v2846 = vunpack.c.l.b16 %v2172
    %v2847 = vunpack.c.h.b16 %v2172
    %v2848 = vunpack.c.l.b16 %v2173
    %v2849 = vunpack.c.h.b16 %v2173
    %v2850 = vunpack.c.l.b16 %v2174
    %v2851 = vunpack.c.h.b16 %v2174
    %v2852 = vunpack.c.l.b16 %v2175
    %v2853 = vunpack.c.h.b16 %v2175
    %v2854 = vunpack.c.l.b16 %v2176
    %v2855 = vunpack.c.h.b16 %v2176
    %v2856 = vunpack.c.l.b16 %v2177
    %v2857 = vunpack.c.h.b16 %v2177
    %v2858 = vunpack.c.l.b16 %v2178
    %v2859 = vunpack.c.h.b16 %v2178
    %v2860 = vunpack.c.l.b16 %v2179
    %v2861 = vunpack.c.h.b16 %v2179
    %v2862 = vunpack.c.l.b16 %v2180
    %v2863 = vunpack.c.h.b16 %v2180
    %v2864 = vunpack.c.l.b16 %v2181
    %v2865 = vunpack.c.h.b16 %v2181
    %v2866 = vunpack.c.l.b16 %v2182
    %v2867 = vunpack.c.h.b16 %v2182
    %v2868 = vunpack.c.l.b16 %v2183
    %v2869 = vunpack.c.h.b16 %v2183
    %v2870 = vunpack.c.l.b16 %v2184
    %v2871 = vunpack.c.h.b16 %v2184
    %v2872 = vunpack.c.l.b16 %v2185
    %v2873 = vunpack.c.h.b16 %v2185
    %v2874 = vunpack.c.l.b16 %v2186
    %v2875 = vunpack.c.h.b16 %v2186
    %v2876 = vunpack.c.l.b16 %v2187
    %v2877 = vunpack.c.h.b16 %v2187
    %v2878 = vunpack.c.l.b16 %v2188
    %v2879 = vunpack.c.h.b16 %v2188
    %v2880 = vunpack.c.l.b16 %v2189
    %v2881 = vunpack.c.h.b16 %v2189
    %v2882 = vunpack.c.l.b16 %v2190
    %v2883 = vunpack.c.h.b16 %v2190
    %v2884 = vunpack.c.l.b16 %v2191
    %v2885 = vunpack.c.h.b16 %v2191
    %v2886 = vunpack.c.l.b16 %v2192
    %v2887 = vunpack.c.h.b16 %v2192
    %v2888 = vunpack.c.l.b16 %v2193
    %v2889 = vunpack.c.h.b16 %v2193
    %v2890 = vunpack.c.l.b16 %v2194
    %v2891 = vunpack.c.h.b16 %v2194
    %v2892 = vunpack.c.l.b16 %v2195
    %v2893 = vunpack.c.h.b16 %v2195
    %v2894 = vunpack.c.l.b16 %v2196
    %v2895 = vunpack.c.h.b16 %v2196
    %v2896 = vunpack.c.l.b16 %v2197
    %v2897 = vunpack.c.h.b16 %v2197
    %v2898 = vunpack.c.l.b16 %v2198
    %v2899 = vunpack.c.h.b16 %v2198
    %v2900 = vunpack.c.l.b16 %v2199
    %v2901 = vunpack.c.h.b16 %v2199
    %v2902 = vunpack.c.l.b16 %v2200
    %v2903 = vunpack.c.h.b16 %v2200
    %v2904 = vunpack.c.l.b16 %v2201
    %v2905 = vunpack.c.h.b16 %v2201
    %v2906 = vunpack.c.l.b16 %v2202
    %v2907 = vunpack.c.h.b16 %v2202
    %v2908 = vunpack.c.l.b16 %v2203
    %v2909 = vunpack.c.h.b16 %v2203
    %v2910 = vunpack.c.l.b16 %v2204
    %v2911 = vunpack.c.h.b16 %v2204
    %v2912 = vunpack.c.l.b16 %v2205
    %v2913 = vunpack.c.h.b16 %v2205
    %v2914 = vunpack.c.l.b16 %v2206
    %v2915 = vunpack.c.h.b16 %v2206
    %v2916 = vunpack.c.l.b16 %v2207
    %v2917 = vunpack.c.h.b16 %v2207
    %v2918 = vunpack.c.l.b16 %v2208
    %v2919 = vunpack.c.h.b16 %v2208
    %v2920 = vunpack.c.l.b16 %v2209
    %v2921 = vunpack.c.h.b16 %v2209
    %v2922 = vunpack.c.l.b16 %v2210
    %v2923 = vunpack.c.h.b16 %v2210
    %v2924 = vunpack.c.l.b16 %v2211
    %v2925 = vunpack.c.h.b16 %v2211
    %v2926 = vunpack.c.l.b16 %v2212
    %v2927 = vunpack.c.h.b16 %v2212
    %v2928 = vunpack.c.l.b16 %v2213
    %v2929 = vunpack.c.h.b16 %v2213
    %v2930 = vunpack.c.l.b16 %v2214
    %v2931 = vunpack.c.h.b16 %v2214
    %v2932 = vunpack.c.l.b16 %v2215
    %v2933 = vunpack.c.h.b16 %v2215
    %v2934 = vunpack.c.l.b16 %v2216
    %v2935 = vunpack.c.h.b16 %v2216
    %v2936 = vunpack.c.l.b16 %v2217
    %v2937 = vunpack.c.h.b16 %v2217
    %v2938 = vunpack.c.l.b16 %v2218
    %v2939 = vunpack.c.h.b16 %v2218
    %v2940 = vunpack.c.l.b16 %v2219
    %v2941 = vunpack.c.h.b16 %v2219
    %v2942 = vunpack.c.l.b16 %v2220
    %v2943 = vunpack.c.h.b16 %v2220
    %v2944 = vunpack.c.l.b16 %v2221
    %v2945 = vunpack.c.h.b16 %v2221
    %v2946 = vunpack.c.l.b16 %v2222
    %v2947 = vunpack.c.h.b16 %v2222
    %v2948 = vunpack.c.l.b16 %v2223
    %v2949 = vunpack.c.h.b16 %v2223
    %v2950 = vunpack.c.l.b16 %v2224
    %v2951 = vunpack.c.h.b16 %v2224
    %v2952 = vunpack.c.l.b16 %v2225
    %v2953 = vunpack.c.h.b16 %v2225
    %v2954 = vunpack.c.l.b16 %v2226
    %v2955 = vunpack.c.h.b16 %v2226
    %v2956 = vunpack.c.l.b16 %v2227
    %v2957 = vunpack.c.h.b16 %v2227
    %v2958 = vunpack.c.l.b16 %v2228
    %v2959 = vunpack.c.h.b16 %v2228
    %v2960 = vunpack.c.l.b16 %v2229
    %v2961 = vunpack.c.h.b16 %v2229
    %v2962 = vunpack.c.l.b16 %v2230
    %v2963 = vunpack.c.h.b16 %v2230
    %v2964 = vunpack.c.l.b16 %v2231
    %v2965 = vunpack.c.h.b16 %v2231
    %v2966 = vunpack.c.l.b16 %v2232
    %v2967 = vunpack.c.h.b16 %v2232
    %v2968 = vunpack.c.l.b16 %v2233
    %v2969 = vunpack.c.h.b16 %v2233
    %v2970 = vunpack.c.l.b16 %v2234
    %v2971 = vunpack.c.h.b16 %v2234
    %v2972 = vunpack.c.l.b16 %v2235
    %v2973 = vunpack.c.h.b16 %v2235
    %v2974 = vunpack.c.l.b16 %v2236
    %v2975 = vunpack.c.h.b16 %v2236
    %v2976 = vunpack.c.l.b16 %v2237
    %v2977 = vunpack.c.h.b16 %v2237
    %v2978 = vunpack.c.l.b16 %v2238
    %v2979 = vunpack.c.h.b16 %v2238
    %v2980 = vunpack.c.l.b16 %v2239
    %v2981 = vunpack.c.h.b16 %v2239
    %v2982 = vunpack.c.l.b16 %v2240
    %v2983 = vunpack.c.h.b16 %v2240
    %v2984 = vunpack.c.l.b16 %v2241
    %v2985 = vunpack.c.h.b16 %v2241
    %v2986 = vunpack.c.l.b16 %v2242
    %v2987 = vunpack.c.h.b16 %v2242
    %v2988 = vunpack.c.l.b16 %v2243
    %v2989 = vunpack.c.h.b16 %v2243
    %v2990 = vunpack.c.l.b16 %v2244
    %v2991 = vunpack.c.h.b16 %v2244
    %v2992 = vunpack.c.l.b16 %v2245
    %v2993 = vunpack.c.h.b16 %v2245
    %v2994 = vunpack.c.l.b16 %v2246
    %v2995 = vunpack.c.h.b16 %v2246
    %v2996 = vunpack.c.l.b16 %v2247
    %v2997 = vunpack.c.h.b16 %v2247
    %v2998 = vunpack.c.l.b16 %v2248
    %v2999 = vunpack.c.h.b16 %v2248
    %v3000 = vunpack.c.l.b16 %v2249
    %v3001 = vunpack.c.h.b16 %v2249
    %v3002 = vunpack.c.l.b16 %v2250
    %v3003 = vunpack.c.h.b16 %v2250
    %v3004 = vunpack.c.l.b16 %v2251
    %v3005 = vunpack.c.h.b16 %v2251
    %v3006 = vunpack.c.l.b16 %v2252
    %v3007 = vunpack.c.h.b16 %v2252
    %v3008 = vunpack.c.l.b16 %v2253
    %v3009 = vunpack.c.h.b16 %v2253
    %v3010 = vunpack.c.l.b16 %v2254
    %v3011 = vunpack.c.h.b16 %v2254
    %v3012 = vunpack.c.l.b16 %v2255
    %v3013 = vunpack.c.h.b16 %v2255
    %v3014 = vunpack.c.l.b16 %v2256
    %v3015 = vunpack.c.h.b16 %v2256
    %v3016 = vunpack.c.l.b16 %v2257
    %v3017 = vunpack.c.h.b16 %v2257
    %v3018 = vunpack.c.l.b16 %v2258
    %v3019 = vunpack.c.h.b16 %v2258
    %v3020 = vunpack.c.l.b16 %v2259
    %v3021 = vunpack.c.h.b16 %v2259
    %v3022 = vunpack.c.l.b16 %v2260
    %v3023 = vunpack.c.h.b16 %v2260
    %v3024 = vunpack.c.l.b16 %v2261
    %v3025 = vunpack.c.h.b16 %v2261
    %v3026 = vunpack.c.l.b16 %v2262
    %v3027 = vunpack.c.h.b16 %v2262
    %v3028 = vunpack.c.l.b16 %v2263
    %v3029 = vunpack.c.h.b16 %v2263
    %v3030 = vunpack.c.l.b16 %v2264
    %v3031 = vunpack.c.h.b16 %v2264
    %v3032 = vunpack.c.l.b16 %v2265
    %v3033 = vunpack.c.h.b16 %v2265
    %v3034 = vunpack.c.l.b16 %v2266
    %v3035 = vunpack.c.h.b16 %v2266
    %v3036 = vunpack.c.l.b16 %v2267
    %v3037 = vunpack.c.h.b16 %v2267
    %v3038 = vunpack.c.l.b16 %v2268
    %v3039 = vunpack.c.h.b16 %v2268
    %v3040 = vunpack.c.l.b16 %v2269
    %v3041 = vunpack.c.h.b16 %v2269
    %v3042 = vunpack.c.l.b16 %v2270
    %v3043 = vunpack.c.h.b16 %v2270
    %v3044 = vunpack.c.l.b16 %v2271
    %v3045 = vunpack.c.h.b16 %v2271
    %v3046 = vunpack.c.l.b16 %v2272
    %v3047 = vunpack.c.h.b16 %v2272
    %v3048 = vunpack.c.l.b16 %v2273
    %v3049 = vunpack.c.h.b16 %v2273
    %v3050 = vunpack.c.l.b16 %v2274
    %v3051 = vunpack.c.h.b16 %v2274
    %v3052 = vunpack.c.l.b16 %v2275
    %v3053 = vunpack.c.h.b16 %v2275
    %v3054 = vunpack.c.l.b16 %v2276
    %v3055 = vunpack.c.h.b16 %v2276
    %v3056 = vunpack.c.l.b16 %v2277
    %v3057 = vunpack.c.h.b16 %v2277
    %v3058 = vunpack.c.l.b16 %v2278
    %v3059 = vunpack.c.h.b16 %v2278
    %v3060 = vunpack.c.l.b16 %v2279
    %v3061 = vunpack.c.h.b16 %v2279
    %v3062 = vunpack.c.l.b16 %v2280
    %v3063 = vunpack.c.h.b16 %v2280
    %v3064 = vunpack.c.l.b16 %v2281
    %v3065 = vunpack.c.h.b16 %v2281
    %v3066 = vunpack.c.l.b16 %v2282
    %v3067 = vunpack.c.h.b16 %v2282
    %v3068 = vunpack.c.l.b16 %v2283
    %v3069 = vunpack.c.h.b16 %v2283
    %v3070 = vunpack.c.l.b16 %v2284
    %v3071 = vunpack.c.h.b16 %v2284
    %v3072 = vunpack.c.l.b16 %v2285
    %v3073 = vunpack.c.h.b16 %v2285
    %v3074 = vunpack.c.l.b16 %v2286
    %v3075 = vunpack.c.h.b16 %v2286
    %v3076 = vunpack.c.l.b16 %v2287
    %v3077 = vunpack.c.h.b16 %v2287
    %v3078 = vunpack.c.l.b16 %v2288
    %v3079 = vunpack.c.h.b16 %v2288
    %v3080 = vunpack.c.l.b16 %v2289
    %v3081 = vunpack.c.h.b16 %v2289
    %v3082 = vunpack.c.l.b16 %v2290
    %v3083 = vunpack.c.h.b16 %v2290
    %v3084 = vunpack.c.l.b16 %v2291
    %v3085 = vunpack.c.h.b16 %v2291
    %v3086 = vunpack.c.l.b16 %v2292
    %v3087 = vunpack.c.h.b16 %v2292
    %v3088 = vunpack.c.l.b16 %v2293
    %v3089 = vunpack.c.h.b16 %v2293
    %v3090 = vunpack.c.l.b16 %v2294
    %v3091 = vunpack.c.h.b16 %v2294
    %v3092 = vunpack.c.l.b16 %v2295
    %v3093 = vunpack.c.h.b16 %v2295
    %v3094 = vunpack.c.l.b16 %v2296
    %v3095 = vunpack.c.h.b16 %v2296
    %v3096 = vunpack.c.l.b16 %v2297
    %v3097 = vunpack.c.h.b16 %v2297
    %v3098 = vunpack.c.l.b16 %v2298
    %v3099 = vunpack.c.h.b16 %v2298
    %v3100 = vunpack.c.l.b16 %v2299
    %v3101 = vunpack.c.h.b16 %v2299
    %v3102 = vunpack.c.l.b16 %v2300
    %v3103 = vunpack.c.h.b16 %v2300
    %v3104 = vunpack.c.l.b16 %v2301
    %v3105 = vunpack.c.h.b16 %v2301
    %v3106 = vunpack.c.l.b16 %v2302
    %v3107 = vunpack.c.h.b16 %v2302
    %v3108 = vunpack.c.l.b16 %v2303
    %v3109 = vunpack.c.h.b16 %v2303
    %v3110 = vunpack.c.l.b16 %v2304
    %v3111 = vunpack.c.h.b16 %v2304
    %v3112 = vunpack.c.l.b16 %v2305
    %v3113 = vunpack.c.h.b16 %v2305
    %v3114 = vunpack.c.l.b16 %v2306
    %v3115 = vunpack.c.h.b16 %v2306
    %v3116 = vunpack.c.l.b16 %v2307
    %v3117 = vunpack.c.h.b16 %v2307
    %v3118 = vpack.c.b16 %v2614, %v2606
    %v3119 = vpack.c.b16 %v2615, %v2607
    %v3120 = vpack.c.b16 %v2616, %v2608
    %v3121 = vpack.c.b16 %v2617, %v2609
    %v3122 = vpack.c.b16 %v2618, %v2610
    %v3123 = vpack.c.b16 %v2619, %v2611
    %v3124 = vpack.c.b16 %v2620, %v2612
    %v3125 = vpack.c.b16 %v2621, %v2613
    %v3126 = vpack.c.b16 %v2630, %v2622
    %v3127 = vpack.c.b16 %v2631, %v2623
    %v3128 = vpack.c.b16 %v2632, %v2624
    %v3129 = vpack.c.b16 %v2633, %v2625
    %v3130 = vpack.c.b16 %v2634, %v2626
    %v3131 = vpack.c.b16 %v2635, %v2627
    %v3132 = vpack.c.b16 %v2636, %v2628
    %v3133 = vpack.c.b16 %v2637, %v2629
    %v3134 = vpack.c.b16 %v2646, %v2638
    %v3135 = vpack.c.b16 %v2647, %v2639
    %v3136 = vpack.c.b16 %v2648, %v2640
    %v3137 = vpack.c.b16 %v2649, %v2641
    %v3138 = vpack.c.b16 %v2650, %v2642
    %v3139 = vpack.c.b16 %v2651, %v2643
    %v3140 = vpack.c.b16 %v2652, %v2644
    %v3141 = vpack.c.b16 %v2653, %v2645
    %v3142 = vpack.c.b16 %v2662, %v2654
    %v3143 = vpack.c.b16 %v2663, %v2655
    %v3144 = vpack.c.b16 %v2664, %v2656
    %v3145 = vpack.c.b16 %v2665, %v2657
    %v3146 = vpack.c.b16 %v2666, %v2658
    %v3147 = vpack.c.b16 %v2667, %v2659
    %v3148 = vpack.c.b16 %v2668, %v2660
    %v3149 = vpack.c.b16 %v2669, %v2661
    %v3150 = vpack.c.b16 %v2678, %v2670
    %v3151 = vpack.c.b16 %v2679, %v2671
    %v3152 = vpack.c.b16 %v2680, %v2672
    %v3153 = vpack.c.b16 %v2681, %v2673
    %v3154 = vpack.c.b16 %v2682, %v2674
    %v3155 = vpack.c.b16 %v2683, %v2675
    %v3156 = vpack.c.b16 %v2684, %v2676
    %v3157 = vpack.c.b16 %v2685, %v2677
    %v3158 = vpack.c.b16 %v2694, %v2686
    %v3159 = vpack.c.b16 %v2695, %v2687
    %v3160 = vpack.c.b16 %v2696, %v2688
    %v3161 = vpack.c.b16 %v2697, %v2689
    %v3162 = vpack.c.b16 %v2698, %v2690
    %v3163 = vpack.c.b16 %v2699, %v2691
    %v3164 = vpack.c.b16 %v2700, %v2692
    %v3165 = vpack.c.b16 %v2701, %v2693
    %v3166 = vpack.c.b16 %v2710, %v2702
    %v3167 = vpack.c.b16 %v2711, %v2703
    %v3168 = vpack.c.b16 %v2712, %v2704
    %v3169 = vpack.c.b16 %v2713, %v2705
    %v3170 = vpack.c.b16 %v2714, %v2706
    %v3171 = vpack.c.b16 %v2715, %v2707
    %v3172 = vpack.c.b16 %v2716, %v2708
    %v3173 = vpack.c.b16 %v2717, %v2709
    %v3174 = vpack.c.b16 %v2726, %v2718
    %v3175 = vpack.c.b16 %v2727, %v2719
    %v3176 = vpack.c.b16 %v2728, %v2720
    %v3177 = vpack.c.b16 %v2729, %v2721
    %v3178 = vpack.c.b16 %v2730, %v2722
    %v3179 = vpack.c.b16 %v2731, %v2723
    %v3180 = vpack.c.b16 %v2732, %v2724
    %v3181 = vpack.c.b16 %v2733, %v2725
    %v3182 = vpack.c.b16 %v2742, %v2734
    %v3183 = vpack.c.b16 %v2743, %v2735
    %v3184 = vpack.c.b16 %v2744, %v2736
    %v3185 = vpack.c.b16 %v2745, %v2737
    %v3186 = vpack.c.b16 %v2746, %v2738
    %v3187 = vpack.c.b16 %v2747, %v2739
    %v3188 = vpack.c.b16 %v2748, %v2740
    %v3189 = vpack.c.b16 %v2749, %v2741
    %v3190 = vpack.c.b16 %v2758, %v2750
    %v3191 = vpack.c.b16 %v2759, %v2751
    %v3192 = vpack.c.b16 %v2760, %v2752
    %v3193 = vpack.c.b16 %v2761, %v2753
    %v3194 = vpack.c.b16 %v2762, %v2754
    %v3195 = vpack.c.b16 %v2763, %v2755
    %v3196 = vpack.c.b16 %v2764, %v2756
    %v3197 = vpack.c.b16 %v2765, %v2757
    %v3198 = vpack.c.b16 %v2774, %v2766
    %v3199 = vpack.c.b16 %v2775, %v2767
    %v3200 = vpack.c.b16 %v2776, %v2768
    %v3201 = vpack.c.b16 %v2777, %v2769
    %v3202 = vpack.c.b16 %v2778, %v2770
    %v3203 = vpack.c.b16 %v2779, %v2771
    %v3204 = vpack.c.b16 %v2780, %v2772
    %v3205 = vpack.c.b16 %v2781, %v2773
    %v3206 = vpack.c.b16 %v2790, %v2782
    %v3207 = vpack.c.b16 %v2791, %v2783
    %v3208 = vpack.c.b16 %v2792, %v2784
    %v3209 = vpack.c.b16 %v2793, %v2785
    %v3210 = vpack.c.b16 %v2794, %v2786
    %v3211 = vpack.c.b16 %v2795, %v2787
    %v3212 = vpack.c.b16 %v2796, %v2788
    %v3213 = vpack.c.b16 %v2797, %v2789
    %v3214 = vpack.c.b16 %v2806, %v2798
    %v3215 = vpack.c.b16 %v2807, %v2799
    %v3216 = vpack.c.b16 %v2808, %v2800
    %v3217 = vpack.c.b16 %v2809, %v2801
    %v3218 = vpack.c.b16 %v2810, %v2802
    %v3219 = vpack.c.b16 %v2811, %v2803
    %v3220 = vpack.c.b16 %v2812, %v2804
    %v3221 = vpack.c.b16 %v2813, %v2805
    %v3222 = vpack.c.b16 %v2822, %v2814
    %v3223 = vpack.c.b16 %v2823, %v2815
    %v3224 = vpack.c.b16 %v2824, %v2816
    %v3225 = vpack.c.b16 %v2825, %v2817
    %v3226 = vpack.c.b16 %v2826, %v2818
    %v3227 = vpack.c.b16 %v2827, %v2819
    %v3228 = vpack.c.b16 %v2828, %v2820
    %v3229 = vpack.c.b16 %v2829, %v2821
    %v3230 = vpack.c.b16 %v2838, %v2830
    %v3231 = vpack.c.b16 %v2839, %v2831
    %v3232 = vpack.c.b16 %v2840, %v2832
    %v3233 = vpack.c.b16 %v2841, %v2833
    %v3234 = vpack.c.b16 %v2842, %v2834
    %v3235 = vpack.c.b16 %v2843, %v2835
    %v3236 = vpack.c.b16 %v2844, %v2836
    %v3237 = vpack.c.b16 %v2845, %v2837
    %v3238 = vpack.c.b16 %v2854, %v2846
    %v3239 = vpack.c.b16 %v2855, %v2847
    %v3240 = vpack.c.b16 %v2856, %v2848
    %v3241 = vpack.c.b16 %v2857, %v2849
    %v3242 = vpack.c.b16 %v2858, %v2850
    %v3243 = vpack.c.b16 %v2859, %v2851
    %v3244 = vpack.c.b16 %v2860, %v2852
    %v3245 = vpack.c.b16 %v2861, %v2853
    %v3246 = vpack.c.b16 %v2870, %v2862
    %v3247 = vpack.c.b16 %v2871, %v2863
    %v3248 = vpack.c.b16 %v2872, %v2864
    %v3249 = vpack.c.b16 %v2873, %v2865
    %v3250 = vpack.c.b16 %v2874, %v2866
    %v3251 = vpack.c.b16 %v2875, %v2867
    %v3252 = vpack.c.b16 %v2876, %v2868
    %v3253 = vpack.c.b16 %v2877, %v2869
    %v3254 = vpack.c.b16 %v2886, %v2878
    %v3255 = vpack.c.b16 %v2887, %v2879
    %v3256 = vpack.c.b16 %v2888, %v2880
    %v3257 = vpack.c.b16 %v2889, %v2881
    %v3258 = vpack.c.b16 %v2890, %v2882
    %v3259 = vpack.c.b16 %v2891, %v2883
    %v3260 = vpack.c.b16 %v2892, %v2884
    %v3261 = vpack.c.b16 %v2893, %v2885
    %v3262 = vpack.c.b16 %v2902, %v2894
    %v3263 = vpack.c.b16 %v2903, %v2895
    %v3264 = vpack.c.b16 %v2904, %v2896
    %v3265 = vpack.c.b16 %v2905, %v2897
    %v3266 = vpack.c.b16 %v2906, %v2898
    %v3267 = vpack.c.b16 %v2907, %v2899
    %v3268 = vpack.c.b16 %v2908, %v2900
    %v3269 = vpack.c.b16 %v2909, %v2901
    %v3270 = vpack.c.b16 %v2918, %v2910
    %v3271 = vpack.c.b16 %v2919, %v2911
    %v3272 = vpack.c.b16 %v2920, %v2912
    %v3273 = vpack.c.b16 %v2921, %v2913
    %v3274 = vpack.c.b16 %v2922, %v2914
    %v3275 = vpack.c.b16 %v2923, %v2915
    %v3276 = vpack.c.b16 %v2924, %v2916
    %v3277 = vpack.c.b16 %v2925, %v2917
    %v3278 = vpack.c.b16 %v2934, %v2926
    %v3279 = vpack.c.b16 %v2935, %v2927
    %v3280 = vpack.c.b16 %v2936, %v2928
    %v3281 = vpack.c.b16 %v2937, %v2929
    %v3282 = vpack.c.b16 %v2938, %v2930
    %v3283 = vpack.c.b16 %v2939, %v2931
    %v3284 = vpack.c.b16 %v2940, %v2932
    %v3285 = vpack.c.b16 %v2941, %v2933
    %v3286 = vpack.c.b16 %v2950, %v2942
    %v3287 = vpack.c.b16 %v2951, %v2943
    %v3288 = vpack.c.b16 %v2952, %v2944
    %v3289 = vpack.c.b16 %v2953, %v2945
    %v3290 = vpack.c.b16 %v2954, %v2946
    %v3291 = vpack.c.b16 %v2955, %v2947
    %v3292 = vpack.c.b16 %v2956, %v2948
    %v3293 = vpack.c.b16 %v2957, %v2949
    %v3294 = vpack.c.b16 %v2966, %v2958
    %v3295 = vpack.c.b16 %v2967, %v2959
    %v3296 = vpack.c.b16 %v2968, %v2960
    %v3297 = vpack.c.b16 %v2969, %v2961
    %v3298 = vpack.c.b16 %v2970, %v2962
    %v3299 = vpack.c.b16 %v2971, %v2963
    %v3300 = vpack.c.b16 %v2972, %v2964
    %v3301 = vpack.c.b16 %v2973, %v2965
    %v3302 = vpack.c.b16 %v2982, %v2974
    %v3303 = vpack.c.b16 %v2983, %v2975
    %v3304 = vpack.c.b16 %v2984, %v2976
    %v3305 = vpack.c.b16 %v2985, %v2977
    %v3306 = vpack.c.b16 %v2986, %v2978
    %v3307 = vpack.c.b16 %v2987, %v2979
    %v3308 = vpack.c.b16 %v2988, %v2980
    %v3309 = vpack.c.b16 %v2989, %v2981
    %v3310 = vpack.c.b16 %v2998, %v2990
    %v3311 = vpack.c.b16 %v2999, %v2991
    %v3312 = vpack.c.b16 %v3000, %v2992
    %v3313 = vpack.c.b16 %v3001, %v2993
    %v3314 = vpack.c.b16 %v3002, %v2994
    %v3315 = vpack.c.b16 %v3003, %v2995
    %v3316 = vpack.c.b16 %v3004, %v2996
    %v3317 = vpack.c.b16 %v3005, %v2997
    %v3318 = vpack.c.b16 %v3014, %v3006
    %v3319 = vpack.c.b16 %v3015, %v3007
    %v3320 = vpack.c.b16 %v3016, %v3008
    %v3321 = vpack.c.b16 %v3017, %v3009
    %v3322 = vpack.c.b16 %v3018, %v3010
    %v3323 = vpack.c.b16 %v3019, %v3011
    %v3324 = vpack.c.b16 %v3020, %v3012
    %v3325 = vpack.c.b16 %v3021, %v3013
    %v3326 = vpack.c.b16 %v3030, %v3022
    %v3327 = vpack.c.b16 %v3031, %v3023
    %v3328 = vpack.c.b16 %v3032, %v3024
    %v3329 = vpack.c.b16 %v3033, %v3025
    %v3330 = vpack.c.b16 %v3034, %v3026
    %v3331 = vpack.c.b16 %v3035, %v3027
    %v3332 = vpack.c.b16 %v3036, %v3028
    %v3333 = vpack.c.b16 %v3037, %v3029
    %v3334 = vpack.c.b16 %v3046, %v3038
    %v3335 = vpack.c.b16 %v3047, %v3039
    %v3336 = vpack.c.b16 %v3048, %v3040
    %v3337 = vpack.c.b16 %v3049, %v3041
    %v3338 = vpack.c.b16 %v3050, %v3042
    %v3339 = vpack.c.b16 %v3051, %v3043
    %v3340 = vpack.c.b16 %v3052, %v3044
    %v3341 = vpack.c.b16 %v3053, %v3045
    %v3342 = vpack.c.b16 %v3062, %v3054
    %v3343 = vpack.c.b16 %v3063, %v3055
    %v3344 = vpack.c.b16 %v3064, %v3056
    %v3345 = vpack.c.b16 %v3065, %v3057
    %v3346 = vpack.c.b16 %v3066, %v3058
    %v3347 = vpack.c.b16 %v3067, %v3059
    %v3348 = vpack.c.b16 %v3068, %v3060
    %v3349 = vpack.c.b16 %v3069, %v3061
    %v3350 = vpack.c.b16 %v3078, %v3070
    %v3351 = vpack.c.b16 %v3079, %v3071
    %v3352 = vpack.c.b16 %v3080, %v3072
    %v3353 = vpack.c.b16 %v3081, %v3073
    %v3354 = vpack.c.b16 %v3082, %v3074
    %v3355 = vpack.c.b16 %v3083, %v3075
    %v3356 = vpack.c.b16 %v3084, %v3076
    %v3357 = vpack.c.b16 %v3085, %v3077
    %v3358 = vpack.c.b16 %v3094, %v3086
    %v3359 = vpack.c.b16 %v3095, %v3087
    %v3360 = vpack.c.b16 %v3096, %v3088
    %v3361 = vpack.c.b16 %v3097, %v3089
    %v3362 = vpack.c.b16 %v3098, %v3090
    %v3363 = vpack.c.b16 %v3099, %v3091
    %v3364 = vpack.c.b16 %v3100, %v3092
    %v3365 = vpack.c.b16 %v3101, %v3093
    %v3366 = vpack.c.b16 %v3110, %v3102
    %v3367 = vpack.c.b16 %v3111, %v3103
    %v3368 = vpack.c.b16 %v3112, %v3104
    %v3369 = vpack.c.b16 %v3113, %v3105
    %v3370 = vpack.c.b16 %v3114, %v3106
    %v3371 = vpack.c.b16 %v3115, %v3107
    %v3372 = vpack.c.b16 %v3116, %v3108
    %v3373 = vpack.c.b16 %v3117, %v3109
    %3630 = vmatprep.subr.bf16.mxu0 %v3119
    %3631 = vmatpush1.bf16.msra.mxu0 %v3118
    %3632 = vmatprep.subr.bf16.mxu0 %v3127
    %3633 = vmatpush1.bf16.msra.mxu0 %v3126
    %3634 = vmatprep.subr.bf16.mxu0 %v3135
    %3635 = vmatpush1.bf16.msra.mxu0 %v3134
    %3636 = vmatprep.subr.bf16.mxu0 %v3143
    %3637 = vmatpush1.bf16.msra.mxu0 %v3142
    %3638 = vmatprep.subr.bf16.mxu0 %v3151
    %3639 = vmatpush1.bf16.msra.mxu0 %v3150
    %3640 = vmatprep.subr.bf16.mxu0 %v3159
    %3641 = vmatpush1.bf16.msra.mxu0 %v3158
    %3642 = vmatprep.subr.bf16.mxu0 %v3167
    %3643 = vmatpush1.bf16.msra.mxu0 %v3166
    %3644 = vmatprep.subr.bf16.mxu0 %v3175
    %3645 = vmatpush1.bf16.msra.mxu0 %v3174
    %3646 = vmatprep.subr.bf16.mxu0 %v3183
    %3647 = vmatpush1.bf16.msra.mxu0 %v3182
    %3648 = vmatprep.subr.bf16.mxu0 %v3191
    %3649 = vmatpush1.bf16.msra.mxu0 %v3190
    %3650 = vmatprep.subr.bf16.mxu0 %v3199
    %3651 = vmatpush1.bf16.msra.mxu0 %v3198
    %3652 = vmatprep.subr.bf16.mxu0 %v3207
    %3653 = vmatpush1.bf16.msra.mxu0 %v3206
    %3654 = vmatprep.subr.bf16.mxu0 %v3215
    %3655 = vmatpush1.bf16.msra.mxu0 %v3214
    %3656 = vmatprep.subr.bf16.mxu0 %v3223
    %3657 = vmatpush1.bf16.msra.mxu0 %v3222
    %3658 = vmatprep.subr.bf16.mxu0 %v3231
    %3659 = vmatpush1.bf16.msra.mxu0 %v3230
    %3660 = vmatprep.subr.bf16.mxu0 %v3239
    %3661 = vmatpush1.bf16.msra.mxu0 %v3238
    %3662 = vmatprep.mubr.bf16.mxu0 %v2049
    %3663 = vmatmul.mubr.bf16.gmra.mrb[0].mxu0 %v2048
    %v3664 = vpop.f32.mrb[0].mxu0
    %v3665 = vadd.f32 %v2313, %v3664
    %v3666 = vpop.f32.mrb[0].mxu0
    %v3667 = vadd.f32 %v2317, %v3666
    %v3668 = vpop.f32.mrb[0].mxu0
    %v3669 = vpop.f32.mrb[0].mxu0
    %3670 = vdwg.mxu0
    %3671 = vmatprep.subr.bf16.mxu0 %v3247
    %3672 = vmatpush1.bf16.msra.mxu0 %v3246
    %3673 = vmatprep.subr.bf16.mxu0 %v3255
    %3674 = vmatpush1.bf16.msra.mxu0 %v3254
    %3675 = vmatprep.subr.bf16.mxu0 %v3263
    %3676 = vmatpush1.bf16.msra.mxu0 %v3262
    %3677 = vmatprep.subr.bf16.mxu0 %v3271
    %3678 = vmatpush1.bf16.msra.mxu0 %v3270
    %3679 = vmatprep.subr.bf16.mxu0 %v3279
    %3680 = vmatpush1.bf16.msra.mxu0 %v3278
    %3681 = vmatprep.subr.bf16.mxu0 %v3287
    %3682 = vmatpush1.bf16.msra.mxu0 %v3286
    %3683 = vmatprep.subr.bf16.mxu0 %v3295
    %3684 = vmatpush1.bf16.msra.mxu0 %v3294
    %3685 = vmatprep.subr.bf16.mxu0 %v3303
    %3686 = vmatpush1.bf16.msra.mxu0 %v3302
    %3687 = vmatprep.subr.bf16.mxu0 %v3311
    %3688 = vmatpush1.bf16.msra.mxu0 %v3310
    %3689 = vmatprep.subr.bf16.mxu0 %v3319
    %3690 = vmatpush1.bf16.msra.mxu0 %v3318
    %3691 = vmatprep.subr.bf16.mxu0 %v3327
    %3692 = vmatpush1.bf16.msra.mxu0 %v3326
    %3693 = vmatprep.subr.bf16.mxu0 %v3335
    %3694 = vmatpush1.bf16.msra.mxu0 %v3334
    %3695 = vmatprep.subr.bf16.mxu0 %v3343
    %3696 = vmatpush1.bf16.msra.mxu0 %v3342
    %3697 = vmatprep.subr.bf16.mxu0 %v3351
    %3698 = vmatpush1.bf16.msra.mxu0 %v3350
    %3699 = vmatprep.subr.bf16.mxu0 %v3359
    %3700 = vmatpush1.bf16.msra.mxu0 %v3358
    %3701 = vmatprep.subr.bf16.mxu0 %v3367
    %3702 = vmatpush1.bf16.msra.mxu0 %v3366
    %3703 = vmatprep.mubr.bf16.mxu0 %v2051
    %3704 = vmatmul.mubr.bf16.gmra.mrb[0].mxu0 %v2050
    %v3705 = vpop.f32.mrb[0].mxu0
    %v3706 = vadd.f32 %v3665, %v3705
    %v3707 = vpop.f32.mrb[0].mxu0
    %v3708 = vadd.f32 %v3667, %v3707
    %v3709 = vpop.f32.mrb[0].mxu0
    %v3710 = vpop.f32.mrb[0].mxu0
    %3711 = vdwg.mxu0
    %3712 = vmatprep.subr.bf16.mxu0 %v3121
    %3713 = vmatpush1.bf16.msra.mxu0 %v3120
    %3714 = vmatprep.subr.bf16.mxu0 %v3129
    %3715 = vmatpush1.bf16.msra.mxu0 %v3128
    %3716 = vmatprep.subr.bf16.mxu0 %v3137
    %3717 = vmatpush1.bf16.msra.mxu0 %v3136
    %3718 = vmatprep.subr.bf16.mxu0 %v3145
    %3719 = vmatpush1.bf16.msra.mxu0 %v3144
    %3720 = vmatprep.subr.bf16.mxu0 %v3153
    %3721 = vmatpush1.bf16.msra.mxu0 %v3152
    %3722 = vmatprep.subr.bf16.mxu0 %v3161
    %3723 = vmatpush1.bf16.msra.mxu0 %v3160
    %3724 = vmatprep.subr.bf16.mxu0 %v3169
    %3725 = vmatpush1.bf16.msra.mxu0 %v3168
    %3726 = vmatprep.subr.bf16.mxu0 %v3177
    %3727 = vmatpush1.bf16.msra.mxu0 %v3176
    %3728 = vmatprep.subr.bf16.mxu0 %v3185
    %3729 = vmatpush1.bf16.msra.mxu0 %v3184
    %3730 = vmatprep.subr.bf16.mxu0 %v3193
    %3731 = vmatpush1.bf16.msra.mxu0 %v3192
    %3732 = vmatprep.subr.bf16.mxu0 %v3201
    %3733 = vmatpush1.bf16.msra.mxu0 %v3200
    %3734 = vmatprep.subr.bf16.mxu0 %v3209
    %3735 = vmatpush1.bf16.msra.mxu0 %v3208
    %3736 = vmatprep.subr.bf16.mxu0 %v3217
    %3737 = vmatpush1.bf16.msra.mxu0 %v3216
    %3738 = vmatprep.subr.bf16.mxu0 %v3225
    %3739 = vmatpush1.bf16.msra.mxu0 %v3224
    %3740 = vmatprep.subr.bf16.mxu0 %v3233
    %3741 = vmatpush1.bf16.msra.mxu0 %v3232
    %3742 = vmatprep.subr.bf16.mxu0 %v3241
    %3743 = vmatpush1.bf16.msra.mxu0 %v3240
    %3744 = vmatprep.mubr.bf16.mxu0 %v2049
    %3745 = vmatmul.mubr.bf16.gmra.mrb[0].mxu0 %v2048
    %v3746 = vpop.f32.mrb[0].mxu0
    %v3747 = vadd.f32 %v2321, %v3746
    %v3748 = vpop.f32.mrb[0].mxu0
    %v3749 = vadd.f32 %v2325, %v3748
    %v3750 = vpop.f32.mrb[0].mxu0
    %v3751 = vpop.f32.mrb[0].mxu0
    %3752 = vdwg.mxu0
    %3753 = vmatprep.subr.bf16.mxu0 %v3249
    %3754 = vmatpush1.bf16.msra.mxu0 %v3248
    %3755 = vmatprep.subr.bf16.mxu0 %v3257
    %3756 = vmatpush1.bf16.msra.mxu0 %v3256
    %3757 = vmatprep.subr.bf16.mxu0 %v3265
    %3758 = vmatpush1.bf16.msra.mxu0 %v3264
    %3759 = vmatprep.subr.bf16.mxu0 %v3273
    %3760 = vmatpush1.bf16.msra.mxu0 %v3272
    %3761 = vmatprep.subr.bf16.mxu0 %v3281
    %3762 = vmatpush1.bf16.msra.mxu0 %v3280
    %3763 = vmatprep.subr.bf16.mxu0 %v3289
    %3764 = vmatpush1.bf16.msra.mxu0 %v3288
    %3765 = vmatprep.subr.bf16.mxu0 %v3297
    %3766 = vmatpush1.bf16.msra.mxu0 %v3296
    %3767 = vmatprep.subr.bf16.mxu0 %v3305
    %3768 = vmatpush1.bf16.msra.mxu0 %v3304
    %3769 = vmatprep.subr.bf16.mxu0 %v3313
    %3770 = vmatpush1.bf16.msra.mxu0 %v3312
    %3771 = vmatprep.subr.bf16.mxu0 %v3321
    %3772 = vmatpush1.bf16.msra.mxu0 %v3320
    %3773 = vmatprep.subr.bf16.mxu0 %v3329
    %3774 = vmatpush1.bf16.msra.mxu0 %v3328
    %3775 = vmatprep.subr.bf16.mxu0 %v3337
    %3776 = vmatpush1.bf16.msra.mxu0 %v3336
    %3777 = vmatprep.subr.bf16.mxu0 %v3345
    %3778 = vmatpush1.bf16.msra.mxu0 %v3344
    %3779 = vmatprep.subr.bf16.mxu0 %v3353
    %3780 = vmatpush1.bf16.msra.mxu0 %v3352
    %3781 = vmatprep.subr.bf16.mxu0 %v3361
    %3782 = vmatpush1.bf16.msra.mxu0 %v3360
    %3783 = vmatprep.subr.bf16.mxu0 %v3369
    %3784 = vmatpush1.bf16.msra.mxu0 %v3368
    %3785 = vmatprep.mubr.bf16.mxu0 %v2051
    %3786 = vmatmul.mubr.bf16.gmra.mrb[0].mxu0 %v2050
    %v3787 = vpop.f32.mrb[0].mxu0
    %v3788 = vadd.f32 %v3747, %v3787
    %v3789 = vpop.f32.mrb[0].mxu0
    %v3790 = vadd.f32 %v3749, %v3789
    %v3791 = vpop.f32.mrb[0].mxu0
    %v3792 = vpop.f32.mrb[0].mxu0
    %3793 = vdwg.mxu0
    %3794 = vmatprep.subr.bf16.mxu0 %v3123
    %3795 = vmatpush1.bf16.msra.mxu0 %v3122
    %3796 = vmatprep.subr.bf16.mxu0 %v3131
    %3797 = vmatpush1.bf16.msra.mxu0 %v3130
    %3798 = vmatprep.subr.bf16.mxu0 %v3139
    %3799 = vmatpush1.bf16.msra.mxu0 %v3138
    %3800 = vmatprep.subr.bf16.mxu0 %v3147
    %3801 = vmatpush1.bf16.msra.mxu0 %v3146
    %3802 = vmatprep.subr.bf16.mxu0 %v3155
    %3803 = vmatpush1.bf16.msra.mxu0 %v3154
    %3804 = vmatprep.subr.bf16.mxu0 %v3163
    %3805 = vmatpush1.bf16.msra.mxu0 %v3162
    %3806 = vmatprep.subr.bf16.mxu0 %v3171
    %3807 = vmatpush1.bf16.msra.mxu0 %v3170
    %3808 = vmatprep.subr.bf16.mxu0 %v3179
    %3809 = vmatpush1.bf16.msra.mxu0 %v3178
    %3810 = vmatprep.subr.bf16.mxu0 %v3187
    %3811 = vmatpush1.bf16.msra.mxu0 %v3186
    %3812 = vmatprep.subr.bf16.mxu0 %v3195
    %3813 = vmatpush1.bf16.msra.mxu0 %v3194
    %3814 = vmatprep.subr.bf16.mxu0 %v3203
    %3815 = vmatpush1.bf16.msra.mxu0 %v3202
    %3816 = vmatprep.subr.bf16.mxu0 %v3211
    %3817 = vmatpush1.bf16.msra.mxu0 %v3210
    %3818 = vmatprep.subr.bf16.mxu0 %v3219
    %3819 = vmatpush1.bf16.msra.mxu0 %v3218
    %3820 = vmatprep.subr.bf16.mxu0 %v3227
    %3821 = vmatpush1.bf16.msra.mxu0 %v3226
    %3822 = vmatprep.subr.bf16.mxu0 %v3235
    %3823 = vmatpush1.bf16.msra.mxu0 %v3234
    %3824 = vmatprep.subr.bf16.mxu0 %v3243
    %3825 = vmatpush1.bf16.msra.mxu0 %v3242
    %3826 = vmatprep.mubr.bf16.mxu0 %v2049
    %3827 = vmatmul.mubr.bf16.gmra.mrb[0].mxu0 %v2048
    %v3828 = vpop.f32.mrb[0].mxu0
    %v3829 = vadd.f32 %v2329, %v3828
    %v3830 = vpop.f32.mrb[0].mxu0
    %v3831 = vadd.f32 %v2333, %v3830
    %v3832 = vpop.f32.mrb[0].mxu0
    %v3833 = vpop.f32.mrb[0].mxu0
    %3834 = vdwg.mxu0
    %3835 = vmatprep.subr.bf16.mxu0 %v3251
    %3836 = vmatpush1.bf16.msra.mxu0 %v3250
    %3837 = vmatprep.subr.bf16.mxu0 %v3259
    %3838 = vmatpush1.bf16.msra.mxu0 %v3258
    %3839 = vmatprep.subr.bf16.mxu0 %v3267
    %3840 = vmatpush1.bf16.msra.mxu0 %v3266
    %3841 = vmatprep.subr.bf16.mxu0 %v3275
    %3842 = vmatpush1.bf16.msra.mxu0 %v3274
    %3843 = vmatprep.subr.bf16.mxu0 %v3283
    %3844 = vmatpush1.bf16.msra.mxu0 %v3282
    %3845 = vmatprep.subr.bf16.mxu0 %v3291
    %3846 = vmatpush1.bf16.msra.mxu0 %v3290
    %3847 = vmatprep.subr.bf16.mxu0 %v3299
    %3848 = vmatpush1.bf16.msra.mxu0 %v3298
    %3849 = vmatprep.subr.bf16.mxu0 %v3307
    %3850 = vmatpush1.bf16.msra.mxu0 %v3306
    %3851 = vmatprep.subr.bf16.mxu0 %v3315
    %3852 = vmatpush1.bf16.msra.mxu0 %v3314
    %3853 = vmatprep.subr.bf16.mxu0 %v3323
    %3854 = vmatpush1.bf16.msra.mxu0 %v3322
    %3855 = vmatprep.subr.bf16.mxu0 %v3331
    %3856 = vmatpush1.bf16.msra.mxu0 %v3330
    %3857 = vmatprep.subr.bf16.mxu0 %v3339
    %3858 = vmatpush1.bf16.msra.mxu0 %v3338
    %3859 = vmatprep.subr.bf16.mxu0 %v3347
    %3860 = vmatpush1.bf16.msra.mxu0 %v3346
    %3861 = vmatprep.subr.bf16.mxu0 %v3355
    %3862 = vmatpush1.bf16.msra.mxu0 %v3354
    %3863 = vmatprep.subr.bf16.mxu0 %v3363
    %3864 = vmatpush1.bf16.msra.mxu0 %v3362
    %3865 = vmatprep.subr.bf16.mxu0 %v3371
    %3866 = vmatpush1.bf16.msra.mxu0 %v3370
    %3867 = vmatprep.mubr.bf16.mxu0 %v2051
    %3868 = vmatmul.mubr.bf16.gmra.mrb[0].mxu0 %v2050
    %v3869 = vpop.f32.mrb[0].mxu0
    %v3870 = vadd.f32 %v3829, %v3869
    %v3871 = vpop.f32.mrb[0].mxu0
    %v3872 = vadd.f32 %v3831, %v3871
    %v3873 = vpop.f32.mrb[0].mxu0
    %v3874 = vpop.f32.mrb[0].mxu0
    %3875 = vdwg.mxu0
    %3876 = vmatprep.subr.bf16.mxu0 %v3125
    %3877 = vmatpush1.bf16.msra.mxu0 %v3124
    %3878 = vmatprep.subr.bf16.mxu0 %v3133
    %3879 = vmatpush1.bf16.msra.mxu0 %v3132
    %3880 = vmatprep.subr.bf16.mxu0 %v3141
    %3881 = vmatpush1.bf16.msra.mxu0 %v3140
    %3882 = vmatprep.subr.bf16.mxu0 %v3149
    %3883 = vmatpush1.bf16.msra.mxu0 %v3148
    %3884 = vmatprep.subr.bf16.mxu0 %v3157
    %3885 = vmatpush1.bf16.msra.mxu0 %v3156
    %3886 = vmatprep.subr.bf16.mxu0 %v3165
    %3887 = vmatpush1.bf16.msra.mxu0 %v3164
    %3888 = vmatprep.subr.bf16.mxu0 %v3173
    %3889 = vmatpush1.bf16.msra.mxu0 %v3172
    %3890 = vmatprep.subr.bf16.mxu0 %v3181
    %3891 = vmatpush1.bf16.msra.mxu0 %v3180
    %3892 = vmatprep.subr.bf16.mxu0 %v3189
    %3893 = vmatpush1.bf16.msra.mxu0 %v3188
    %3894 = vmatprep.subr.bf16.mxu0 %v3197
    %3895 = vmatpush1.bf16.msra.mxu0 %v3196
    %3896 = vmatprep.subr.bf16.mxu0 %v3205
    %3897 = vmatpush1.bf16.msra.mxu0 %v3204
    %3898 = vmatprep.subr.bf16.mxu0 %v3213
    %3899 = vmatpush1.bf16.msra.mxu0 %v3212
    %3900 = vmatprep.subr.bf16.mxu0 %v3221
    %3901 = vmatpush1.bf16.msra.mxu0 %v3220
    %3902 = vmatprep.subr.bf16.mxu0 %v3229
    %3903 = vmatpush1.bf16.msra.mxu0 %v3228
    %3904 = vmatprep.subr.bf16.mxu0 %v3237
    %3905 = vmatpush1.bf16.msra.mxu0 %v3236
    %3906 = vmatprep.subr.bf16.mxu0 %v3245
    %3907 = vmatpush1.bf16.msra.mxu0 %v3244
    %3908 = vmatprep.mubr.bf16.mxu0 %v2049
    %3909 = vmatmul.mubr.bf16.gmra.mrb[0].mxu0 %v2048
    %v3910 = vpop.f32.mrb[0].mxu0
    %v3911 = vadd.f32 %v2337, %v3910
    %v3912 = vpop.f32.mrb[0].mxu0
    %v3913 = vadd.f32 %v2341, %v3912
    %v3914 = vpop.f32.mrb[0].mxu0
    %v3915 = vpop.f32.mrb[0].mxu0
    %3916 = vdwg.mxu0
    %3917 = vmatprep.subr.bf16.mxu0 %v3253
    %3918 = vmatpush1.bf16.msra.mxu0 %v3252
    %3919 = vmatprep.subr.bf16.mxu0 %v3261
    %3920 = vmatpush1.bf16.msra.mxu0 %v3260
    %3921 = vmatprep.subr.bf16.mxu0 %v3269
    %3922 = vmatpush1.bf16.msra.mxu0 %v3268
    %3923 = vmatprep.subr.bf16.mxu0 %v3277
    %3924 = vmatpush1.bf16.msra.mxu0 %v3276
    %3925 = vmatprep.subr.bf16.mxu0 %v3285
    %3926 = vmatpush1.bf16.msra.mxu0 %v3284
    %3927 = vmatprep.subr.bf16.mxu0 %v3293
    %3928 = vmatpush1.bf16.msra.mxu0 %v3292
    %3929 = vmatprep.subr.bf16.mxu0 %v3301
    %3930 = vmatpush1.bf16.msra.mxu0 %v3300
    %3931 = vmatprep.subr.bf16.mxu0 %v3309
    %3932 = vmatpush1.bf16.msra.mxu0 %v3308
    %3933 = vmatprep.subr.bf16.mxu0 %v3317
    %3934 = vmatpush1.bf16.msra.mxu0 %v3316
    %3935 = vmatprep.subr.bf16.mxu0 %v3325
    %3936 = vmatpush1.bf16.msra.mxu0 %v3324
    %3937 = vmatprep.subr.bf16.mxu0 %v3333
    %3938 = vmatpush1.bf16.msra.mxu0 %v3332
    %3939 = vmatprep.subr.bf16.mxu0 %v3341
    %3940 = vmatpush1.bf16.msra.mxu0 %v3340
    %3941 = vmatprep.subr.bf16.mxu0 %v3349
    %3942 = vmatpush1.bf16.msra.mxu0 %v3348
    %3943 = vmatprep.subr.bf16.mxu0 %v3357
    %3944 = vmatpush1.bf16.msra.mxu0 %v3356
    %3945 = vmatprep.subr.bf16.mxu0 %v3365
    %3946 = vmatpush1.bf16.msra.mxu0 %v3364
    %3947 = vmatprep.subr.bf16.mxu0 %v3373
    %3948 = vmatpush1.bf16.msra.mxu0 %v3372
    %3949 = vmatprep.mubr.bf16.mxu0 %v2051
    %3950 = vmatmul.mubr.bf16.gmra.mrb[0].mxu0 %v2050
    %v3951 = vpop.f32.mrb[0].mxu0
    %v3952 = vadd.f32 %v3911, %v3951
    %v3953 = vpop.f32.mrb[0].mxu0
    %v3954 = vadd.f32 %v3913, %v3953
    %v3955 = vpop.f32.mrb[0].mxu0
    %v3956 = vpop.f32.mrb[0].mxu0
    %3957 = vdwg.mxu0
    %v3958 = vmax.f32 %v3706, %v3870
    %v3959 = vmax.f32 %v3708, %v3872
    %v3960 = vmax.f32 %v3788, %v3952
    %v3961 = vmax.f32 %v3790, %v3954
    %v3962 = vmin.f32 %v3706, %v3870
    %v3963 = vmin.f32 %v3708, %v3872
    %v3964 = vmin.f32 %v3788, %v3952
    %v3965 = vmin.f32 %v3790, %v3954
    %v3966 = vmax.f32 %v3958, %v3960
    %v3967 = vmax.f32 %v3959, %v3961
    %v3968 = vmin.f32 %v3962, %v3964
    %v3969 = vmin.f32 %v3963, %v3965
    %v3970 = vmax.f32 %v3966, %v3967
    %v3971 = vmin.f32 %v3968, %v3969
    %3973 = vrot.lane.b32.xlu0 %v3970, 64
    %v3974 = vpop.permute.xlu0 %3973
    %v3976 = vmax.f32 %v3970, %v3974
    %3978 = vrot.lane.b32.xlu0 %v3971, 64
    %v3979 = vpop.permute.xlu0 %3978
    %v3981 = vmin.f32 %v3971, %v3979
    %3983 = vrot.lane.b32.xlu0 %v3976, 96
    %v3984 = vpop.permute.xlu0 %3983
    %v3986 = vmax.f32 %v3976, %v3984
    %3988 = vrot.lane.b32.xlu0 %v3981, 96
    %v3989 = vpop.permute.xlu0 %3988
    %v3991 = vmin.f32 %v3981, %v3989
    %v3992 = vld [vmem:[#allocation8] sm:$0xff]
    %v3993 = vld [vmem:[#allocation8 + $0x8] sm:$0xff]
    %v3994 = vld [vmem:[#allocation8 + $0x10] sm:$0xff]
    %v3995 = vld [vmem:[#allocation8 + $0x18] sm:$0xff]
    %v3996 = vld [vmem:[#allocation10] sm:$0xff]
    %v3997 = vld [vmem:[#allocation10 + $0x8] sm:$0xff]
    %v3998 = vld [vmem:[#allocation10 + $0x10] sm:$0xff]
    %v3999 = vld [vmem:[#allocation10 + $0x18] sm:$0xff]
    %vm4000 = vcmask 261120
    %v4002 = vsel %vm4000, %v3991, 0
    %4004 = vmatprep.subr.mxu0 0.0
    %4005 = vmatpush1.msra.mxu0 %v3996
    %4006 = vmatprep.subr.mxu0 0.0
    %4007 = vmatpush1.msra.mxu0 %v3997
    %4008 = vmatprep.subr.mxu0 0.0
    %4009 = vmatpush1.msra.mxu0 %v3998
    %4010 = vmatprep.subr.mxu0 0.0
    %4011 = vmatpush1.msra.mxu0 %v3999
    %4012 = vmatprep.subr.mxu0 0.0
    %4013 = vmatpush1.msra.mxu0 0.0
    %4014 = vmatprep.subr.mxu0 0.0
    %4015 = vmatpush1.msra.mxu0 0.0
    %4016 = vmatprep.subr.mxu0 0.0
    %4017 = vmatpush1.msra.mxu0 0.0
    %4018 = vmatprep.subr.mxu0 0.0
    %4019 = vmatpush1.msra.mxu0 0.0
    %4020 = vmatprep.subr.mxu0 0.0
    %4021 = vmatpush1.msra.mxu0 0.0
    %4022 = vmatprep.subr.mxu0 0.0
    %4023 = vmatpush1.msra.mxu0 0.0
    %4024 = vmatprep.subr.mxu0 0.0
    %4025 = vmatpush1.msra.mxu0 0.0
    %4026 = vmatprep.subr.mxu0 0.0
    %4027 = vmatpush1.msra.mxu0 0.0
    %4028 = vmatprep.subr.mxu0 0.0
    %4029 = vmatpush1.msra.mxu0 0.0
    %4030 = vmatprep.subr.mxu0 0.0
    %4031 = vmatpush1.msra.mxu0 0.0
    %4032 = vmatprep.subr.mxu0 0.0
    %4033 = vmatpush1.msra.mxu0 0.0
    %4034 = vmatprep.subr.mxu0 0.0
    %4035 = vmatpush1.msra.mxu0 0.0
    %4036 = vmatprep.subr.mxu0 0.0
    %4037 = vmatpush1.msra.mxu0 0.0
    %4038 = vmatprep.subr.mxu0 0.0
    %4039 = vmatpush1.msra.mxu0 0.0
    %4040 = vmatprep.subr.mxu0 0.0
    %4041 = vmatpush1.msra.mxu0 0.0
    %4042 = vmatprep.subr.mxu0 0.0
    %4043 = vmatpush1.msra.mxu0 0.0
    %4044 = vmatprep.subr.mxu0 0.0
    %4045 = vmatpush1.msra.mxu0 0.0
    %4046 = vmatprep.subr.mxu0 0.0
    %4047 = vmatpush1.msra.mxu0 0.0
    %4048 = vmatprep.subr.mxu0 0.0
    %4049 = vmatpush1.msra.mxu0 0.0
    %4050 = vmatprep.subr.mxu0 0.0
    %4051 = vmatpush1.msra.mxu0 0.0
    %4052 = vmatprep.subr.mxu0 0.0
    %4053 = vmatpush1.msra.mxu0 0.0
    %4054 = vmatprep.subr.mxu0 0.0
    %4055 = vmatpush1.msra.mxu0 0.0
    %4056 = vmatprep.subr.mxu0 0.0
    %4057 = vmatpush1.msra.mxu0 0.0
    %4058 = vmatprep.subr.mxu0 0.0
    %4059 = vmatpush1.msra.mxu0 0.0
    %4060 = vmatprep.subr.mxu0 0.0
    %4061 = vmatpush1.msra.mxu0 0.0
    %4062 = vmatprep.subr.mxu0 0.0
    %4063 = vmatpush1.msra.mxu0 0.0
    %4064 = vmatprep.subr.mxu0 0.0
    %4065 = vmatpush1.msra.mxu0 0.0
    %4066 = vmatprep.subr.mxu0 0.0
    %4067 = vmatpush1.msra.mxu0 0.0
    %4068 = vmatprep.mubr.f32.mxu0 0.0
    %4069 = vmatmul.mubr.f32.gmra.mrb[0].mxu0 %v4002
    %v4070 = vpop.f32.mrb[0].mxu0
    %v4071 = vadd.f32 0.0, %v4070
    %v4072 = vpop.f32.mrb[0].mxu0
    %4073 = vdwg.mxu0
    %v4075 = vsel %vm4000, %v3986, 0
    %4077 = vmatprep.subr.mxu0 0.0
    %4078 = vmatpush1.msra.mxu0 %v3992
    %4079 = vmatprep.subr.mxu0 0.0
    %4080 = vmatpush1.msra.mxu0 %v3993
    %4081 = vmatprep.subr.mxu0 0.0
    %4082 = vmatpush1.msra.mxu0 %v3994
    %4083 = vmatprep.subr.mxu0 0.0
    %4084 = vmatpush1.msra.mxu0 %v3995
    %4085 = vmatprep.subr.mxu0 0.0
    %4086 = vmatpush1.msra.mxu0 0.0
    %4087 = vmatprep.subr.mxu0 0.0
    %4088 = vmatpush1.msra.mxu0 0.0
    %4089 = vmatprep.subr.mxu0 0.0
    %4090 = vmatpush1.msra.mxu0 0.0
    %4091 = vmatprep.subr.mxu0 0.0
    %4092 = vmatpush1.msra.mxu0 0.0
    %4093 = vmatprep.subr.mxu0 0.0
    %4094 = vmatpush1.msra.mxu0 0.0
    %4095 = vmatprep.subr.mxu0 0.0
    %4096 = vmatpush1.msra.mxu0 0.0
    %4097 = vmatprep.subr.mxu0 0.0
    %4098 = vmatpush1.msra.mxu0 0.0
    %4099 = vmatprep.subr.mxu0 0.0
    %4100 = vmatpush1.msra.mxu0 0.0
    %4101 = vmatprep.subr.mxu0 0.0
    %4102 = vmatpush1.msra.mxu0 0.0
    %4103 = vmatprep.subr.mxu0 0.0
    %4104 = vmatpush1.msra.mxu0 0.0
    %4105 = vmatprep.subr.mxu0 0.0
    %4106 = vmatpush1.msra.mxu0 0.0
    %4107 = vmatprep.subr.mxu0 0.0
    %4108 = vmatpush1.msra.mxu0 0.0
    %4109 = vmatprep.subr.mxu0 0.0
    %4110 = vmatpush1.msra.mxu0 0.0
    %4111 = vmatprep.subr.mxu0 0.0
    %4112 = vmatpush1.msra.mxu0 0.0
    %4113 = vmatprep.subr.mxu0 0.0
    %4114 = vmatpush1.msra.mxu0 0.0
    %4115 = vmatprep.subr.mxu0 0.0
    %4116 = vmatpush1.msra.mxu0 0.0
    %4117 = vmatprep.subr.mxu0 0.0
    %4118 = vmatpush1.msra.mxu0 0.0
    %4119 = vmatprep.subr.mxu0 0.0
    %4120 = vmatpush1.msra.mxu0 0.0
    %4121 = vmatprep.subr.mxu0 0.0
    %4122 = vmatpush1.msra.mxu0 0.0
    %4123 = vmatprep.subr.mxu0 0.0
    %4124 = vmatpush1.msra.mxu0 0.0
    %4125 = vmatprep.subr.mxu0 0.0
    %4126 = vmatpush1.msra.mxu0 0.0
    %4127 = vmatprep.subr.mxu0 0.0
    %4128 = vmatpush1.msra.mxu0 0.0
    %4129 = vmatprep.subr.mxu0 0.0
    %4130 = vmatpush1.msra.mxu0 0.0
    %4131 = vmatprep.subr.mxu0 0.0
    %4132 = vmatpush1.msra.mxu0 0.0
    %4133 = vmatprep.subr.mxu0 0.0
    %4134 = vmatpush1.msra.mxu0 0.0
    %4135 = vmatprep.subr.mxu0 0.0
    %4136 = vmatpush1.msra.mxu0 0.0
    %4137 = vmatprep.subr.mxu0 0.0
    %4138 = vmatpush1.msra.mxu0 0.0
    %4139 = vmatprep.subr.mxu0 0.0
    %4140 = vmatpush1.msra.mxu0 0.0
    %4141 = vmatprep.mubr.f32.mxu0 0.0
    %4142 = vmatmul.mubr.f32.gmra.mrb[0].mxu0 %v4075
    %v4143 = vpop.f32.mrb[0].mxu0
    %v4144 = vadd.f32 %v4071, %v4143
    %v4145 = vpop.f32.mrb[0].mxu0
    %4146 = vdwg.mxu0
    %v4147 = vld [vmem:[%s7] sm:$0x1]
    %v4149 = vlaneseq
    %v4150 = vshrl.u32 %v4149, 7
    %v4151 = vsub.s32 0, %v4150
    %v4152 = vrot.slane %v4147, %v4151
    %v4154 = vadd.f32 %v4144, %v4152
    %v4155 = vmax.f32 %v4154, 0.0
    %v4156 = vld [vmem:[#allocation11] sm:$0xff]
    %v4157 = vld [vmem:[#allocation11 + $0x8] sm:$0xff]
    %v4158 = vld [vmem:[#allocation11 + $0x10] sm:$0xff]
    %v4159 = vld [vmem:[#allocation11 + $0x18] sm:$0xff]
    %v4160 = vld [vmem:[#allocation11 + $0x20] sm:$0xff]
    %v4161 = vld [vmem:[#allocation11 + $0x28] sm:$0xff]
    %v4162 = vld [vmem:[#allocation11 + $0x30] sm:$0xff]
    %v4163 = vld [vmem:[#allocation11 + $0x38] sm:$0xff]
    %v4164 = vld [vmem:[#allocation11 + $0x40] sm:$0xff]
    %v4165 = vld [vmem:[#allocation11 + $0x48] sm:$0xff]
    %v4166 = vld [vmem:[#allocation11 + $0x50] sm:$0xff]
    %v4167 = vld [vmem:[#allocation11 + $0x58] sm:$0xff]
    %v4168 = vld [vmem:[#allocation11 + $0x60] sm:$0xff]
    %v4169 = vld [vmem:[#allocation11 + $0x68] sm:$0xff]
    %v4170 = vld [vmem:[#allocation11 + $0x70] sm:$0xff]
    %v4171 = vld [vmem:[#allocation11 + $0x78] sm:$0xff]
    %v4172 = vld [vmem:[#allocation11 + $0x80] sm:$0xff]
    %v4173 = vld [vmem:[#allocation11 + $0x88] sm:$0xff]
    %v4174 = vld [vmem:[#allocation11 + $0x90] sm:$0xff]
    %v4175 = vld [vmem:[#allocation11 + $0x98] sm:$0xff]
    %v4176 = vld [vmem:[#allocation11 + $0xa0] sm:$0xff]
    %v4177 = vld [vmem:[#allocation11 + $0xa8] sm:$0xff]
    %v4178 = vld [vmem:[#allocation11 + $0xb0] sm:$0xff]
    %v4179 = vld [vmem:[#allocation11 + $0xb8] sm:$0xff]
    %v4180 = vld [vmem:[#allocation11 + $0xc0] sm:$0xff]
    %v4181 = vld [vmem:[#allocation11 + $0xc8] sm:$0xff]
    %v4182 = vld [vmem:[#allocation11 + $0xd0] sm:$0xff]
    %v4183 = vld [vmem:[#allocation11 + $0xd8] sm:$0xff]
    %v4184 = vld [vmem:[#allocation11 + $0xe0] sm:$0xff]
    %v4185 = vld [vmem:[#allocation11 + $0xe8] sm:$0xff]
    %v4186 = vld [vmem:[#allocation11 + $0xf0] sm:$0xff]
    %v4187 = vld [vmem:[#allocation11 + $0xf8] sm:$0xff]
    %v4188 = vld [vmem:[#allocation11 + $0x100] sm:$0xff]
    %v4189 = vld [vmem:[#allocation11 + $0x108] sm:$0xff]
    %v4190 = vld [vmem:[#allocation11 + $0x110] sm:$0xff]
    %v4191 = vld [vmem:[#allocation11 + $0x118] sm:$0xff]
    %v4192 = vld [vmem:[#allocation11 + $0x120] sm:$0xff]
    %v4193 = vld [vmem:[#allocation11 + $0x128] sm:$0xff]
    %v4194 = vld [vmem:[#allocation11 + $0x130] sm:$0xff]
    %v4195 = vld [vmem:[#allocation11 + $0x138] sm:$0xff]
    %v4196 = vld [vmem:[#allocation11 + $0x140] sm:$0xff]
    %v4197 = vld [vmem:[#allocation11 + $0x148] sm:$0xff]
    %v4198 = vld [vmem:[#allocation11 + $0x150] sm:$0xff]
    %v4199 = vld [vmem:[#allocation11 + $0x158] sm:$0xff]
    %v4200 = vld [vmem:[#allocation11 + $0x160] sm:$0xff]
    %v4201 = vld [vmem:[#allocation11 + $0x168] sm:$0xff]
    %v4202 = vld [vmem:[#allocation11 + $0x170] sm:$0xff]
    %v4203 = vld [vmem:[#allocation11 + $0x178] sm:$0xff]
    %v4204 = vld [vmem:[#allocation11 + $0x180] sm:$0xff]
    %v4205 = vld [vmem:[#allocation11 + $0x188] sm:$0xff]
    %v4206 = vld [vmem:[#allocation11 + $0x190] sm:$0xff]
    %v4207 = vld [vmem:[#allocation11 + $0x198] sm:$0xff]
    %v4208 = vld [vmem:[#allocation11 + $0x1a0] sm:$0xff]
    %v4209 = vld [vmem:[#allocation11 + $0x1a8] sm:$0xff]
    %v4210 = vld [vmem:[#allocation11 + $0x1b0] sm:$0xff]
    %v4211 = vld [vmem:[#allocation11 + $0x1b8] sm:$0xff]
    %v4212 = vld [vmem:[#allocation11 + $0x1c0] sm:$0xff]
    %v4213 = vld [vmem:[#allocation11 + $0x1c8] sm:$0xff]
    %v4214 = vld [vmem:[#allocation11 + $0x1d0] sm:$0xff]
    %v4215 = vld [vmem:[#allocation11 + $0x1d8] sm:$0xff]
    %v4216 = vld [vmem:[#allocation11 + $0x1e0] sm:$0xff]
    %v4217 = vld [vmem:[#allocation11 + $0x1e8] sm:$0xff]
    %v4218 = vld [vmem:[#allocation11 + $0x1f0] sm:$0xff]
    %v4219 = vld [vmem:[#allocation11 + $0x1f8] sm:$0xff]
    %v4220 = vld [vmem:[%s9] sm:$0xf]
    %v4222 = vlaneseq
    %v4223 = vshrl.u32 %v4222, 7
    %v4224 = vsub.s32 0, %v4223
    %v4225 = vrot.slane %v4220, %v4224
    %v4226 = vlaneseq
    %v4227 = vshrl.u32 %v4226, 7
    %v4228 = vsub.s32 1, %v4227
    %v4229 = vrot.slane %v4220, %v4228
    %v4230 = vlaneseq
    %v4231 = vshrl.u32 %v4230, 7
    %v4232 = vsub.s32 2, %v4231
    %v4233 = vrot.slane %v4220, %v4232
    %v4234 = vlaneseq
    %v4235 = vshrl.u32 %v4234, 7
    %v4236 = vsub.s32 3, %v4235
    %v4237 = vrot.slane %v4220, %v4236
    %4242 = vmatprep.subr.mxu0 %v4157
    %4243 = vmatpush1.msra.mxu0 %v4156
    %4244 = vmatprep.subr.mxu0 %v4161
    %4245 = vmatpush1.msra.mxu0 %v4160
    %4246 = vmatprep.subr.mxu0 %v4165
    %4247 = vmatpush1.msra.mxu0 %v4164
    %4248 = vmatprep.subr.mxu0 %v4169
    %4249 = vmatpush1.msra.mxu0 %v4168
    %4250 = vmatprep.subr.mxu0 %v4173
    %4251 = vmatpush1.msra.mxu0 %v4172
    %4252 = vmatprep.subr.mxu0 %v4177
    %4253 = vmatpush1.msra.mxu0 %v4176
    %4254 = vmatprep.subr.mxu0 %v4181
    %4255 = vmatpush1.msra.mxu0 %v4180
    %4256 = vmatprep.subr.mxu0 %v4185
    %4257 = vmatpush1.msra.mxu0 %v4184
    %4258 = vmatprep.subr.mxu0 %v4189
    %4259 = vmatpush1.msra.mxu0 %v4188
    %4260 = vmatprep.subr.mxu0 %v4193
    %4261 = vmatpush1.msra.mxu0 %v4192
    %4262 = vmatprep.subr.mxu0 %v4197
    %4263 = vmatpush1.msra.mxu0 %v4196
    %4264 = vmatprep.subr.mxu0 %v4201
    %4265 = vmatpush1.msra.mxu0 %v4200
    %4266 = vmatprep.subr.mxu0 %v4205
    %4267 = vmatpush1.msra.mxu0 %v4204
    %4268 = vmatprep.subr.mxu0 %v4209
    %4269 = vmatpush1.msra.mxu0 %v4208
    %4270 = vmatprep.subr.mxu0 %v4213
    %4271 = vmatpush1.msra.mxu0 %v4212
    %4272 = vmatprep.subr.mxu0 %v4217
    %4273 = vmatpush1.msra.mxu0 %v4216
    %4274 = vmatprep.subr.mxu0 0.0
    %4275 = vmatpush1.msra.mxu0 0.0
    %4276 = vmatprep.subr.mxu0 0.0
    %4277 = vmatpush1.msra.mxu0 0.0
    %4278 = vmatprep.subr.mxu0 0.0
    %4279 = vmatpush1.msra.mxu0 0.0
    %4280 = vmatprep.subr.mxu0 0.0
    %4281 = vmatpush1.msra.mxu0 0.0
    %4282 = vmatprep.subr.mxu0 0.0
    %4283 = vmatpush1.msra.mxu0 0.0
    %4284 = vmatprep.subr.mxu0 0.0
    %4285 = vmatpush1.msra.mxu0 0.0
    %4286 = vmatprep.subr.mxu0 0.0
    %4287 = vmatpush1.msra.mxu0 0.0
    %4288 = vmatprep.subr.mxu0 0.0
    %4289 = vmatpush1.msra.mxu0 0.0
    %4290 = vmatprep.subr.mxu0 0.0
    %4291 = vmatpush1.msra.mxu0 0.0
    %4292 = vmatprep.subr.mxu0 0.0
    %4293 = vmatpush1.msra.mxu0 0.0
    %4294 = vmatprep.subr.mxu0 0.0
    %4295 = vmatpush1.msra.mxu0 0.0
    %4296 = vmatprep.subr.mxu0 0.0
    %4297 = vmatpush1.msra.mxu0 0.0
    %4298 = vmatprep.subr.mxu0 0.0
    %4299 = vmatpush1.msra.mxu0 0.0
    %4300 = vmatprep.subr.mxu0 0.0
    %4301 = vmatpush1.msra.mxu0 0.0
    %4302 = vmatprep.subr.mxu0 0.0
    %4303 = vmatpush1.msra.mxu0 0.0
    %4304 = vmatprep.subr.mxu0 0.0
    %4305 = vmatpush1.msra.mxu0 0.0
    %4306 = vmatprep.mubr.f32.mxu0 0.0
    %4307 = vmatmul.mubr.f32.gmra.mrb[0].mxu0 %v4155
    %v4308 = vpop.f32.mrb[0].mxu0
    %v4309 = vadd.f32 %v4225, %v4308
    %v4310 = vpop.f32.mrb[0].mxu0
    %v4311 = vadd.f32 %v4229, %v4310
    %4312 = vdwg.mxu0
    %4313 = vmatprep.subr.mxu0 %v4159
    %4314 = vmatpush1.msra.mxu0 %v4158
    %4315 = vmatprep.subr.mxu0 %v4163
    %4316 = vmatpush1.msra.mxu0 %v4162
    %4317 = vmatprep.subr.mxu0 %v4167
    %4318 = vmatpush1.msra.mxu0 %v4166
    %4319 = vmatprep.subr.mxu0 %v4171
    %4320 = vmatpush1.msra.mxu0 %v4170
    %4321 = vmatprep.subr.mxu0 %v4175
    %4322 = vmatpush1.msra.mxu0 %v4174
    %4323 = vmatprep.subr.mxu0 %v4179
    %4324 = vmatpush1.msra.mxu0 %v4178
    %4325 = vmatprep.subr.mxu0 %v4183
    %4326 = vmatpush1.msra.mxu0 %v4182
    %4327 = vmatprep.subr.mxu0 %v4187
    %4328 = vmatpush1.msra.mxu0 %v4186
    %4329 = vmatprep.subr.mxu0 %v4191
    %4330 = vmatpush1.msra.mxu0 %v4190
    %4331 = vmatprep.subr.mxu0 %v4195
    %4332 = vmatpush1.msra.mxu0 %v4194
    %4333 = vmatprep.subr.mxu0 %v4199
    %4334 = vmatpush1.msra.mxu0 %v4198
    %4335 = vmatprep.subr.mxu0 %v4203
    %4336 = vmatpush1.msra.mxu0 %v4202
    %4337 = vmatprep.subr.mxu0 %v4207
    %4338 = vmatpush1.msra.mxu0 %v4206
    %4339 = vmatprep.subr.mxu0 %v4211
    %4340 = vmatpush1.msra.mxu0 %v4210
    %4341 = vmatprep.subr.mxu0 %v4215
    %4342 = vmatpush1.msra.mxu0 %v4214
    %4343 = vmatprep.subr.mxu0 %v4219
    %4344 = vmatpush1.msra.mxu0 %v4218
    %4345 = vmatprep.subr.mxu0 0.0
    %4346 = vmatpush1.msra.mxu0 0.0
    %4347 = vmatprep.subr.mxu0 0.0
    %4348 = vmatpush1.msra.mxu0 0.0
    %4349 = vmatprep.subr.mxu0 0.0
    %4350 = vmatpush1.msra.mxu0 0.0
    %4351 = vmatprep.subr.mxu0 0.0
    %4352 = vmatpush1.msra.mxu0 0.0
    %4353 = vmatprep.subr.mxu0 0.0
    %4354 = vmatpush1.msra.mxu0 0.0
    %4355 = vmatprep.subr.mxu0 0.0
    %4356 = vmatpush1.msra.mxu0 0.0
    %4357 = vmatprep.subr.mxu0 0.0
    %4358 = vmatpush1.msra.mxu0 0.0
    %4359 = vmatprep.subr.mxu0 0.0
    %4360 = vmatpush1.msra.mxu0 0.0
    %4361 = vmatprep.subr.mxu0 0.0
    %4362 = vmatpush1.msra.mxu0 0.0
    %4363 = vmatprep.subr.mxu0 0.0
    %4364 = vmatpush1.msra.mxu0 0.0
    %4365 = vmatprep.subr.mxu0 0.0
    %4366 = vmatpush1.msra.mxu0 0.0
    %4367 = vmatprep.subr.mxu0 0.0
    %4368 = vmatpush1.msra.mxu0 0.0
    %4369 = vmatprep.subr.mxu0 0.0
    %4370 = vmatpush1.msra.mxu0 0.0
    %4371 = vmatprep.subr.mxu0 0.0
    %4372 = vmatpush1.msra.mxu0 0.0
    %4373 = vmatprep.subr.mxu0 0.0
    %4374 = vmatpush1.msra.mxu0 0.0
    %4375 = vmatprep.subr.mxu0 0.0
    %4376 = vmatpush1.msra.mxu0 0.0
    %4377 = vmatprep.mubr.f32.mxu0 0.0
    %4378 = vmatmul.mubr.f32.gmra.mrb[0].mxu0 %v4155
    %v4379 = vpop.f32.mrb[0].mxu0
    %v4380 = vadd.f32 %v4233, %v4379
    %v4381 = vpop.f32.mrb[0].mxu0
    %v4382 = vadd.f32 %v4237, %v4381
    %4383 = vdwg.mxu0
    %v4384 = vmax.f32 %v4309, 0.0
    %v4385 = vmax.f32 %v4311, 0.0
    %v4386 = vmax.f32 %v4380, 0.0
    %v4387 = vmax.f32 %v4382, 0.0
    %v4388 = vld [vmem:[#allocation13] sm:$0xff]
    %v4389 = vld [vmem:[#allocation13 + $0x8] sm:$0xff]
    %v4390 = vld [vmem:[#allocation13 + $0x10] sm:$0xff]
    %v4391 = vld [vmem:[#allocation13 + $0x18] sm:$0xff]
    %v4392 = vld [vmem:[#allocation13 + $0x20] sm:$0xff]
    %v4393 = vld [vmem:[#allocation13 + $0x28] sm:$0xff]
    %v4394 = vld [vmem:[#allocation13 + $0x30] sm:$0xff]
    %v4395 = vld [vmem:[#allocation13 + $0x38] sm:$0xff]
    %v4396 = vld [vmem:[#allocation13 + $0x40] sm:$0xff]
    %v4397 = vld [vmem:[#allocation13 + $0x48] sm:$0xff]
    %v4398 = vld [vmem:[#allocation13 + $0x50] sm:$0xff]
    %v4399 = vld [vmem:[#allocation13 + $0x58] sm:$0xff]
    %v4400 = vld [vmem:[#allocation13 + $0x60] sm:$0xff]
    %v4401 = vld [vmem:[#allocation13 + $0x68] sm:$0xff]
    %v4402 = vld [vmem:[#allocation13 + $0x70] sm:$0xff]
    %v4403 = vld [vmem:[#allocation13 + $0x78] sm:$0xff]
    %v4404 = vld [vmem:[#allocation13 + $0x80] sm:$0xff]
    %v4405 = vld [vmem:[#allocation13 + $0x88] sm:$0xff]
    %v4406 = vld [vmem:[#allocation13 + $0x90] sm:$0xff]
    %v4407 = vld [vmem:[#allocation13 + $0x98] sm:$0xff]
    %v4408 = vld [vmem:[#allocation13 + $0xa0] sm:$0xff]
    %v4409 = vld [vmem:[#allocation13 + $0xa8] sm:$0xff]
    %v4410 = vld [vmem:[#allocation13 + $0xb0] sm:$0xff]
    %v4411 = vld [vmem:[#allocation13 + $0xb8] sm:$0xff]
    %v4412 = vld [vmem:[#allocation13 + $0xc0] sm:$0xff]
    %v4413 = vld [vmem:[#allocation13 + $0xc8] sm:$0xff]
    %v4414 = vld [vmem:[#allocation13 + $0xd0] sm:$0xff]
    %v4415 = vld [vmem:[#allocation13 + $0xd8] sm:$0xff]
    %v4416 = vld [vmem:[#allocation13 + $0xe0] sm:$0xff]
    %v4417 = vld [vmem:[#allocation13 + $0xe8] sm:$0xff]
    %v4418 = vld [vmem:[#allocation13 + $0xf0] sm:$0xff]
    %v4419 = vld [vmem:[#allocation13 + $0xf8] sm:$0xff]
    %v4420 = vld [vmem:[#allocation13 + $0x100] sm:$0xff]
    %v4421 = vld [vmem:[#allocation13 + $0x108] sm:$0xff]
    %v4422 = vld [vmem:[#allocation13 + $0x110] sm:$0xff]
    %v4423 = vld [vmem:[#allocation13 + $0x118] sm:$0xff]
    %v4424 = vld [vmem:[#allocation13 + $0x120] sm:$0xff]
    %v4425 = vld [vmem:[#allocation13 + $0x128] sm:$0xff]
    %v4426 = vld [vmem:[#allocation13 + $0x130] sm:$0xff]
    %v4427 = vld [vmem:[#allocation13 + $0x138] sm:$0xff]
    %v4428 = vld [vmem:[#allocation13 + $0x140] sm:$0xff]
    %v4429 = vld [vmem:[#allocation13 + $0x148] sm:$0xff]
    %v4430 = vld [vmem:[#allocation13 + $0x150] sm:$0xff]
    %v4431 = vld [vmem:[#allocation13 + $0x158] sm:$0xff]
    %v4432 = vld [vmem:[#allocation13 + $0x160] sm:$0xff]
    %v4433 = vld [vmem:[#allocation13 + $0x168] sm:$0xff]
    %v4434 = vld [vmem:[#allocation13 + $0x170] sm:$0xff]
    %v4435 = vld [vmem:[#allocation13 + $0x178] sm:$0xff]
    %v4436 = vld [vmem:[#allocation13 + $0x180] sm:$0xff]
    %v4437 = vld [vmem:[#allocation13 + $0x188] sm:$0xff]
    %v4438 = vld [vmem:[#allocation13 + $0x190] sm:$0xff]
    %v4439 = vld [vmem:[#allocation13 + $0x198] sm:$0xff]
    %v4440 = vld [vmem:[#allocation13 + $0x1a0] sm:$0xff]
    %v4441 = vld [vmem:[#allocation13 + $0x1a8] sm:$0xff]
    %v4442 = vld [vmem:[#allocation13 + $0x1b0] sm:$0xff]
    %v4443 = vld [vmem:[#allocation13 + $0x1b8] sm:$0xff]
    %v4444 = vld [vmem:[#allocation13 + $0x1c0] sm:$0xff]
    %v4445 = vld [vmem:[#allocation13 + $0x1c8] sm:$0xff]
    %v4446 = vld [vmem:[#allocation13 + $0x1d0] sm:$0xff]
    %v4447 = vld [vmem:[#allocation13 + $0x1d8] sm:$0xff]
    %v4448 = vld [vmem:[#allocation13 + $0x1e0] sm:$0xff]
    %v4449 = vld [vmem:[#allocation13 + $0x1e8] sm:$0xff]
    %v4450 = vld [vmem:[#allocation13 + $0x1f0] sm:$0xff]
    %v4451 = vld [vmem:[#allocation13 + $0x1f8] sm:$0xff]
    %v4452 = vld [vmem:[%s11] sm:$0x1]
    %v4454 = vlaneseq
    %v4455 = vshrl.u32 %v4454, 7
    %v4456 = vsub.s32 0, %v4455
    %v4457 = vrot.slane %v4452, %v4456
    %4459 = vmatprep.subr.mxu0 0.0
    %4460 = vmatpush1.msra.mxu0 %v4388
    %4461 = vmatprep.subr.mxu0 0.0
    %4462 = vmatpush1.msra.mxu0 %v4389
    %4463 = vmatprep.subr.mxu0 0.0
    %4464 = vmatpush1.msra.mxu0 %v4390
    %4465 = vmatprep.subr.mxu0 0.0
    %4466 = vmatpush1.msra.mxu0 %v4391
    %4467 = vmatprep.subr.mxu0 0.0
    %4468 = vmatpush1.msra.mxu0 %v4392
    %4469 = vmatprep.subr.mxu0 0.0
    %4470 = vmatpush1.msra.mxu0 %v4393
    %4471 = vmatprep.subr.mxu0 0.0
    %4472 = vmatpush1.msra.mxu0 %v4394
    %4473 = vmatprep.subr.mxu0 0.0
    %4474 = vmatpush1.msra.mxu0 %v4395
    %4475 = vmatprep.subr.mxu0 0.0
    %4476 = vmatpush1.msra.mxu0 %v4396
    %4477 = vmatprep.subr.mxu0 0.0
    %4478 = vmatpush1.msra.mxu0 %v4397
    %4479 = vmatprep.subr.mxu0 0.0
    %4480 = vmatpush1.msra.mxu0 %v4398
    %4481 = vmatprep.subr.mxu0 0.0
    %4482 = vmatpush1.msra.mxu0 %v4399
    %4483 = vmatprep.subr.mxu0 0.0
    %4484 = vmatpush1.msra.mxu0 %v4400
    %4485 = vmatprep.subr.mxu0 0.0
    %4486 = vmatpush1.msra.mxu0 %v4401
    %4487 = vmatprep.subr.mxu0 0.0
    %4488 = vmatpush1.msra.mxu0 %v4402
    %4489 = vmatprep.subr.mxu0 0.0
    %4490 = vmatpush1.msra.mxu0 %v4403
    %4491 = vmatprep.subr.mxu0 0.0
    %4492 = vmatpush1.msra.mxu0 %v4404
    %4493 = vmatprep.subr.mxu0 0.0
    %4494 = vmatpush1.msra.mxu0 %v4405
    %4495 = vmatprep.subr.mxu0 0.0
    %4496 = vmatpush1.msra.mxu0 %v4406
    %4497 = vmatprep.subr.mxu0 0.0
    %4498 = vmatpush1.msra.mxu0 %v4407
    %4499 = vmatprep.subr.mxu0 0.0
    %4500 = vmatpush1.msra.mxu0 %v4408
    %4501 = vmatprep.subr.mxu0 0.0
    %4502 = vmatpush1.msra.mxu0 %v4409
    %4503 = vmatprep.subr.mxu0 0.0
    %4504 = vmatpush1.msra.mxu0 %v4410
    %4505 = vmatprep.subr.mxu0 0.0
    %4506 = vmatpush1.msra.mxu0 %v4411
    %4507 = vmatprep.subr.mxu0 0.0
    %4508 = vmatpush1.msra.mxu0 %v4412
    %4509 = vmatprep.subr.mxu0 0.0
    %4510 = vmatpush1.msra.mxu0 %v4413
    %4511 = vmatprep.subr.mxu0 0.0
    %4512 = vmatpush1.msra.mxu0 %v4414
    %4513 = vmatprep.subr.mxu0 0.0
    %4514 = vmatpush1.msra.mxu0 %v4415
    %4515 = vmatprep.subr.mxu0 0.0
    %4516 = vmatpush1.msra.mxu0 %v4416
    %4517 = vmatprep.subr.mxu0 0.0
    %4518 = vmatpush1.msra.mxu0 %v4417
    %4519 = vmatprep.subr.mxu0 0.0
    %4520 = vmatpush1.msra.mxu0 %v4418
    %4521 = vmatprep.subr.mxu0 0.0
    %4522 = vmatpush1.msra.mxu0 %v4419
    %4523 = vmatprep.mubr.f32.mxu0 %v4385
    %4524 = vmatmul.mubr.f32.gmra.mrb[0].mxu0 %v4384
    %v4525 = vpop.f32.mrb[0].mxu0
    %v4526 = vadd.f32 %v4457, %v4525
    %v4527 = vpop.f32.mrb[0].mxu0
    %4528 = vdwg.mxu0
    %4529 = vmatprep.subr.mxu0 0.0
    %4530 = vmatpush1.msra.mxu0 %v4420
    %4531 = vmatprep.subr.mxu0 0.0
    %4532 = vmatpush1.msra.mxu0 %v4421
    %4533 = vmatprep.subr.mxu0 0.0
    %4534 = vmatpush1.msra.mxu0 %v4422
    %4535 = vmatprep.subr.mxu0 0.0
    %4536 = vmatpush1.msra.mxu0 %v4423
    %4537 = vmatprep.subr.mxu0 0.0
    %4538 = vmatpush1.msra.mxu0 %v4424
    %4539 = vmatprep.subr.mxu0 0.0
    %4540 = vmatpush1.msra.mxu0 %v4425
    %4541 = vmatprep.subr.mxu0 0.0
    %4542 = vmatpush1.msra.mxu0 %v4426
    %4543 = vmatprep.subr.mxu0 0.0
    %4544 = vmatpush1.msra.mxu0 %v4427
    %4545 = vmatprep.subr.mxu0 0.0
    %4546 = vmatpush1.msra.mxu0 %v4428
    %4547 = vmatprep.subr.mxu0 0.0
    %4548 = vmatpush1.msra.mxu0 %v4429
    %4549 = vmatprep.subr.mxu0 0.0
    %4550 = vmatpush1.msra.mxu0 %v4430
    %4551 = vmatprep.subr.mxu0 0.0
    %4552 = vmatpush1.msra.mxu0 %v4431
    %4553 = vmatprep.subr.mxu0 0.0
    %4554 = vmatpush1.msra.mxu0 %v4432
    %4555 = vmatprep.subr.mxu0 0.0
    %4556 = vmatpush1.msra.mxu0 %v4433
    %4557 = vmatprep.subr.mxu0 0.0
    %4558 = vmatpush1.msra.mxu0 %v4434
    %4559 = vmatprep.subr.mxu0 0.0
    %4560 = vmatpush1.msra.mxu0 %v4435
    %4561 = vmatprep.subr.mxu0 0.0
    %4562 = vmatpush1.msra.mxu0 %v4436
    %4563 = vmatprep.subr.mxu0 0.0
    %4564 = vmatpush1.msra.mxu0 %v4437
    %4565 = vmatprep.subr.mxu0 0.0
    %4566 = vmatpush1.msra.mxu0 %v4438
    %4567 = vmatprep.subr.mxu0 0.0
    %4568 = vmatpush1.msra.mxu0 %v4439
    %4569 = vmatprep.subr.mxu0 0.0
    %4570 = vmatpush1.msra.mxu0 %v4440
    %4571 = vmatprep.subr.mxu0 0.0
    %4572 = vmatpush1.msra.mxu0 %v4441
    %4573 = vmatprep.subr.mxu0 0.0
    %4574 = vmatpush1.msra.mxu0 %v4442
    %4575 = vmatprep.subr.mxu0 0.0
    %4576 = vmatpush1.msra.mxu0 %v4443
    %4577 = vmatprep.subr.mxu0 0.0
    %4578 = vmatpush1.msra.mxu0 %v4444
    %4579 = vmatprep.subr.mxu0 0.0
    %4580 = vmatpush1.msra.mxu0 %v4445
    %4581 = vmatprep.subr.mxu0 0.0
    %4582 = vmatpush1.msra.mxu0 %v4446
    %4583 = vmatprep.subr.mxu0 0.0
    %4584 = vmatpush1.msra.mxu0 %v4447
    %4585 = vmatprep.subr.mxu0 0.0
    %4586 = vmatpush1.msra.mxu0 %v4448
    %4587 = vmatprep.subr.mxu0 0.0
    %4588 = vmatpush1.msra.mxu0 %v4449
    %4589 = vmatprep.subr.mxu0 0.0
    %4590 = vmatpush1.msra.mxu0 %v4450
    %4591 = vmatprep.subr.mxu0 0.0
    %4592 = vmatpush1.msra.mxu0 %v4451
    %4593 = vmatprep.mubr.f32.mxu0 %v4387
    %4594 = vmatmul.mubr.f32.gmra.mrb[0].mxu0 %v4386
    %v4595 = vpop.f32.mrb[0].mxu0
    %v4596 = vadd.f32 %v4526, %v4595
    %v4597 = vpop.f32.mrb[0].mxu0
    %4598 = vdwg.mxu0
    %4599 = vst [vmem:[#allocation14] sm:$0xff] %v4596
    // Predicated region
    $region78: #{tpu_custom_call.1} parent=1 // pred_check
      _
    $region79: #{tpu_custom_call.1} parent=1 // pred_check_branch
      %4601 = sbr.rel (0) target = $region81
    $region80: #{tpu_custom_call.1} parent=1 // pred_region
      %s4603 = ssub.s32 128, 128
      %4604 = vsyncadd [#allocation4], %s4603
      %s4606 = sshll.u32 [#allocation14], 4
      %s4607 = int_to_ptr.vmem [resolvable:$true] %s4606
      %4609 = dma.vmem_to_hbm [thread:$0]  %s4607, 128, %s12, [#allocation4]
    $region81: #{tpu_custom_call.1} parent=1 // pred_fallthru
      _
    // Predicated region
    $region82: #{tpu_custom_call.1} parent=1 // pred_check
      _
    $region83: #{tpu_custom_call.1} parent=1 // pred_check_branch
      %4611 = sbr.rel (0) target = $region85
    $region84: #{tpu_custom_call.1} parent=1 // pred_region
      %4612 = dma.done [#allocation4], 128
    $region85: #{tpu_custom_call.1} parent=1 // pred_fallthru
      _
    %4613 = vsyncpa [#allocation3], 1
    %4614 = vsyncpa [#allocation6], 1
    %4615 = vsyncpa [#allocation9], 1
    %4616 = vsyncpa [#allocation12], 1
    %4617 = vsyncpa [#allocation4], 1

</llo_original>
